<compile_context>
chip_gen: v7x
topology: tpu7x:2x2x1
jax: 0.10.0
libtpu: 0.0.40
codegen_flags: <defaults>
</compile_context>

<pallas_src>
import jax
import jax.numpy as jnp
from jax.experimental import pallas as pl
from jax.experimental.pallas import tpu as pltpu


def _const_spec(arr):
    """Whole-array block that does not change across the grid (weights / biases)."""
    nd = arr.ndim
    return pl.BlockSpec(arr.shape, lambda n, _nd=nd: (0,) * _nd)


# ---------------------------------------------------------------------------
# Fused kernel: conv1x1+BN+ReLU -> conv3x3+BN+ReLU -> conv1x1+BN
#               -> channel attention -> spatial attention -> residual -> ReLU
# ---------------------------------------------------------------------------
def _bottleneck_kernel(x_ref, w1_ref, b1_ref, w2_ref, b2_ref, w3_ref, b3_ref,
                       cw1_ref, cw2_ref, wsa_ref, o_ref, pad_sc, apad, mpad):
    _, H, W, Cin = x_ref.shape
    C1 = w1_ref.shape[1]
    C4 = w3_ref.shape[1]
    f32 = jnp.float32
    bf16 = jnp.bfloat16

    xin = x_ref[0]                                   # (H, W, Cin) f32 -- also the residual

    # ---- conv1 (1x1) + folded BN + ReLU : one (H*W, Cin) x (Cin, C1) bf16 MXU matmul
    h1 = jnp.dot(xin.reshape(H * W, Cin).astype(bf16), w1_ref[...],
                 preferred_element_type=f32) + b1_ref[...]
    h1 = jnp.maximum(h1, 0.0)

    # ---- conv2 (3x3, pad=1): zero only the 1px border of the padded scratch (interior is
    #      fully overwritten below), then 9 tap matmuls accumulated in f32.
    pad_sc[0, :, :] = jnp.zeros((W + 2, C1), f32)
    pad_sc[H + 1, :, :] = jnp.zeros((W + 2, C1), f32)
    pad_sc[:, 0, :] = jnp.zeros((H + 2, C1), f32)
    pad_sc[:, W + 1, :] = jnp.zeros((H + 2, C1), f32)
    pad_sc[1:H + 1, 1:W + 1, :] = h1.reshape(H, W, C1)

    xp = pad_sc[...].astype(bf16)                    # one load + one cast, sliced as values
    acc2 = jnp.zeros((H * W, C1), f32)
    for dy in range(3):
        for dx in range(3):
            lhs = xp[dy:dy + H, dx:dx + W, :].reshape(H * W, C1)
            acc2 = acc2 + jnp.dot(lhs, w2_ref[dy * 3 + dx], preferred_element_type=f32)
    h2 = jnp.maximum(acc2 + b2_ref[...], 0.0)

    # ---- conv3 (1x1) + folded BN (no ReLU)
    y = jnp.dot(h2.astype(bf16), w3_ref[...], preferred_element_type=f32) + b3_ref[...]  # (H*W, C4)

    # ---- channel attention: batched avg/max pooling through the shared MLP, then sigmoid
    pooled = jnp.concatenate([jnp.mean(y, axis=0, keepdims=True),
                              jnp.max(y, axis=0, keepdims=True)], axis=0)    # (2, C4)
    hmid = jnp.maximum(jnp.dot(pooled.astype(bf16), cw1_ref[...],
                               preferred_element_type=f32), 0.0)
    logits = jnp.dot(hmid.astype(bf16), cw2_ref[...], preferred_element_type=f32)  # (2, C4)
    ca = jax.nn.sigmoid(logits[0:1, :] + logits[1:2, :])                     # (1, C4)

    y2 = (y * ca).reshape(H, W, C4)                  # channel attention applied

    # ---- spatial attention: 7x7 conv (pad=3) on [mean_c, max_c]
    avg_c = jnp.mean(y2, axis=-1)                    # (H, W)
    max_c = jnp.max(y2, axis=-1)                     # (H, W)

    zrow = jnp.zeros((3, W + 6), f32)
    zcol = jnp.zeros((H + 6, 3), f32)
    apad[0:3, :] = zrow
    apad[H + 3:H + 6, :] = zrow
    apad[:, 0:3] = zcol
    apad[:, W + 3:W + 6] = zcol
    mpad[0:3, :] = zrow
    mpad[H + 3:H + 6, :] = zrow
    mpad[:, 0:3] = zcol
    mpad[:, W + 3:W + 6] = zcol
    apad[3:3 + H, 3:3 + W] = avg_c
    mpad[3:3 + H, 3:3 + W] = max_c

    ap = apad[...]
    mp = mpad[...]
    acc = jnp.zeros((H, W), f32)
    for dy in range(7):
        arow = ap[dy:dy + H, :]                      # reuse one dy band for all 7 dx taps
        mrow = mp[dy:dy + H, :]
        for dx in range(7):
            acc = acc + wsa_ref[dy * 7 + dx] * arow[:, dx:dx + W]
            acc = acc + wsa_ref[49 + dy * 7 + dx] * mrow[:, dx:dx + W]
    sa = jax.nn.sigmoid(acc)                         # (H, W)

    out = y2 * sa[:, :, None] + xin
    o_ref[0] = jnp.maximum(out, 0.0).astype(o_ref.dtype)


def bottleneck_pallas(x, p):
    N, H, W, Cin = x.shape
    C1 = p['w1f'].shape[1]
    C4 = p['w3f'].shape[1]
    Cr = p['ca_w1'].shape[1]

    flops = (2 * N * H * W * (Cin * C1 + 9 * C1 * C1 + C1 * C4 + 98)
             + 4 * N * (C4 * Cr + Cr * C4))
    transcendentals = N * (C4 + H * W)
    bytes_accessed = (4 * (int(x.size) + N * H * W * C4)
                      + 2 * (int(p['w1f'].size) + int(p['w2f'].size) + int(p['w3f'].size)
                             + int(p['ca_w1'].size) + int(p['ca_w2'].size))
                      + 4 * (int(p['b1'].size) + int(p['b2'].size) + int(p['b3'].size)
                             + int(p['sa_w'].size)))

    return pl.pallas_call(
        _bottleneck_kernel,
        out_shape=jax.ShapeDtypeStruct((N, H, W, C4), x.dtype),
        grid=(N,),
        in_specs=[pl.BlockSpec((1, H, W, Cin), lambda n: (n, 0, 0, 0)),
                  _const_spec(p['w1f']), _const_spec(p['b1']),
                  _const_spec(p['w2f']), _const_spec(p['b2']),
                  _const_spec(p['w3f']), _const_spec(p['b3']),
                  _const_spec(p['ca_w1']), _const_spec(p['ca_w2']),
                  pl.BlockSpec(memory_space=pltpu.MemorySpace.SMEM)],
        out_specs=pl.BlockSpec((1, H, W, C4), lambda n: (n, 0, 0, 0)),
        scratch_shapes=[pltpu.VMEM((H + 2, W + 2, C1), jnp.float32),
                        pltpu.VMEM((H + 6, W + 6), jnp.float32),
                        pltpu.VMEM((H + 6, W + 6), jnp.float32)],
        compiler_params=pltpu.CompilerParams(
            dimension_semantics=("parallel",),
            vmem_limit_bytes=48 * 1024 * 1024),
        cost_estimate=pl.CostEstimate(flops=flops, transcendentals=transcendentals,
                                      bytes_accessed=bytes_accessed),
    )(x, p['w1f'], p['b1'], p['w2f'], p['b2'], p['w3f'], p['b3'],
      p['ca_w1'], p['ca_w2'], p['sa_w'])


# ---------------------------------------------------------------------------
# Bottleneck forward (stride=1, downsample=None  =>  residual = x)
# ---------------------------------------------------------------------------
@jax.jit
def bottleneck_forward(x, p):
    return bottleneck_pallas(x, p)


# ---------------------------------------------------------------------------
# Deterministic parameter init (synthetic, no checkpoint) + host-side BN folding
# ---------------------------------------------------------------------------
def init_params(key, inplanes, planes):
    c4 = planes * 4
    cr = max(c4 // 16, 1)
    ks = jax.random.split(key, 9)

    def w_init(k, shape, fan_in):
        return jax.random.normal(k, shape, jnp.float32) / jnp.sqrt(float(fan_in))

    def bn_init(k, c):
        k1, k2, k3, k4 = jax.random.split(k, 4)
        gamma = 1.0 + 0.1 * jax.random.normal(k1, (c,), jnp.float32)
        beta = 0.1 * jax.random.normal(k2, (c,), jnp.float32)
        mean = 0.1 * jax.random.normal(k3, (c,), jnp.float32)
        var = 1.0 + 0.1 * jax.random.uniform(k4, (c,), jnp.float32)
        scale = gamma * jax.lax.rsqrt(var + 1e-5)
        shift = beta - mean * scale
        return scale.reshape(1, c), shift.reshape(1, c)

    bn1_s, bn1_b = bn_init(ks[6], planes)
    bn2_s, bn2_b = bn_init(ks[7], planes)
    bn3_s, bn3_b = bn_init(ks[8], c4)
    return dict(
        w1=w_init(ks[0], (inplanes, planes), inplanes),
        w2=w_init(ks[1], (3, 3, planes, planes), 9 * planes),
        w3=w_init(ks[2], (planes, c4), planes),
        ca_w1=w_init(ks[3], (c4, cr), c4),
        ca_w2=w_init(ks[4], (cr, c4), cr),
        sa_w=w_init(ks[5], (2 * 7 * 7,), 2 * 49),
        bn1_scale=bn1_s, bn1_shift=bn1_b,
        bn2_scale=bn2_s, bn2_shift=bn2_b,
        bn3_scale=bn3_s, bn3_shift=bn3_b,
    )


def fold_params(p):
    """Fold eval-mode BN scale into conv weights; tap-major 3x3; bf16 matmul operands."""
    bf16 = jnp.bfloat16
    c1 = p['w1'].shape[1]
    w2f = (p['w2'] * p['bn2_scale'].reshape(1, 1, 1, c1)).reshape(9, c1, c1)
    return dict(
        w1f=(p['w1'] * p['bn1_scale']).astype(bf16),          # (Cin, C1)
        b1=p['bn1_shift'],                                    # (1, C1) f32
        w2f=w2f.astype(bf16),                                 # (9, C1, C1)
        b2=p['bn2_shift'],
        w3f=(p['w3'] * p['bn3_scale']).astype(bf16),          # (C1, C4)
        b3=p['bn3_shift'],
        ca_w1=p['ca_w1'].astype(bf16),
        ca_w2=p['ca_w2'].astype(bf16),
        sa_w=p['sa_w'],                                       # (98,) f32, lives in SMEM
    )


# ---------------------------------------------------------------------------
# Pure-JAX references
# ---------------------------------------------------------------------------
def ref_forward_matched(x, pf):
    """Reference that mirrors the kernel exactly (folded params, bf16 matmuls, f32 accumulate)."""
    bf16 = jnp.bfloat16
    f32 = jnp.float32
    N, H, W, _ = x.shape
    C1 = pf['w1f'].shape[1]

    def mm(a, b):
        return jax.lax.dot_general(a.astype(bf16), b.astype(bf16),
                                   dimension_numbers=(((a.ndim - 1,), (0,)), ((), ())),
                                   preferred_element_type=f32)

    h1 = jnp.maximum(mm(x, pf['w1f']) + pf['b1'][0], 0.0)                      # (N,H,W,C1)
    h1p = jnp.pad(h1, ((0, 0), (1, 1), (1, 1), (0, 0)))
    acc = jnp.zeros(h1.shape, f32)
    for dy in range(3):
        for dx in range(3):
            acc = acc + mm(h1p[:, dy:dy + H, dx:dx + W, :], pf['w2f'][dy * 3 + dx])
    h2 = jnp.maximum(acc + pf['b2'][0], 0.0)
    y = mm(h2, pf['w3f']) + pf['b3'][0]                                        # (N,H,W,C4)

    pooled = jnp.stack([jnp.mean(y, axis=(1, 2)), jnp.max(y, axis=(1, 2))], axis=1)  # (N,2,C4)
    hmid = jnp.maximum(mm(pooled, pf['ca_w1']), 0.0)
    logits = mm(hmid, pf['ca_w2'])
    ca = jax.nn.sigmoid(logits[:, 0, :] + logits[:, 1, :])
    y2 = y * ca[:, None, None, :]

    ap = jnp.pad(jnp.mean(y2, axis=-1), ((0, 0), (3, 3), (3, 3)))
    mp = jnp.pad(jnp.max(y2, axis=-1), ((0, 0), (3, 3), (3, 3)))
    wsa = pf['sa_w']
    sacc = jnp.zeros((N, H, W), f32)
    for dy in range(7):
        for dx in range(7):
            sacc = sacc + wsa[dy * 7 + dx] * ap[:, dy:dy + H, dx:dx + W]
            sacc = sacc + wsa[49 + dy * 7 + dx] * mp[:, dy:dy + H, dx:dx + W]
    out = y2 * jax.nn.sigmoid(sacc)[..., None] + x
    return jnp.maximum(out, 0.0)


def ref_forward(x, p):
    """Full-f32, un-folded reference (gross sanity check of the bf16 kernel)."""
    def bn(y, s, b):
        return y * s.reshape(1, 1, 1, -1) + b.reshape(1, 1, 1, -1)

    out = jnp.einsum('nhwc,co->nhwo', x, p['w1'])
    out = jnp.maximum(bn(out, p['bn1_scale'], p['bn1_shift']), 0.0)
    out = jax.lax.conv_general_dilated(out, p['w2'], (1, 1), 'SAME',
                                       dimension_numbers=('NHWC', 'HWIO', 'NHWC'))
    out = jnp.maximum(bn(out, p['bn2_scale'], p['bn2_shift']), 0.0)
    out = jnp.einsum('nhwc,co->nhwo', out, p['w3'])
    out = bn(out, p['bn3_scale'], p['bn3_shift'])

    avg = jnp.mean(out, axis=(1, 2))
    mx = jnp.max(out, axis=(1, 2))

    def fc(v):
        return jnp.maximum(v @ p['ca_w1'], 0.0) @ p['ca_w2']

    ca = jax.nn.sigmoid(fc(avg) + fc(mx))
    out = out * ca[:, None, None, :]

    sa_in = jnp.stack([jnp.mean(out, -1), jnp.max(out, -1)], axis=-1)
    w_sa = p['sa_w'].reshape(2, 7, 7).transpose(1, 2, 0)[..., None]
    sa = jax.lax.conv_general_dilated(sa_in, w_sa, (1, 1), 'SAME',
                                      dimension_numbers=('NHWC', 'HWIO', 'NHWC'))
    out = out * jax.nn.sigmoid(sa)
    out = out + x
    return jnp.maximum(out, 0.0)


if __name__ == "__main__":
    key = jax.random.PRNGKey(0)
    kx, kp = jax.random.split(key)

    N, H, W = 2, 8, 8              # N >= 2 keeps both TensorCores busy on v7x megacore
    planes = 8
    inplanes = planes * 4          # residual add requires inplanes == planes*4 (downsample=None)

    x = jax.random.normal(kx, (N, H, W, inplanes), jnp.float32)   # NHWC (PyTorch: (N, 32, 8, 8))
    raw = init_params(kp, inplanes, planes)
    params = fold_params(raw)

    out = jax.block_until_ready(bottleneck_forward(x, params))
    assert out.shape == (N, H, W, planes * 4)

    # Tight check vs a reference that mirrors the kernel's bf16-matmul / f32 math exactly.
    ref_m = ref_forward_matched(x, params)
    err_m = float(jnp.max(jnp.abs(out - ref_m)))
    assert err_m < 2e-3, err_m

    # Loose sanity check vs the full-f32 un-folded reference (bf16 matmul rounding expected).
    ref_f = ref_forward(x, raw)
    err_f = float(jnp.max(jnp.abs(out - ref_f)))
    assert err_f < 0.25, err_f

    print("KERNEL_OK")
</pallas_src>

<mosaic_0001>
module attributes {stable_mosaic.version = 11 : i64} {
  func.func @_bottleneck_kernel(%arg0: i32, %arg1: memref<1x8x8x32xf32, #tpu.memory_space<vmem>>, %arg2: memref<32x8xbf16, #tpu.memory_space<vmem>>, %arg3: memref<1x8xf32, #tpu.memory_space<vmem>>, %arg4: memref<9x8x8xbf16, #tpu.memory_space<vmem>>, %arg5: memref<1x8xf32, #tpu.memory_space<vmem>>, %arg6: memref<8x32xbf16, #tpu.memory_space<vmem>>, %arg7: memref<1x32xf32, #tpu.memory_space<vmem>>, %arg8: memref<32x2xbf16, #tpu.memory_space<vmem>>, %arg9: memref<2x32xbf16, #tpu.memory_space<vmem>>, %arg10: memref<98xf32, #tpu.memory_space<smem>>, %arg11: memref<1x8x8x32xf32, #tpu.memory_space<vmem>>, %arg12: memref<10x10x8xf32, #tpu.memory_space<vmem>>, %arg13: memref<14x14xf32, #tpu.memory_space<vmem>>, %arg14: memref<14x14xf32, #tpu.memory_space<vmem>>) attributes {dimension_semantics = [#tpu.dimension_semantics<parallel>], iteration_bounds = array<i64: 2>, scalar_prefetch = 0 : i64, scratch_operands = 3 : i64, tpu.core_type = #tpu.core_type<tc>, window_params = [{transform_indices = @transform_0, window_bounds = array<i64: 1, 8, 8, 32>}, {pipeline_mode = #tpu.pipeline_mode<synchronous>, transform_indices = @transform_1, window_bounds = array<i64: 32, 8>}, {pipeline_mode = #tpu.pipeline_mode<synchronous>, transform_indices = @transform_2, window_bounds = array<i64: 1, 8>}, {pipeline_mode = #tpu.pipeline_mode<synchronous>, transform_indices = @transform_3, window_bounds = array<i64: 9, 8, 8>}, {pipeline_mode = #tpu.pipeline_mode<synchronous>, transform_indices = @transform_4, window_bounds = array<i64: 1, 8>}, {pipeline_mode = #tpu.pipeline_mode<synchronous>, transform_indices = @transform_5, window_bounds = array<i64: 8, 32>}, {pipeline_mode = #tpu.pipeline_mode<synchronous>, transform_indices = @transform_6, window_bounds = array<i64: 1, 32>}, {pipeline_mode = #tpu.pipeline_mode<synchronous>, transform_indices = @transform_7, window_bounds = array<i64: 32, 2>}, {pipeline_mode = #tpu.pipeline_mode<synchronous>, transform_indices = @transform_8, window_bounds = array<i64: 2, 32>}, {transform_indices = @transform_9, window_bounds = array<i64: 98>}, {transform_indices = @transform_10, window_bounds = array<i64: 1, 8, 8, 32>}]} {
    %c0 = arith.constant 0 : index
    %c0_0 = arith.constant 0 : index
    %c0_1 = arith.constant 0 : index
    %c0_2 = arith.constant 0 : index
    %0 = vector.load %arg1[%c0, %c0_0, %c0_1, %c0_2] : memref<1x8x8x32xf32, #tpu.memory_space<vmem>>, vector<1x8x8x32xf32>
    %1 = vector.shape_cast %0 : vector<1x8x8x32xf32> to vector<8x8x32xf32>
    %2 = vector.shape_cast %1 : vector<8x8x32xf32> to vector<64x32xf32>
    %3 = arith.truncf %2 : vector<64x32xf32> to vector<64x32xbf16>
    %c0_3 = arith.constant 0 : index
    %c0_4 = arith.constant 0 : index
    %4 = vector.load %arg2[%c0_3, %c0_4] : memref<32x8xbf16, #tpu.memory_space<vmem>>, vector<32x8xbf16>
    %cst = arith.constant dense<0.000000e+00> : vector<64x8xf32>
    %5 = tpu.matmul %3, %4, %cst {dimension_numbers = #tpu.dot_dimension_numbers<[1], [0], [0], [1], [0, 0, 1, 1], [], []>} : vector<64x32xbf16>, vector<32x8xbf16>, vector<64x8xf32> -> vector<64x8xf32>
    %c0_5 = arith.constant 0 : index
    %c0_6 = arith.constant 0 : index
    %6 = vector.load %arg3[%c0_5, %c0_6] : memref<1x8xf32, #tpu.memory_space<vmem>>, vector<1x8xf32>
    %7 = vector.broadcast %6 : vector<1x8xf32> to vector<64x8xf32>
    %8 = arith.addf %5, %7 : vector<64x8xf32>
    %cst_7 = arith.constant 0.000000e+00 : f32
    %9 = vector.broadcast %cst_7 : f32 to vector<64x8xf32>
    %10 = arith.maximumf %8, %9 : vector<64x8xf32>
    %cst_8 = arith.constant 0.000000e+00 : f32
    %11 = vector.broadcast %cst_8 : f32 to vector<10x8xf32>
    %c0_9 = arith.constant 0 : index
    %c0_10 = arith.constant 0 : index
    %c0_11 = arith.constant 0 : index
    %12 = vector.load %arg12[%c0_9, %c0_10, %c0_11] : memref<10x10x8xf32, #tpu.memory_space<vmem>>, vector<1x10x8xf32>
    %13 = vector.shape_cast %12 : vector<1x10x8xf32> to vector<10x8xf32>
    %14 = vector.shape_cast %11 : vector<10x8xf32> to vector<1x10x8xf32>
    tpu.vector_store %arg12[%c0_9, %c0_10, %c0_11], %14 {strides = array<i32>} : memref<10x10x8xf32, #tpu.memory_space<vmem>>, vector<1x10x8xf32>,
    %cst_12 = arith.constant 0.000000e+00 : f32
    %15 = vector.broadcast %cst_12 : f32 to vector<10x8xf32>
    %c9 = arith.constant 9 : index
    %c0_13 = arith.constant 0 : index
    %c0_14 = arith.constant 0 : index
    %16 = vector.load %arg12[%c9, %c0_13, %c0_14] : memref<10x10x8xf32, #tpu.memory_space<vmem>>, vector<1x10x8xf32>
    %17 = vector.shape_cast %16 : vector<1x10x8xf32> to vector<10x8xf32>
    %18 = vector.shape_cast %15 : vector<10x8xf32> to vector<1x10x8xf32>
    tpu.vector_store %arg12[%c9, %c0_13, %c0_14], %18 {strides = array<i32>} : memref<10x10x8xf32, #tpu.memory_space<vmem>>, vector<1x10x8xf32>,
    %cst_15 = arith.constant 0.000000e+00 : f32
    %19 = vector.broadcast %cst_15 : f32 to vector<10x8xf32>
    %c0_16 = arith.constant 0 : index
    %c0_17 = arith.constant 0 : index
    %c0_18 = arith.constant 0 : index
    %20 = vector.load %arg12[%c0_16, %c0_17, %c0_18] : memref<10x10x8xf32, #tpu.memory_space<vmem>>, vector<10x1x8xf32>
    %21 = vector.shape_cast %20 : vector<10x1x8xf32> to vector<10x8xf32>
    %22 = vector.shape_cast %19 : vector<10x8xf32> to vector<10x1x8xf32>
    tpu.vector_store %arg12[%c0_16, %c0_17, %c0_18], %22 {strides = array<i32>} : memref<10x10x8xf32, #tpu.memory_space<vmem>>, vector<10x1x8xf32>,
    %cst_19 = arith.constant 0.000000e+00 : f32
    %23 = vector.broadcast %cst_19 : f32 to vector<10x8xf32>
    %c0_20 = arith.constant 0 : index
    %c9_21 = arith.constant 9 : index
    %c0_22 = arith.constant 0 : index
    %24 = vector.load %arg12[%c0_20, %c9_21, %c0_22] : memref<10x10x8xf32, #tpu.memory_space<vmem>>, vector<10x1x8xf32>
    %25 = vector.shape_cast %24 : vector<10x1x8xf32> to vector<10x8xf32>
    %26 = vector.shape_cast %23 : vector<10x8xf32> to vector<10x1x8xf32>
    tpu.vector_store %arg12[%c0_20, %c9_21, %c0_22], %26 {strides = array<i32>} : memref<10x10x8xf32, #tpu.memory_space<vmem>>, vector<10x1x8xf32>,
    %27 = vector.shape_cast %10 : vector<64x8xf32> to vector<8x8x8xf32>
    %c1 = arith.constant 1 : index
    %c1_23 = arith.constant 1 : index
    %c0_24 = arith.constant 0 : index
    %28 = vector.load %arg12[%c1, %c1_23, %c0_24] : memref<10x10x8xf32, #tpu.memory_space<vmem>>, vector<8x8x8xf32>
    tpu.vector_store %arg12[%c1, %c1_23, %c0_24], %27 {strides = array<i32>} : memref<10x10x8xf32, #tpu.memory_space<vmem>>, vector<8x8x8xf32>,
    %c0_25 = arith.constant 0 : index
    %c0_26 = arith.constant 0 : index
    %c0_27 = arith.constant 0 : index
    %29 = vector.load %arg12[%c0_25, %c0_26, %c0_27] : memref<10x10x8xf32, #tpu.memory_space<vmem>>, vector<10x10x8xf32>
    %30 = arith.truncf %29 : vector<10x10x8xf32> to vector<10x10x8xbf16>
    %cst_28 = arith.constant 0.000000e+00 : f32
    %31 = vector.broadcast %cst_28 : f32 to vector<64x8xf32>
    %32 = vector.extract_strided_slice %30 {offsets = [0, 0, 0], sizes = [8, 8, 8], strides = [1, 1, 1]} : vector<10x10x8xbf16> to vector<8x8x8xbf16>
    %33 = vector.shape_cast %32 : vector<8x8x8xbf16> to vector<64x8xbf16>
    %c0_29 = arith.constant 0 : index
    %c0_30 = arith.constant 0 : index
    %c0_31 = arith.constant 0 : index
    %34 = vector.load %arg4[%c0_29, %c0_30, %c0_31] : memref<9x8x8xbf16, #tpu.memory_space<vmem>>, vector<1x8x8xbf16>
    %35 = vector.shape_cast %34 : vector<1x8x8xbf16> to vector<8x8xbf16>
    %cst_32 = arith.constant dense<0.000000e+00> : vector<64x8xf32>
    %36 = tpu.matmul %33, %35, %cst_32 {dimension_numbers = #tpu.dot_dimension_numbers<[1], [0], [0], [1], [0, 0, 1, 1], [], []>} : vector<64x8xbf16>, vector<8x8xbf16>, vector<64x8xf32> -> vector<64x8xf32>
    %37 = arith.addf %31, %36 : vector<64x8xf32>
    %38 = vector.extract_strided_slice %30 {offsets = [0, 1, 0], sizes = [8, 8, 8], strides = [1, 1, 1]} : vector<10x10x8xbf16> to vector<8x8x8xbf16>
    %39 = vector.shape_cast %38 : vector<8x8x8xbf16> to vector<64x8xbf16>
    %c1_33 = arith.constant 1 : index
    %c0_34 = arith.constant 0 : index
    %c0_35 = arith.constant 0 : index
    %40 = vector.load %arg4[%c1_33, %c0_34, %c0_35] : memref<9x8x8xbf16, #tpu.memory_space<vmem>>, vector<1x8x8xbf16>
    %41 = vector.shape_cast %40 : vector<1x8x8xbf16> to vector<8x8xbf16>
    %cst_36 = arith.constant dense<0.000000e+00> : vector<64x8xf32>
    %42 = tpu.matmul %39, %41, %cst_36 {dimension_numbers = #tpu.dot_dimension_numbers<[1], [0], [0], [1], [0, 0, 1, 1], [], []>} : vector<64x8xbf16>, vector<8x8xbf16>, vector<64x8xf32> -> vector<64x8xf32>
    %43 = arith.addf %37, %42 : vector<64x8xf32>
    %44 = vector.extract_strided_slice %30 {offsets = [0, 2, 0], sizes = [8, 8, 8], strides = [1, 1, 1]} : vector<10x10x8xbf16> to vector<8x8x8xbf16>
    %45 = vector.shape_cast %44 : vector<8x8x8xbf16> to vector<64x8xbf16>
    %c2 = arith.constant 2 : index
    %c0_37 = arith.constant 0 : index
    %c0_38 = arith.constant 0 : index
    %46 = vector.load %arg4[%c2, %c0_37, %c0_38] : memref<9x8x8xbf16, #tpu.memory_space<vmem>>, vector<1x8x8xbf16>
    %47 = vector.shape_cast %46 : vector<1x8x8xbf16> to vector<8x8xbf16>
    %cst_39 = arith.constant dense<0.000000e+00> : vector<64x8xf32>
    %48 = tpu.matmul %45, %47, %cst_39 {dimension_numbers = #tpu.dot_dimension_numbers<[1], [0], [0], [1], [0, 0, 1, 1], [], []>} : vector<64x8xbf16>, vector<8x8xbf16>, vector<64x8xf32> -> vector<64x8xf32>
    %49 = arith.addf %43, %48 : vector<64x8xf32>
    %50 = vector.extract_strided_slice %30 {offsets = [1, 0, 0], sizes = [8, 8, 8], strides = [1, 1, 1]} : vector<10x10x8xbf16> to vector<8x8x8xbf16>
    %51 = vector.shape_cast %50 : vector<8x8x8xbf16> to vector<64x8xbf16>
    %c3 = arith.constant 3 : index
    %c0_40 = arith.constant 0 : index
    %c0_41 = arith.constant 0 : index
    %52 = vector.load %arg4[%c3, %c0_40, %c0_41] : memref<9x8x8xbf16, #tpu.memory_space<vmem>>, vector<1x8x8xbf16>
    %53 = vector.shape_cast %52 : vector<1x8x8xbf16> to vector<8x8xbf16>
    %cst_42 = arith.constant dense<0.000000e+00> : vector<64x8xf32>
    %54 = tpu.matmul %51, %53, %cst_42 {dimension_numbers = #tpu.dot_dimension_numbers<[1], [0], [0], [1], [0, 0, 1, 1], [], []>} : vector<64x8xbf16>, vector<8x8xbf16>, vector<64x8xf32> -> vector<64x8xf32>
    %55 = arith.addf %49, %54 : vector<64x8xf32>
    %56 = vector.extract_strided_slice %30 {offsets = [1, 1, 0], sizes = [8, 8, 8], strides = [1, 1, 1]} : vector<10x10x8xbf16> to vector<8x8x8xbf16>
    %57 = vector.shape_cast %56 : vector<8x8x8xbf16> to vector<64x8xbf16>
    %c4 = arith.constant 4 : index
    %c0_43 = arith.constant 0 : index
    %c0_44 = arith.constant 0 : index
    %58 = vector.load %arg4[%c4, %c0_43, %c0_44] : memref<9x8x8xbf16, #tpu.memory_space<vmem>>, vector<1x8x8xbf16>
    %59 = vector.shape_cast %58 : vector<1x8x8xbf16> to vector<8x8xbf16>
    %cst_45 = arith.constant dense<0.000000e+00> : vector<64x8xf32>
    %60 = tpu.matmul %57, %59, %cst_45 {dimension_numbers = #tpu.dot_dimension_numbers<[1], [0], [0], [1], [0, 0, 1, 1], [], []>} : vector<64x8xbf16>, vector<8x8xbf16>, vector<64x8xf32> -> vector<64x8xf32>
    %61 = arith.addf %55, %60 : vector<64x8xf32>
    %62 = vector.extract_strided_slice %30 {offsets = [1, 2, 0], sizes = [8, 8, 8], strides = [1, 1, 1]} : vector<10x10x8xbf16> to vector<8x8x8xbf16>
    %63 = vector.shape_cast %62 : vector<8x8x8xbf16> to vector<64x8xbf16>
    %c5 = arith.constant 5 : index
    %c0_46 = arith.constant 0 : index
    %c0_47 = arith.constant 0 : index
    %64 = vector.load %arg4[%c5, %c0_46, %c0_47] : memref<9x8x8xbf16, #tpu.memory_space<vmem>>, vector<1x8x8xbf16>
    %65 = vector.shape_cast %64 : vector<1x8x8xbf16> to vector<8x8xbf16>
    %cst_48 = arith.constant dense<0.000000e+00> : vector<64x8xf32>
    %66 = tpu.matmul %63, %65, %cst_48 {dimension_numbers = #tpu.dot_dimension_numbers<[1], [0], [0], [1], [0, 0, 1, 1], [], []>} : vector<64x8xbf16>, vector<8x8xbf16>, vector<64x8xf32> -> vector<64x8xf32>
    %67 = arith.addf %61, %66 : vector<64x8xf32>
    %68 = vector.extract_strided_slice %30 {offsets = [2, 0, 0], sizes = [8, 8, 8], strides = [1, 1, 1]} : vector<10x10x8xbf16> to vector<8x8x8xbf16>
    %69 = vector.shape_cast %68 : vector<8x8x8xbf16> to vector<64x8xbf16>
    %c6 = arith.constant 6 : index
    %c0_49 = arith.constant 0 : index
    %c0_50 = arith.constant 0 : index
    %70 = vector.load %arg4[%c6, %c0_49, %c0_50] : memref<9x8x8xbf16, #tpu.memory_space<vmem>>, vector<1x8x8xbf16>
    %71 = vector.shape_cast %70 : vector<1x8x8xbf16> to vector<8x8xbf16>
    %cst_51 = arith.constant dense<0.000000e+00> : vector<64x8xf32>
    %72 = tpu.matmul %69, %71, %cst_51 {dimension_numbers = #tpu.dot_dimension_numbers<[1], [0], [0], [1], [0, 0, 1, 1], [], []>} : vector<64x8xbf16>, vector<8x8xbf16>, vector<64x8xf32> -> vector<64x8xf32>
    %73 = arith.addf %67, %72 : vector<64x8xf32>
    %74 = vector.extract_strided_slice %30 {offsets = [2, 1, 0], sizes = [8, 8, 8], strides = [1, 1, 1]} : vector<10x10x8xbf16> to vector<8x8x8xbf16>
    %75 = vector.shape_cast %74 : vector<8x8x8xbf16> to vector<64x8xbf16>
    %c7 = arith.constant 7 : index
    %c0_52 = arith.constant 0 : index
    %c0_53 = arith.constant 0 : index
    %76 = vector.load %arg4[%c7, %c0_52, %c0_53] : memref<9x8x8xbf16, #tpu.memory_space<vmem>>, vector<1x8x8xbf16>
    %77 = vector.shape_cast %76 : vector<1x8x8xbf16> to vector<8x8xbf16>
    %cst_54 = arith.constant dense<0.000000e+00> : vector<64x8xf32>
    %78 = tpu.matmul %75, %77, %cst_54 {dimension_numbers = #tpu.dot_dimension_numbers<[1], [0], [0], [1], [0, 0, 1, 1], [], []>} : vector<64x8xbf16>, vector<8x8xbf16>, vector<64x8xf32> -> vector<64x8xf32>
    %79 = arith.addf %73, %78 : vector<64x8xf32>
    %80 = vector.extract_strided_slice %30 {offsets = [2, 2, 0], sizes = [8, 8, 8], strides = [1, 1, 1]} : vector<10x10x8xbf16> to vector<8x8x8xbf16>
    %81 = vector.shape_cast %80 : vector<8x8x8xbf16> to vector<64x8xbf16>
    %c8 = arith.constant 8 : index
    %c0_55 = arith.constant 0 : index
    %c0_56 = arith.constant 0 : index
    %82 = vector.load %arg4[%c8, %c0_55, %c0_56] : memref<9x8x8xbf16, #tpu.memory_space<vmem>>, vector<1x8x8xbf16>
    %83 = vector.shape_cast %82 : vector<1x8x8xbf16> to vector<8x8xbf16>
    %cst_57 = arith.constant dense<0.000000e+00> : vector<64x8xf32>
    %84 = tpu.matmul %81, %83, %cst_57 {dimension_numbers = #tpu.dot_dimension_numbers<[1], [0], [0], [1], [0, 0, 1, 1], [], []>} : vector<64x8xbf16>, vector<8x8xbf16>, vector<64x8xf32> -> vector<64x8xf32>
    %85 = arith.addf %79, %84 : vector<64x8xf32>
    %c0_58 = arith.constant 0 : index
    %c0_59 = arith.constant 0 : index
    %86 = vector.load %arg5[%c0_58, %c0_59] : memref<1x8xf32, #tpu.memory_space<vmem>>, vector<1x8xf32>
    %87 = vector.broadcast %86 : vector<1x8xf32> to vector<64x8xf32>
    %88 = arith.addf %85, %87 : vector<64x8xf32>
    %cst_60 = arith.constant 0.000000e+00 : f32
    %89 = vector.broadcast %cst_60 : f32 to vector<64x8xf32>
    %90 = arith.maximumf %88, %89 : vector<64x8xf32>
    %91 = arith.truncf %90 : vector<64x8xf32> to vector<64x8xbf16>
    %c0_61 = arith.constant 0 : index
    %c0_62 = arith.constant 0 : index
    %92 = vector.load %arg6[%c0_61, %c0_62] : memref<8x32xbf16, #tpu.memory_space<vmem>>, vector<8x32xbf16>
    %cst_63 = arith.constant dense<0.000000e+00> : vector<64x32xf32>
    %93 = tpu.matmul %91, %92, %cst_63 {dimension_numbers = #tpu.dot_dimension_numbers<[1], [0], [0], [1], [0, 0, 1, 1], [], []>} : vector<64x8xbf16>, vector<8x32xbf16>, vector<64x32xf32> -> vector<64x32xf32>
    %c0_64 = arith.constant 0 : index
    %c0_65 = arith.constant 0 : index
    %94 = vector.load %arg7[%c0_64, %c0_65] : memref<1x32xf32, #tpu.memory_space<vmem>>, vector<1x32xf32>
    %95 = vector.broadcast %94 : vector<1x32xf32> to vector<64x32xf32>
    %96 = arith.addf %93, %95 : vector<64x32xf32>
    %cst_66 = arith.constant dense<0.000000e+00> : vector<32xf32>
    %97 = vector.multi_reduction <add>, %96, %cst_66 [0] : vector<64x32xf32> to vector<32xf32>
    %98 = vector.shape_cast %97 : vector<32xf32> to vector<1x32xf32>
    %cst_67 = arith.constant 6.400000e+01 : f32
    %99 = vector.broadcast %cst_67 : f32 to vector<1x32xf32>
    %100 = arith.divf %98, %99 : vector<1x32xf32>
    %cst_68 = arith.constant dense<0xFF800000> : vector<32xf32>
    %101 = vector.multi_reduction <maximumf>, %96, %cst_68 [0] : vector<64x32xf32> to vector<32xf32>
    %102 = vector.shape_cast %101 : vector<32xf32> to vector<1x32xf32>
    %103 = tpu.concatenate %100, %102 in 0 : vector<1x32xf32>, vector<1x32xf32> -> vector<2x32xf32>
    %104 = arith.truncf %103 : vector<2x32xf32> to vector<2x32xbf16>
    %c0_69 = arith.constant 0 : index
    %c0_70 = arith.constant 0 : index
    %105 = vector.load %arg8[%c0_69, %c0_70] : memref<32x2xbf16, #tpu.memory_space<vmem>>, vector<32x2xbf16>
    %cst_71 = arith.constant dense<0.000000e+00> : vector<2x2xf32>
    %106 = tpu.matmul %104, %105, %cst_71 {dimension_numbers = #tpu.dot_dimension_numbers<[1], [0], [0], [1], [0, 0, 1, 1], [], []>} : vector<2x32xbf16>, vector<32x2xbf16>, vector<2x2xf32> -> vector<2x2xf32>
    %cst_72 = arith.constant 0.000000e+00 : f32
    %107 = vector.broadcast %cst_72 : f32 to vector<2x2xf32>
    %108 = arith.maximumf %106, %107 : vector<2x2xf32>
    %109 = arith.truncf %108 : vector<2x2xf32> to vector<2x2xbf16>
    %c0_73 = arith.constant 0 : index
    %c0_74 = arith.constant 0 : index
    %110 = vector.load %arg9[%c0_73, %c0_74] : memref<2x32xbf16, #tpu.memory_space<vmem>>, vector<2x32xbf16>
    %cst_75 = arith.constant dense<0.000000e+00> : vector<2x32xf32>
    %111 = tpu.matmul %109, %110, %cst_75 {dimension_numbers = #tpu.dot_dimension_numbers<[1], [0], [0], [1], [0, 0, 1, 1], [], []>} : vector<2x2xbf16>, vector<2x32xbf16>, vector<2x32xf32> -> vector<2x32xf32>
    %112 = vector.extract_strided_slice %111 {offsets = [0, 0], sizes = [1, 32], strides = [1, 1]} : vector<2x32xf32> to vector<1x32xf32>
    %113 = vector.extract_strided_slice %111 {offsets = [1, 0], sizes = [1, 32], strides = [1, 1]} : vector<2x32xf32> to vector<1x32xf32>
    %114 = arith.addf %112, %113 : vector<1x32xf32>
    %115 = arith.negf %114 : vector<1x32xf32>
    %116 = math.exp %115 : vector<1x32xf32>
    %cst_76 = arith.constant 1.000000e+00 : f32
    %117 = vector.broadcast %cst_76 : f32 to vector<1x32xf32>
    %118 = arith.addf %117, %116 : vector<1x32xf32>
    %119 = arith.divf %117, %118 : vector<1x32xf32>
    %120 = vector.broadcast %119 : vector<1x32xf32> to vector<64x32xf32>
    %121 = arith.mulf %96, %120 : vector<64x32xf32>
    %122 = vector.shape_cast %121 : vector<64x32xf32> to vector<8x8x32xf32>
    %cst_77 = arith.constant dense<0.000000e+00> : vector<8x8xf32>
    %123 = vector.multi_reduction <add>, %122, %cst_77 [2] : vector<8x8x32xf32> to vector<8x8xf32>
    %cst_78 = arith.constant 3.200000e+01 : f32
    %124 = vector.broadcast %cst_78 : f32 to vector<8x8xf32>
    %125 = arith.divf %123, %124 : vector<8x8xf32>
    %cst_79 = arith.constant dense<0xFF800000> : vector<8x8xf32>
    %126 = vector.multi_reduction <maximumf>, %122, %cst_79 [2] : vector<8x8x32xf32> to vector<8x8xf32>
    %cst_80 = arith.constant 0.000000e+00 : f32
    %127 = vector.broadcast %cst_80 : f32 to vector<3x14xf32>
    %cst_81 = arith.constant 0.000000e+00 : f32
    %128 = vector.broadcast %cst_81 : f32 to vector<14x3xf32>
    %c0_82 = arith.constant 0 : index
    %c0_83 = arith.constant 0 : index
    %129 = vector.load %arg13[%c0_82, %c0_83] : memref<14x14xf32, #tpu.memory_space<vmem>>, vector<3x14xf32>
    tpu.vector_store %arg13[%c0_82, %c0_83], %127 {strides = array<i32>} : memref<14x14xf32, #tpu.memory_space<vmem>>, vector<3x14xf32>,
    %c11 = arith.constant 11 : index
    %c0_84 = arith.constant 0 : index
    %130 = vector.load %arg13[%c11, %c0_84] : memref<14x14xf32, #tpu.memory_space<vmem>>, vector<3x14xf32>
    tpu.vector_store %arg13[%c11, %c0_84], %127 {strides = array<i32>} : memref<14x14xf32, #tpu.memory_space<vmem>>, vector<3x14xf32>,
    %c0_85 = arith.constant 0 : index
    %c0_86 = arith.constant 0 : index
    %131 = vector.load %arg13[%c0_85, %c0_86] : memref<14x14xf32, #tpu.memory_space<vmem>>, vector<14x3xf32>
    tpu.vector_store %arg13[%c0_85, %c0_86], %128 {strides = array<i32>} : memref<14x14xf32, #tpu.memory_space<vmem>>, vector<14x3xf32>,
    %c0_87 = arith.constant 0 : index
    %c11_88 = arith.constant 11 : index
    %132 = vector.load %arg13[%c0_87, %c11_88] : memref<14x14xf32, #tpu.memory_space<vmem>>, vector<14x3xf32>
    tpu.vector_store %arg13[%c0_87, %c11_88], %128 {strides = array<i32>} : memref<14x14xf32, #tpu.memory_space<vmem>>, vector<14x3xf32>,
    %c0_89 = arith.constant 0 : index
    %c0_90 = arith.constant 0 : index
    %133 = vector.load %arg14[%c0_89, %c0_90] : memref<14x14xf32, #tpu.memory_space<vmem>>, vector<3x14xf32>
    tpu.vector_store %arg14[%c0_89, %c0_90], %127 {strides = array<i32>} : memref<14x14xf32, #tpu.memory_space<vmem>>, vector<3x14xf32>,
    %c11_91 = arith.constant 11 : index
    %c0_92 = arith.constant 0 : index
    %134 = vector.load %arg14[%c11_91, %c0_92] : memref<14x14xf32, #tpu.memory_space<vmem>>, vector<3x14xf32>
    tpu.vector_store %arg14[%c11_91, %c0_92], %127 {strides = array<i32>} : memref<14x14xf32, #tpu.memory_space<vmem>>, vector<3x14xf32>,
    %c0_93 = arith.constant 0 : index
    %c0_94 = arith.constant 0 : index
    %135 = vector.load %arg14[%c0_93, %c0_94] : memref<14x14xf32, #tpu.memory_space<vmem>>, vector<14x3xf32>
    tpu.vector_store %arg14[%c0_93, %c0_94], %128 {strides = array<i32>} : memref<14x14xf32, #tpu.memory_space<vmem>>, vector<14x3xf32>,
    %c0_95 = arith.constant 0 : index
    %c11_96 = arith.constant 11 : index
    %136 = vector.load %arg14[%c0_95, %c11_96] : memref<14x14xf32, #tpu.memory_space<vmem>>, vector<14x3xf32>
    tpu.vector_store %arg14[%c0_95, %c11_96], %128 {strides = array<i32>} : memref<14x14xf32, #tpu.memory_space<vmem>>, vector<14x3xf32>,
    %c3_97 = arith.constant 3 : index
    %c3_98 = arith.constant 3 : index
    %137 = vector.load %arg13[%c3_97, %c3_98] : memref<14x14xf32, #tpu.memory_space<vmem>>, vector<8x8xf32>
    tpu.vector_store %arg13[%c3_97, %c3_98], %125 {strides = array<i32>} : memref<14x14xf32, #tpu.memory_space<vmem>>, vector<8x8xf32>,
    %c3_99 = arith.constant 3 : index
    %c3_100 = arith.constant 3 : index
    %138 = vector.load %arg14[%c3_99, %c3_100] : memref<14x14xf32, #tpu.memory_space<vmem>>, vector<8x8xf32>
    tpu.vector_store %arg14[%c3_99, %c3_100], %126 {strides = array<i32>} : memref<14x14xf32, #tpu.memory_space<vmem>>, vector<8x8xf32>,
    %c0_101 = arith.constant 0 : index
    %c0_102 = arith.constant 0 : index
    %139 = vector.load %arg13[%c0_101, %c0_102] : memref<14x14xf32, #tpu.memory_space<vmem>>, vector<14x14xf32>
    %c0_103 = arith.constant 0 : index
    %c0_104 = arith.constant 0 : index
    %140 = vector.load %arg14[%c0_103, %c0_104] : memref<14x14xf32, #tpu.memory_space<vmem>>, vector<14x14xf32>
    %cst_105 = arith.constant 0.000000e+00 : f32
    %141 = vector.broadcast %cst_105 : f32 to vector<8x8xf32>
    %142 = vector.extract_strided_slice %139 {offsets = [0, 0], sizes = [8, 14], strides = [1, 1]} : vector<14x14xf32> to vector<8x14xf32>
    %143 = vector.extract_strided_slice %140 {offsets = [0, 0], sizes = [8, 14], strides = [1, 1]} : vector<14x14xf32> to vector<8x14xf32>
    %c0_106 = arith.constant 0 : index
    %144 = memref.load %arg10[%c0_106] : memref<98xf32, #tpu.memory_space<smem>>
    %145 = vector.extract_strided_slice %142 {offsets = [0, 0], sizes = [8, 8], strides = [1, 1]} : vector<8x14xf32> to vector<8x8xf32>
    %146 = vector.broadcast %144 : f32 to vector<8x8xf32>
    %147 = arith.mulf %146, %145 : vector<8x8xf32>
    %148 = arith.addf %141, %147 : vector<8x8xf32>
    %c49 = arith.constant 49 : index
    %149 = memref.load %arg10[%c49] : memref<98xf32, #tpu.memory_space<smem>>
    %150 = vector.extract_strided_slice %143 {offsets = [0, 0], sizes = [8, 8], strides = [1, 1]} : vector<8x14xf32> to vector<8x8xf32>
    %151 = vector.broadcast %149 : f32 to vector<8x8xf32>
    %152 = arith.mulf %151, %150 : vector<8x8xf32>
    %153 = arith.addf %148, %152 : vector<8x8xf32>
    %c1_107 = arith.constant 1 : index
    %154 = memref.load %arg10[%c1_107] : memref<98xf32, #tpu.memory_space<smem>>
    %155 = vector.extract_strided_slice %142 {offsets = [0, 1], sizes = [8, 8], strides = [1, 1]} : vector<8x14xf32> to vector<8x8xf32>
    %156 = vector.broadcast %154 : f32 to vector<8x8xf32>
    %157 = arith.mulf %156, %155 : vector<8x8xf32>
    %158 = arith.addf %153, %157 : vector<8x8xf32>
    %c50 = arith.constant 50 : index
    %159 = memref.load %arg10[%c50] : memref<98xf32, #tpu.memory_space<smem>>
    %160 = vector.extract_strided_slice %143 {offsets = [0, 1], sizes = [8, 8], strides = [1, 1]} : vector<8x14xf32> to vector<8x8xf32>
    %161 = vector.broadcast %159 : f32 to vector<8x8xf32>
    %162 = arith.mulf %161, %160 : vector<8x8xf32>
    %163 = arith.addf %158, %162 : vector<8x8xf32>
    %c2_108 = arith.constant 2 : index
    %164 = memref.load %arg10[%c2_108] : memref<98xf32, #tpu.memory_space<smem>>
    %165 = vector.extract_strided_slice %142 {offsets = [0, 2], sizes = [8, 8], strides = [1, 1]} : vector<8x14xf32> to vector<8x8xf32>
    %166 = vector.broadcast %164 : f32 to vector<8x8xf32>
    %167 = arith.mulf %166, %165 : vector<8x8xf32>
    %168 = arith.addf %163, %167 : vector<8x8xf32>
    %c51 = arith.constant 51 : index
    %169 = memref.load %arg10[%c51] : memref<98xf32, #tpu.memory_space<smem>>
    %170 = vector.extract_strided_slice %143 {offsets = [0, 2], sizes = [8, 8], strides = [1, 1]} : vector<8x14xf32> to vector<8x8xf32>
    %171 = vector.broadcast %169 : f32 to vector<8x8xf32>
    %172 = arith.mulf %171, %170 : vector<8x8xf32>
    %173 = arith.addf %168, %172 : vector<8x8xf32>
    %c3_109 = arith.constant 3 : index
    %174 = memref.load %arg10[%c3_109] : memref<98xf32, #tpu.memory_space<smem>>
    %175 = vector.extract_strided_slice %142 {offsets = [0, 3], sizes = [8, 8], strides = [1, 1]} : vector<8x14xf32> to vector<8x8xf32>
    %176 = vector.broadcast %174 : f32 to vector<8x8xf32>
    %177 = arith.mulf %176, %175 : vector<8x8xf32>
    %178 = arith.addf %173, %177 : vector<8x8xf32>
    %c52 = arith.constant 52 : index
    %179 = memref.load %arg10[%c52] : memref<98xf32, #tpu.memory_space<smem>>
    %180 = vector.extract_strided_slice %143 {offsets = [0, 3], sizes = [8, 8], strides = [1, 1]} : vector<8x14xf32> to vector<8x8xf32>
    %181 = vector.broadcast %179 : f32 to vector<8x8xf32>
    %182 = arith.mulf %181, %180 : vector<8x8xf32>
    %183 = arith.addf %178, %182 : vector<8x8xf32>
    %c4_110 = arith.constant 4 : index
    %184 = memref.load %arg10[%c4_110] : memref<98xf32, #tpu.memory_space<smem>>
    %185 = vector.extract_strided_slice %142 {offsets = [0, 4], sizes = [8, 8], strides = [1, 1]} : vector<8x14xf32> to vector<8x8xf32>
    %186 = vector.broadcast %184 : f32 to vector<8x8xf32>
    %187 = arith.mulf %186, %185 : vector<8x8xf32>
    %188 = arith.addf %183, %187 : vector<8x8xf32>
    %c53 = arith.constant 53 : index
    %189 = memref.load %arg10[%c53] : memref<98xf32, #tpu.memory_space<smem>>
    %190 = vector.extract_strided_slice %143 {offsets = [0, 4], sizes = [8, 8], strides = [1, 1]} : vector<8x14xf32> to vector<8x8xf32>
    %191 = vector.broadcast %189 : f32 to vector<8x8xf32>
    %192 = arith.mulf %191, %190 : vector<8x8xf32>
    %193 = arith.addf %188, %192 : vector<8x8xf32>
    %c5_111 = arith.constant 5 : index
    %194 = memref.load %arg10[%c5_111] : memref<98xf32, #tpu.memory_space<smem>>
    %195 = vector.extract_strided_slice %142 {offsets = [0, 5], sizes = [8, 8], strides = [1, 1]} : vector<8x14xf32> to vector<8x8xf32>
    %196 = vector.broadcast %194 : f32 to vector<8x8xf32>
    %197 = arith.mulf %196, %195 : vector<8x8xf32>
    %198 = arith.addf %193, %197 : vector<8x8xf32>
    %c54 = arith.constant 54 : index
    %199 = memref.load %arg10[%c54] : memref<98xf32, #tpu.memory_space<smem>>
    %200 = vector.extract_strided_slice %143 {offsets = [0, 5], sizes = [8, 8], strides = [1, 1]} : vector<8x14xf32> to vector<8x8xf32>
    %201 = vector.broadcast %199 : f32 to vector<8x8xf32>
    %202 = arith.mulf %201, %200 : vector<8x8xf32>
    %203 = arith.addf %198, %202 : vector<8x8xf32>
    %c6_112 = arith.constant 6 : index
    %204 = memref.load %arg10[%c6_112] : memref<98xf32, #tpu.memory_space<smem>>
    %205 = vector.extract_strided_slice %142 {offsets = [0, 6], sizes = [8, 8], strides = [1, 1]} : vector<8x14xf32> to vector<8x8xf32>
    %206 = vector.broadcast %204 : f32 to vector<8x8xf32>
    %207 = arith.mulf %206, %205 : vector<8x8xf32>
    %208 = arith.addf %203, %207 : vector<8x8xf32>
    %c55 = arith.constant 55 : index
    %209 = memref.load %arg10[%c55] : memref<98xf32, #tpu.memory_space<smem>>
    %210 = vector.extract_strided_slice %143 {offsets = [0, 6], sizes = [8, 8], strides = [1, 1]} : vector<8x14xf32> to vector<8x8xf32>
    %211 = vector.broadcast %209 : f32 to vector<8x8xf32>
    %212 = arith.mulf %211, %210 : vector<8x8xf32>
    %213 = arith.addf %208, %212 : vector<8x8xf32>
    %214 = vector.extract_strided_slice %139 {offsets = [1, 0], sizes = [8, 14], strides = [1, 1]} : vector<14x14xf32> to vector<8x14xf32>
    %215 = vector.extract_strided_slice %140 {offsets = [1, 0], sizes = [8, 14], strides = [1, 1]} : vector<14x14xf32> to vector<8x14xf32>
    %c7_113 = arith.constant 7 : index
    %216 = memref.load %arg10[%c7_113] : memref<98xf32, #tpu.memory_space<smem>>
    %217 = vector.extract_strided_slice %214 {offsets = [0, 0], sizes = [8, 8], strides = [1, 1]} : vector<8x14xf32> to vector<8x8xf32>
    %218 = vector.broadcast %216 : f32 to vector<8x8xf32>
    %219 = arith.mulf %218, %217 : vector<8x8xf32>
    %220 = arith.addf %213, %219 : vector<8x8xf32>
    %c56 = arith.constant 56 : index
    %221 = memref.load %arg10[%c56] : memref<98xf32, #tpu.memory_space<smem>>
    %222 = vector.extract_strided_slice %215 {offsets = [0, 0], sizes = [8, 8], strides = [1, 1]} : vector<8x14xf32> to vector<8x8xf32>
    %223 = vector.broadcast %221 : f32 to vector<8x8xf32>
    %224 = arith.mulf %223, %222 : vector<8x8xf32>
    %225 = arith.addf %220, %224 : vector<8x8xf32>
    %c8_114 = arith.constant 8 : index
    %226 = memref.load %arg10[%c8_114] : memref<98xf32, #tpu.memory_space<smem>>
    %227 = vector.extract_strided_slice %214 {offsets = [0, 1], sizes = [8, 8], strides = [1, 1]} : vector<8x14xf32> to vector<8x8xf32>
    %228 = vector.broadcast %226 : f32 to vector<8x8xf32>
    %229 = arith.mulf %228, %227 : vector<8x8xf32>
    %230 = arith.addf %225, %229 : vector<8x8xf32>
    %c57 = arith.constant 57 : index
    %231 = memref.load %arg10[%c57] : memref<98xf32, #tpu.memory_space<smem>>
    %232 = vector.extract_strided_slice %215 {offsets = [0, 1], sizes = [8, 8], strides = [1, 1]} : vector<8x14xf32> to vector<8x8xf32>
    %233 = vector.broadcast %231 : f32 to vector<8x8xf32>
    %234 = arith.mulf %233, %232 : vector<8x8xf32>
    %235 = arith.addf %230, %234 : vector<8x8xf32>
    %c9_115 = arith.constant 9 : index
    %236 = memref.load %arg10[%c9_115] : memref<98xf32, #tpu.memory_space<smem>>
    %237 = vector.extract_strided_slice %214 {offsets = [0, 2], sizes = [8, 8], strides = [1, 1]} : vector<8x14xf32> to vector<8x8xf32>
    %238 = vector.broadcast %236 : f32 to vector<8x8xf32>
    %239 = arith.mulf %238, %237 : vector<8x8xf32>
    %240 = arith.addf %235, %239 : vector<8x8xf32>
    %c58 = arith.constant 58 : index
    %241 = memref.load %arg10[%c58] : memref<98xf32, #tpu.memory_space<smem>>
    %242 = vector.extract_strided_slice %215 {offsets = [0, 2], sizes = [8, 8], strides = [1, 1]} : vector<8x14xf32> to vector<8x8xf32>
    %243 = vector.broadcast %241 : f32 to vector<8x8xf32>
    %244 = arith.mulf %243, %242 : vector<8x8xf32>
    %245 = arith.addf %240, %244 : vector<8x8xf32>
    %c10 = arith.constant 10 : index
    %246 = memref.load %arg10[%c10] : memref<98xf32, #tpu.memory_space<smem>>
    %247 = vector.extract_strided_slice %214 {offsets = [0, 3], sizes = [8, 8], strides = [1, 1]} : vector<8x14xf32> to vector<8x8xf32>
    %248 = vector.broadcast %246 : f32 to vector<8x8xf32>
    %249 = arith.mulf %248, %247 : vector<8x8xf32>
    %250 = arith.addf %245, %249 : vector<8x8xf32>
    %c59 = arith.constant 59 : index
    %251 = memref.load %arg10[%c59] : memref<98xf32, #tpu.memory_space<smem>>
    %252 = vector.extract_strided_slice %215 {offsets = [0, 3], sizes = [8, 8], strides = [1, 1]} : vector<8x14xf32> to vector<8x8xf32>
    %253 = vector.broadcast %251 : f32 to vector<8x8xf32>
    %254 = arith.mulf %253, %252 : vector<8x8xf32>
    %255 = arith.addf %250, %254 : vector<8x8xf32>
    %c11_116 = arith.constant 11 : index
    %256 = memref.load %arg10[%c11_116] : memref<98xf32, #tpu.memory_space<smem>>
    %257 = vector.extract_strided_slice %214 {offsets = [0, 4], sizes = [8, 8], strides = [1, 1]} : vector<8x14xf32> to vector<8x8xf32>
    %258 = vector.broadcast %256 : f32 to vector<8x8xf32>
    %259 = arith.mulf %258, %257 : vector<8x8xf32>
    %260 = arith.addf %255, %259 : vector<8x8xf32>
    %c60 = arith.constant 60 : index
    %261 = memref.load %arg10[%c60] : memref<98xf32, #tpu.memory_space<smem>>
    %262 = vector.extract_strided_slice %215 {offsets = [0, 4], sizes = [8, 8], strides = [1, 1]} : vector<8x14xf32> to vector<8x8xf32>
    %263 = vector.broadcast %261 : f32 to vector<8x8xf32>
    %264 = arith.mulf %263, %262 : vector<8x8xf32>
    %265 = arith.addf %260, %264 : vector<8x8xf32>
    %c12 = arith.constant 12 : index
    %266 = memref.load %arg10[%c12] : memref<98xf32, #tpu.memory_space<smem>>
    %267 = vector.extract_strided_slice %214 {offsets = [0, 5], sizes = [8, 8], strides = [1, 1]} : vector<8x14xf32> to vector<8x8xf32>
    %268 = vector.broadcast %266 : f32 to vector<8x8xf32>
    %269 = arith.mulf %268, %267 : vector<8x8xf32>
    %270 = arith.addf %265, %269 : vector<8x8xf32>
    %c61 = arith.constant 61 : index
    %271 = memref.load %arg10[%c61] : memref<98xf32, #tpu.memory_space<smem>>
    %272 = vector.extract_strided_slice %215 {offsets = [0, 5], sizes = [8, 8], strides = [1, 1]} : vector<8x14xf32> to vector<8x8xf32>
    %273 = vector.broadcast %271 : f32 to vector<8x8xf32>
    %274 = arith.mulf %273, %272 : vector<8x8xf32>
    %275 = arith.addf %270, %274 : vector<8x8xf32>
    %c13 = arith.constant 13 : index
    %276 = memref.load %arg10[%c13] : memref<98xf32, #tpu.memory_space<smem>>
    %277 = vector.extract_strided_slice %214 {offsets = [0, 6], sizes = [8, 8], strides = [1, 1]} : vector<8x14xf32> to vector<8x8xf32>
    %278 = vector.broadcast %276 : f32 to vector<8x8xf32>
    %279 = arith.mulf %278, %277 : vector<8x8xf32>
    %280 = arith.addf %275, %279 : vector<8x8xf32>
    %c62 = arith.constant 62 : index
    %281 = memref.load %arg10[%c62] : memref<98xf32, #tpu.memory_space<smem>>
    %282 = vector.extract_strided_slice %215 {offsets = [0, 6], sizes = [8, 8], strides = [1, 1]} : vector<8x14xf32> to vector<8x8xf32>
    %283 = vector.broadcast %281 : f32 to vector<8x8xf32>
    %284 = arith.mulf %283, %282 : vector<8x8xf32>
    %285 = arith.addf %280, %284 : vector<8x8xf32>
    %286 = vector.extract_strided_slice %139 {offsets = [2, 0], sizes = [8, 14], strides = [1, 1]} : vector<14x14xf32> to vector<8x14xf32>
    %287 = vector.extract_strided_slice %140 {offsets = [2, 0], sizes = [8, 14], strides = [1, 1]} : vector<14x14xf32> to vector<8x14xf32>
    %c14 = arith.constant 14 : index
    %288 = memref.load %arg10[%c14] : memref<98xf32, #tpu.memory_space<smem>>
    %289 = vector.extract_strided_slice %286 {offsets = [0, 0], sizes = [8, 8], strides = [1, 1]} : vector<8x14xf32> to vector<8x8xf32>
    %290 = vector.broadcast %288 : f32 to vector<8x8xf32>
    %291 = arith.mulf %290, %289 : vector<8x8xf32>
    %292 = arith.addf %285, %291 : vector<8x8xf32>
    %c63 = arith.constant 63 : index
    %293 = memref.load %arg10[%c63] : memref<98xf32, #tpu.memory_space<smem>>
    %294 = vector.extract_strided_slice %287 {offsets = [0, 0], sizes = [8, 8], strides = [1, 1]} : vector<8x14xf32> to vector<8x8xf32>
    %295 = vector.broadcast %293 : f32 to vector<8x8xf32>
    %296 = arith.mulf %295, %294 : vector<8x8xf32>
    %297 = arith.addf %292, %296 : vector<8x8xf32>
    %c15 = arith.constant 15 : index
    %298 = memref.load %arg10[%c15] : memref<98xf32, #tpu.memory_space<smem>>
    %299 = vector.extract_strided_slice %286 {offsets = [0, 1], sizes = [8, 8], strides = [1, 1]} : vector<8x14xf32> to vector<8x8xf32>
    %300 = vector.broadcast %298 : f32 to vector<8x8xf32>
    %301 = arith.mulf %300, %299 : vector<8x8xf32>
    %302 = arith.addf %297, %301 : vector<8x8xf32>
    %c64 = arith.constant 64 : index
    %303 = memref.load %arg10[%c64] : memref<98xf32, #tpu.memory_space<smem>>
    %304 = vector.extract_strided_slice %287 {offsets = [0, 1], sizes = [8, 8], strides = [1, 1]} : vector<8x14xf32> to vector<8x8xf32>
    %305 = vector.broadcast %303 : f32 to vector<8x8xf32>
    %306 = arith.mulf %305, %304 : vector<8x8xf32>
    %307 = arith.addf %302, %306 : vector<8x8xf32>
    %c16 = arith.constant 16 : index
    %308 = memref.load %arg10[%c16] : memref<98xf32, #tpu.memory_space<smem>>
    %309 = vector.extract_strided_slice %286 {offsets = [0, 2], sizes = [8, 8], strides = [1, 1]} : vector<8x14xf32> to vector<8x8xf32>
    %310 = vector.broadcast %308 : f32 to vector<8x8xf32>
    %311 = arith.mulf %310, %309 : vector<8x8xf32>
    %312 = arith.addf %307, %311 : vector<8x8xf32>
    %c65 = arith.constant 65 : index
    %313 = memref.load %arg10[%c65] : memref<98xf32, #tpu.memory_space<smem>>
    %314 = vector.extract_strided_slice %287 {offsets = [0, 2], sizes = [8, 8], strides = [1, 1]} : vector<8x14xf32> to vector<8x8xf32>
    %315 = vector.broadcast %313 : f32 to vector<8x8xf32>
    %316 = arith.mulf %315, %314 : vector<8x8xf32>
    %317 = arith.addf %312, %316 : vector<8x8xf32>
    %c17 = arith.constant 17 : index
    %318 = memref.load %arg10[%c17] : memref<98xf32, #tpu.memory_space<smem>>
    %319 = vector.extract_strided_slice %286 {offsets = [0, 3], sizes = [8, 8], strides = [1, 1]} : vector<8x14xf32> to vector<8x8xf32>
    %320 = vector.broadcast %318 : f32 to vector<8x8xf32>
    %321 = arith.mulf %320, %319 : vector<8x8xf32>
    %322 = arith.addf %317, %321 : vector<8x8xf32>
    %c66 = arith.constant 66 : index
    %323 = memref.load %arg10[%c66] : memref<98xf32, #tpu.memory_space<smem>>
    %324 = vector.extract_strided_slice %287 {offsets = [0, 3], sizes = [8, 8], strides = [1, 1]} : vector<8x14xf32> to vector<8x8xf32>
    %325 = vector.broadcast %323 : f32 to vector<8x8xf32>
    %326 = arith.mulf %325, %324 : vector<8x8xf32>
    %327 = arith.addf %322, %326 : vector<8x8xf32>
    %c18 = arith.constant 18 : index
    %328 = memref.load %arg10[%c18] : memref<98xf32, #tpu.memory_space<smem>>
    %329 = vector.extract_strided_slice %286 {offsets = [0, 4], sizes = [8, 8], strides = [1, 1]} : vector<8x14xf32> to vector<8x8xf32>
    %330 = vector.broadcast %328 : f32 to vector<8x8xf32>
    %331 = arith.mulf %330, %329 : vector<8x8xf32>
    %332 = arith.addf %327, %331 : vector<8x8xf32>
    %c67 = arith.constant 67 : index
    %333 = memref.load %arg10[%c67] : memref<98xf32, #tpu.memory_space<smem>>
    %334 = vector.extract_strided_slice %287 {offsets = [0, 4], sizes = [8, 8], strides = [1, 1]} : vector<8x14xf32> to vector<8x8xf32>
    %335 = vector.broadcast %333 : f32 to vector<8x8xf32>
    %336 = arith.mulf %335, %334 : vector<8x8xf32>
    %337 = arith.addf %332, %336 : vector<8x8xf32>
    %c19 = arith.constant 19 : index
    %338 = memref.load %arg10[%c19] : memref<98xf32, #tpu.memory_space<smem>>
    %339 = vector.extract_strided_slice %286 {offsets = [0, 5], sizes = [8, 8], strides = [1, 1]} : vector<8x14xf32> to vector<8x8xf32>
    %340 = vector.broadcast %338 : f32 to vector<8x8xf32>
    %341 = arith.mulf %340, %339 : vector<8x8xf32>
    %342 = arith.addf %337, %341 : vector<8x8xf32>
    %c68 = arith.constant 68 : index
    %343 = memref.load %arg10[%c68] : memref<98xf32, #tpu.memory_space<smem>>
    %344 = vector.extract_strided_slice %287 {offsets = [0, 5], sizes = [8, 8], strides = [1, 1]} : vector<8x14xf32> to vector<8x8xf32>
    %345 = vector.broadcast %343 : f32 to vector<8x8xf32>
    %346 = arith.mulf %345, %344 : vector<8x8xf32>
    %347 = arith.addf %342, %346 : vector<8x8xf32>
    %c20 = arith.constant 20 : index
    %348 = memref.load %arg10[%c20] : memref<98xf32, #tpu.memory_space<smem>>
    %349 = vector.extract_strided_slice %286 {offsets = [0, 6], sizes = [8, 8], strides = [1, 1]} : vector<8x14xf32> to vector<8x8xf32>
    %350 = vector.broadcast %348 : f32 to vector<8x8xf32>
    %351 = arith.mulf %350, %349 : vector<8x8xf32>
    %352 = arith.addf %347, %351 : vector<8x8xf32>
    %c69 = arith.constant 69 : index
    %353 = memref.load %arg10[%c69] : memref<98xf32, #tpu.memory_space<smem>>
    %354 = vector.extract_strided_slice %287 {offsets = [0, 6], sizes = [8, 8], strides = [1, 1]} : vector<8x14xf32> to vector<8x8xf32>
    %355 = vector.broadcast %353 : f32 to vector<8x8xf32>
    %356 = arith.mulf %355, %354 : vector<8x8xf32>
    %357 = arith.addf %352, %356 : vector<8x8xf32>
    %358 = vector.extract_strided_slice %139 {offsets = [3, 0], sizes = [8, 14], strides = [1, 1]} : vector<14x14xf32> to vector<8x14xf32>
    %359 = vector.extract_strided_slice %140 {offsets = [3, 0], sizes = [8, 14], strides = [1, 1]} : vector<14x14xf32> to vector<8x14xf32>
    %c21 = arith.constant 21 : index
    %360 = memref.load %arg10[%c21] : memref<98xf32, #tpu.memory_space<smem>>
    %361 = vector.extract_strided_slice %358 {offsets = [0, 0], sizes = [8, 8], strides = [1, 1]} : vector<8x14xf32> to vector<8x8xf32>
    %362 = vector.broadcast %360 : f32 to vector<8x8xf32>
    %363 = arith.mulf %362, %361 : vector<8x8xf32>
    %364 = arith.addf %357, %363 : vector<8x8xf32>
    %c70 = arith.constant 70 : index
    %365 = memref.load %arg10[%c70] : memref<98xf32, #tpu.memory_space<smem>>
    %366 = vector.extract_strided_slice %359 {offsets = [0, 0], sizes = [8, 8], strides = [1, 1]} : vector<8x14xf32> to vector<8x8xf32>
    %367 = vector.broadcast %365 : f32 to vector<8x8xf32>
    %368 = arith.mulf %367, %366 : vector<8x8xf32>
    %369 = arith.addf %364, %368 : vector<8x8xf32>
    %c22 = arith.constant 22 : index
    %370 = memref.load %arg10[%c22] : memref<98xf32, #tpu.memory_space<smem>>
    %371 = vector.extract_strided_slice %358 {offsets = [0, 1], sizes = [8, 8], strides = [1, 1]} : vector<8x14xf32> to vector<8x8xf32>
    %372 = vector.broadcast %370 : f32 to vector<8x8xf32>
    %373 = arith.mulf %372, %371 : vector<8x8xf32>
    %374 = arith.addf %369, %373 : vector<8x8xf32>
    %c71 = arith.constant 71 : index
    %375 = memref.load %arg10[%c71] : memref<98xf32, #tpu.memory_space<smem>>
    %376 = vector.extract_strided_slice %359 {offsets = [0, 1], sizes = [8, 8], strides = [1, 1]} : vector<8x14xf32> to vector<8x8xf32>
    %377 = vector.broadcast %375 : f32 to vector<8x8xf32>
    %378 = arith.mulf %377, %376 : vector<8x8xf32>
    %379 = arith.addf %374, %378 : vector<8x8xf32>
    %c23 = arith.constant 23 : index
    %380 = memref.load %arg10[%c23] : memref<98xf32, #tpu.memory_space<smem>>
    %381 = vector.extract_strided_slice %358 {offsets = [0, 2], sizes = [8, 8], strides = [1, 1]} : vector<8x14xf32> to vector<8x8xf32>
    %382 = vector.broadcast %380 : f32 to vector<8x8xf32>
    %383 = arith.mulf %382, %381 : vector<8x8xf32>
    %384 = arith.addf %379, %383 : vector<8x8xf32>
    %c72 = arith.constant 72 : index
    %385 = memref.load %arg10[%c72] : memref<98xf32, #tpu.memory_space<smem>>
    %386 = vector.extract_strided_slice %359 {offsets = [0, 2], sizes = [8, 8], strides = [1, 1]} : vector<8x14xf32> to vector<8x8xf32>
    %387 = vector.broadcast %385 : f32 to vector<8x8xf32>
    %388 = arith.mulf %387, %386 : vector<8x8xf32>
    %389 = arith.addf %384, %388 : vector<8x8xf32>
    %c24 = arith.constant 24 : index
    %390 = memref.load %arg10[%c24] : memref<98xf32, #tpu.memory_space<smem>>
    %391 = vector.extract_strided_slice %358 {offsets = [0, 3], sizes = [8, 8], strides = [1, 1]} : vector<8x14xf32> to vector<8x8xf32>
    %392 = vector.broadcast %390 : f32 to vector<8x8xf32>
    %393 = arith.mulf %392, %391 : vector<8x8xf32>
    %394 = arith.addf %389, %393 : vector<8x8xf32>
    %c73 = arith.constant 73 : index
    %395 = memref.load %arg10[%c73] : memref<98xf32, #tpu.memory_space<smem>>
    %396 = vector.extract_strided_slice %359 {offsets = [0, 3], sizes = [8, 8], strides = [1, 1]} : vector<8x14xf32> to vector<8x8xf32>
    %397 = vector.broadcast %395 : f32 to vector<8x8xf32>
    %398 = arith.mulf %397, %396 : vector<8x8xf32>
    %399 = arith.addf %394, %398 : vector<8x8xf32>
    %c25 = arith.constant 25 : index
    %400 = memref.load %arg10[%c25] : memref<98xf32, #tpu.memory_space<smem>>
    %401 = vector.extract_strided_slice %358 {offsets = [0, 4], sizes = [8, 8], strides = [1, 1]} : vector<8x14xf32> to vector<8x8xf32>
    %402 = vector.broadcast %400 : f32 to vector<8x8xf32>
    %403 = arith.mulf %402, %401 : vector<8x8xf32>
    %404 = arith.addf %399, %403 : vector<8x8xf32>
    %c74 = arith.constant 74 : index
    %405 = memref.load %arg10[%c74] : memref<98xf32, #tpu.memory_space<smem>>
    %406 = vector.extract_strided_slice %359 {offsets = [0, 4], sizes = [8, 8], strides = [1, 1]} : vector<8x14xf32> to vector<8x8xf32>
    %407 = vector.broadcast %405 : f32 to vector<8x8xf32>
    %408 = arith.mulf %407, %406 : vector<8x8xf32>
    %409 = arith.addf %404, %408 : vector<8x8xf32>
    %c26 = arith.constant 26 : index
    %410 = memref.load %arg10[%c26] : memref<98xf32, #tpu.memory_space<smem>>
    %411 = vector.extract_strided_slice %358 {offsets = [0, 5], sizes = [8, 8], strides = [1, 1]} : vector<8x14xf32> to vector<8x8xf32>
    %412 = vector.broadcast %410 : f32 to vector<8x8xf32>
    %413 = arith.mulf %412, %411 : vector<8x8xf32>
    %414 = arith.addf %409, %413 : vector<8x8xf32>
    %c75 = arith.constant 75 : index
    %415 = memref.load %arg10[%c75] : memref<98xf32, #tpu.memory_space<smem>>
    %416 = vector.extract_strided_slice %359 {offsets = [0, 5], sizes = [8, 8], strides = [1, 1]} : vector<8x14xf32> to vector<8x8xf32>
    %417 = vector.broadcast %415 : f32 to vector<8x8xf32>
    %418 = arith.mulf %417, %416 : vector<8x8xf32>
    %419 = arith.addf %414, %418 : vector<8x8xf32>
    %c27 = arith.constant 27 : index
    %420 = memref.load %arg10[%c27] : memref<98xf32, #tpu.memory_space<smem>>
    %421 = vector.extract_strided_slice %358 {offsets = [0, 6], sizes = [8, 8], strides = [1, 1]} : vector<8x14xf32> to vector<8x8xf32>
    %422 = vector.broadcast %420 : f32 to vector<8x8xf32>
    %423 = arith.mulf %422, %421 : vector<8x8xf32>
    %424 = arith.addf %419, %423 : vector<8x8xf32>
    %c76 = arith.constant 76 : index
    %425 = memref.load %arg10[%c76] : memref<98xf32, #tpu.memory_space<smem>>
    %426 = vector.extract_strided_slice %359 {offsets = [0, 6], sizes = [8, 8], strides = [1, 1]} : vector<8x14xf32> to vector<8x8xf32>
    %427 = vector.broadcast %425 : f32 to vector<8x8xf32>
    %428 = arith.mulf %427, %426 : vector<8x8xf32>
    %429 = arith.addf %424, %428 : vector<8x8xf32>
    %430 = vector.extract_strided_slice %139 {offsets = [4, 0], sizes = [8, 14], strides = [1, 1]} : vector<14x14xf32> to vector<8x14xf32>
    %431 = vector.extract_strided_slice %140 {offsets = [4, 0], sizes = [8, 14], strides = [1, 1]} : vector<14x14xf32> to vector<8x14xf32>
    %c28 = arith.constant 28 : index
    %432 = memref.load %arg10[%c28] : memref<98xf32, #tpu.memory_space<smem>>
    %433 = vector.extract_strided_slice %430 {offsets = [0, 0], sizes = [8, 8], strides = [1, 1]} : vector<8x14xf32> to vector<8x8xf32>
    %434 = vector.broadcast %432 : f32 to vector<8x8xf32>
    %435 = arith.mulf %434, %433 : vector<8x8xf32>
    %436 = arith.addf %429, %435 : vector<8x8xf32>
    %c77 = arith.constant 77 : index
    %437 = memref.load %arg10[%c77] : memref<98xf32, #tpu.memory_space<smem>>
    %438 = vector.extract_strided_slice %431 {offsets = [0, 0], sizes = [8, 8], strides = [1, 1]} : vector<8x14xf32> to vector<8x8xf32>
    %439 = vector.broadcast %437 : f32 to vector<8x8xf32>
    %440 = arith.mulf %439, %438 : vector<8x8xf32>
    %441 = arith.addf %436, %440 : vector<8x8xf32>
    %c29 = arith.constant 29 : index
    %442 = memref.load %arg10[%c29] : memref<98xf32, #tpu.memory_space<smem>>
    %443 = vector.extract_strided_slice %430 {offsets = [0, 1], sizes = [8, 8], strides = [1, 1]} : vector<8x14xf32> to vector<8x8xf32>
    %444 = vector.broadcast %442 : f32 to vector<8x8xf32>
    %445 = arith.mulf %444, %443 : vector<8x8xf32>
    %446 = arith.addf %441, %445 : vector<8x8xf32>
    %c78 = arith.constant 78 : index
    %447 = memref.load %arg10[%c78] : memref<98xf32, #tpu.memory_space<smem>>
    %448 = vector.extract_strided_slice %431 {offsets = [0, 1], sizes = [8, 8], strides = [1, 1]} : vector<8x14xf32> to vector<8x8xf32>
    %449 = vector.broadcast %447 : f32 to vector<8x8xf32>
    %450 = arith.mulf %449, %448 : vector<8x8xf32>
    %451 = arith.addf %446, %450 : vector<8x8xf32>
    %c30 = arith.constant 30 : index
    %452 = memref.load %arg10[%c30] : memref<98xf32, #tpu.memory_space<smem>>
    %453 = vector.extract_strided_slice %430 {offsets = [0, 2], sizes = [8, 8], strides = [1, 1]} : vector<8x14xf32> to vector<8x8xf32>
    %454 = vector.broadcast %452 : f32 to vector<8x8xf32>
    %455 = arith.mulf %454, %453 : vector<8x8xf32>
    %456 = arith.addf %451, %455 : vector<8x8xf32>
    %c79 = arith.constant 79 : index
    %457 = memref.load %arg10[%c79] : memref<98xf32, #tpu.memory_space<smem>>
    %458 = vector.extract_strided_slice %431 {offsets = [0, 2], sizes = [8, 8], strides = [1, 1]} : vector<8x14xf32> to vector<8x8xf32>
    %459 = vector.broadcast %457 : f32 to vector<8x8xf32>
    %460 = arith.mulf %459, %458 : vector<8x8xf32>
    %461 = arith.addf %456, %460 : vector<8x8xf32>
    %c31 = arith.constant 31 : index
    %462 = memref.load %arg10[%c31] : memref<98xf32, #tpu.memory_space<smem>>
    %463 = vector.extract_strided_slice %430 {offsets = [0, 3], sizes = [8, 8], strides = [1, 1]} : vector<8x14xf32> to vector<8x8xf32>
    %464 = vector.broadcast %462 : f32 to vector<8x8xf32>
    %465 = arith.mulf %464, %463 : vector<8x8xf32>
    %466 = arith.addf %461, %465 : vector<8x8xf32>
    %c80 = arith.constant 80 : index
    %467 = memref.load %arg10[%c80] : memref<98xf32, #tpu.memory_space<smem>>
    %468 = vector.extract_strided_slice %431 {offsets = [0, 3], sizes = [8, 8], strides = [1, 1]} : vector<8x14xf32> to vector<8x8xf32>
    %469 = vector.broadcast %467 : f32 to vector<8x8xf32>
    %470 = arith.mulf %469, %468 : vector<8x8xf32>
    %471 = arith.addf %466, %470 : vector<8x8xf32>
    %c32 = arith.constant 32 : index
    %472 = memref.load %arg10[%c32] : memref<98xf32, #tpu.memory_space<smem>>
    %473 = vector.extract_strided_slice %430 {offsets = [0, 4], sizes = [8, 8], strides = [1, 1]} : vector<8x14xf32> to vector<8x8xf32>
    %474 = vector.broadcast %472 : f32 to vector<8x8xf32>
    %475 = arith.mulf %474, %473 : vector<8x8xf32>
    %476 = arith.addf %471, %475 : vector<8x8xf32>
    %c81 = arith.constant 81 : index
    %477 = memref.load %arg10[%c81] : memref<98xf32, #tpu.memory_space<smem>>
    %478 = vector.extract_strided_slice %431 {offsets = [0, 4], sizes = [8, 8], strides = [1, 1]} : vector<8x14xf32> to vector<8x8xf32>
    %479 = vector.broadcast %477 : f32 to vector<8x8xf32>
    %480 = arith.mulf %479, %478 : vector<8x8xf32>
    %481 = arith.addf %476, %480 : vector<8x8xf32>
    %c33 = arith.constant 33 : index
    %482 = memref.load %arg10[%c33] : memref<98xf32, #tpu.memory_space<smem>>
    %483 = vector.extract_strided_slice %430 {offsets = [0, 5], sizes = [8, 8], strides = [1, 1]} : vector<8x14xf32> to vector<8x8xf32>
    %484 = vector.broadcast %482 : f32 to vector<8x8xf32>
    %485 = arith.mulf %484, %483 : vector<8x8xf32>
    %486 = arith.addf %481, %485 : vector<8x8xf32>
    %c82 = arith.constant 82 : index
    %487 = memref.load %arg10[%c82] : memref<98xf32, #tpu.memory_space<smem>>
    %488 = vector.extract_strided_slice %431 {offsets = [0, 5], sizes = [8, 8], strides = [1, 1]} : vector<8x14xf32> to vector<8x8xf32>
    %489 = vector.broadcast %487 : f32 to vector<8x8xf32>
    %490 = arith.mulf %489, %488 : vector<8x8xf32>
    %491 = arith.addf %486, %490 : vector<8x8xf32>
    %c34 = arith.constant 34 : index
    %492 = memref.load %arg10[%c34] : memref<98xf32, #tpu.memory_space<smem>>
    %493 = vector.extract_strided_slice %430 {offsets = [0, 6], sizes = [8, 8], strides = [1, 1]} : vector<8x14xf32> to vector<8x8xf32>
    %494 = vector.broadcast %492 : f32 to vector<8x8xf32>
    %495 = arith.mulf %494, %493 : vector<8x8xf32>
    %496 = arith.addf %491, %495 : vector<8x8xf32>
    %c83 = arith.constant 83 : index
    %497 = memref.load %arg10[%c83] : memref<98xf32, #tpu.memory_space<smem>>
    %498 = vector.extract_strided_slice %431 {offsets = [0, 6], sizes = [8, 8], strides = [1, 1]} : vector<8x14xf32> to vector<8x8xf32>
    %499 = vector.broadcast %497 : f32 to vector<8x8xf32>
    %500 = arith.mulf %499, %498 : vector<8x8xf32>
    %501 = arith.addf %496, %500 : vector<8x8xf32>
    %502 = vector.extract_strided_slice %139 {offsets = [5, 0], sizes = [8, 14], strides = [1, 1]} : vector<14x14xf32> to vector<8x14xf32>
    %503 = vector.extract_strided_slice %140 {offsets = [5, 0], sizes = [8, 14], strides = [1, 1]} : vector<14x14xf32> to vector<8x14xf32>
    %c35 = arith.constant 35 : index
    %504 = memref.load %arg10[%c35] : memref<98xf32, #tpu.memory_space<smem>>
    %505 = vector.extract_strided_slice %502 {offsets = [0, 0], sizes = [8, 8], strides = [1, 1]} : vector<8x14xf32> to vector<8x8xf32>
    %506 = vector.broadcast %504 : f32 to vector<8x8xf32>
    %507 = arith.mulf %506, %505 : vector<8x8xf32>
    %508 = arith.addf %501, %507 : vector<8x8xf32>
    %c84 = arith.constant 84 : index
    %509 = memref.load %arg10[%c84] : memref<98xf32, #tpu.memory_space<smem>>
    %510 = vector.extract_strided_slice %503 {offsets = [0, 0], sizes = [8, 8], strides = [1, 1]} : vector<8x14xf32> to vector<8x8xf32>
    %511 = vector.broadcast %509 : f32 to vector<8x8xf32>
    %512 = arith.mulf %511, %510 : vector<8x8xf32>
    %513 = arith.addf %508, %512 : vector<8x8xf32>
    %c36 = arith.constant 36 : index
    %514 = memref.load %arg10[%c36] : memref<98xf32, #tpu.memory_space<smem>>
    %515 = vector.extract_strided_slice %502 {offsets = [0, 1], sizes = [8, 8], strides = [1, 1]} : vector<8x14xf32> to vector<8x8xf32>
    %516 = vector.broadcast %514 : f32 to vector<8x8xf32>
    %517 = arith.mulf %516, %515 : vector<8x8xf32>
    %518 = arith.addf %513, %517 : vector<8x8xf32>
    %c85 = arith.constant 85 : index
    %519 = memref.load %arg10[%c85] : memref<98xf32, #tpu.memory_space<smem>>
    %520 = vector.extract_strided_slice %503 {offsets = [0, 1], sizes = [8, 8], strides = [1, 1]} : vector<8x14xf32> to vector<8x8xf32>
    %521 = vector.broadcast %519 : f32 to vector<8x8xf32>
    %522 = arith.mulf %521, %520 : vector<8x8xf32>
    %523 = arith.addf %518, %522 : vector<8x8xf32>
    %c37 = arith.constant 37 : index
    %524 = memref.load %arg10[%c37] : memref<98xf32, #tpu.memory_space<smem>>
    %525 = vector.extract_strided_slice %502 {offsets = [0, 2], sizes = [8, 8], strides = [1, 1]} : vector<8x14xf32> to vector<8x8xf32>
    %526 = vector.broadcast %524 : f32 to vector<8x8xf32>
    %527 = arith.mulf %526, %525 : vector<8x8xf32>
    %528 = arith.addf %523, %527 : vector<8x8xf32>
    %c86 = arith.constant 86 : index
    %529 = memref.load %arg10[%c86] : memref<98xf32, #tpu.memory_space<smem>>
    %530 = vector.extract_strided_slice %503 {offsets = [0, 2], sizes = [8, 8], strides = [1, 1]} : vector<8x14xf32> to vector<8x8xf32>
    %531 = vector.broadcast %529 : f32 to vector<8x8xf32>
    %532 = arith.mulf %531, %530 : vector<8x8xf32>
    %533 = arith.addf %528, %532 : vector<8x8xf32>
    %c38 = arith.constant 38 : index
    %534 = memref.load %arg10[%c38] : memref<98xf32, #tpu.memory_space<smem>>
    %535 = vector.extract_strided_slice %502 {offsets = [0, 3], sizes = [8, 8], strides = [1, 1]} : vector<8x14xf32> to vector<8x8xf32>
    %536 = vector.broadcast %534 : f32 to vector<8x8xf32>
    %537 = arith.mulf %536, %535 : vector<8x8xf32>
    %538 = arith.addf %533, %537 : vector<8x8xf32>
    %c87 = arith.constant 87 : index
    %539 = memref.load %arg10[%c87] : memref<98xf32, #tpu.memory_space<smem>>
    %540 = vector.extract_strided_slice %503 {offsets = [0, 3], sizes = [8, 8], strides = [1, 1]} : vector<8x14xf32> to vector<8x8xf32>
    %541 = vector.broadcast %539 : f32 to vector<8x8xf32>
    %542 = arith.mulf %541, %540 : vector<8x8xf32>
    %543 = arith.addf %538, %542 : vector<8x8xf32>
    %c39 = arith.constant 39 : index
    %544 = memref.load %arg10[%c39] : memref<98xf32, #tpu.memory_space<smem>>
    %545 = vector.extract_strided_slice %502 {offsets = [0, 4], sizes = [8, 8], strides = [1, 1]} : vector<8x14xf32> to vector<8x8xf32>
    %546 = vector.broadcast %544 : f32 to vector<8x8xf32>
    %547 = arith.mulf %546, %545 : vector<8x8xf32>
    %548 = arith.addf %543, %547 : vector<8x8xf32>
    %c88 = arith.constant 88 : index
    %549 = memref.load %arg10[%c88] : memref<98xf32, #tpu.memory_space<smem>>
    %550 = vector.extract_strided_slice %503 {offsets = [0, 4], sizes = [8, 8], strides = [1, 1]} : vector<8x14xf32> to vector<8x8xf32>
    %551 = vector.broadcast %549 : f32 to vector<8x8xf32>
    %552 = arith.mulf %551, %550 : vector<8x8xf32>
    %553 = arith.addf %548, %552 : vector<8x8xf32>
    %c40 = arith.constant 40 : index
    %554 = memref.load %arg10[%c40] : memref<98xf32, #tpu.memory_space<smem>>
    %555 = vector.extract_strided_slice %502 {offsets = [0, 5], sizes = [8, 8], strides = [1, 1]} : vector<8x14xf32> to vector<8x8xf32>
    %556 = vector.broadcast %554 : f32 to vector<8x8xf32>
    %557 = arith.mulf %556, %555 : vector<8x8xf32>
    %558 = arith.addf %553, %557 : vector<8x8xf32>
    %c89 = arith.constant 89 : index
    %559 = memref.load %arg10[%c89] : memref<98xf32, #tpu.memory_space<smem>>
    %560 = vector.extract_strided_slice %503 {offsets = [0, 5], sizes = [8, 8], strides = [1, 1]} : vector<8x14xf32> to vector<8x8xf32>
    %561 = vector.broadcast %559 : f32 to vector<8x8xf32>
    %562 = arith.mulf %561, %560 : vector<8x8xf32>
    %563 = arith.addf %558, %562 : vector<8x8xf32>
    %c41 = arith.constant 41 : index
    %564 = memref.load %arg10[%c41] : memref<98xf32, #tpu.memory_space<smem>>
    %565 = vector.extract_strided_slice %502 {offsets = [0, 6], sizes = [8, 8], strides = [1, 1]} : vector<8x14xf32> to vector<8x8xf32>
    %566 = vector.broadcast %564 : f32 to vector<8x8xf32>
    %567 = arith.mulf %566, %565 : vector<8x8xf32>
    %568 = arith.addf %563, %567 : vector<8x8xf32>
    %c90 = arith.constant 90 : index
    %569 = memref.load %arg10[%c90] : memref<98xf32, #tpu.memory_space<smem>>
    %570 = vector.extract_strided_slice %503 {offsets = [0, 6], sizes = [8, 8], strides = [1, 1]} : vector<8x14xf32> to vector<8x8xf32>
    %571 = vector.broadcast %569 : f32 to vector<8x8xf32>
    %572 = arith.mulf %571, %570 : vector<8x8xf32>
    %573 = arith.addf %568, %572 : vector<8x8xf32>
    %574 = vector.extract_strided_slice %139 {offsets = [6, 0], sizes = [8, 14], strides = [1, 1]} : vector<14x14xf32> to vector<8x14xf32>
    %575 = vector.extract_strided_slice %140 {offsets = [6, 0], sizes = [8, 14], strides = [1, 1]} : vector<14x14xf32> to vector<8x14xf32>
    %c42 = arith.constant 42 : index
    %576 = memref.load %arg10[%c42] : memref<98xf32, #tpu.memory_space<smem>>
    %577 = vector.extract_strided_slice %574 {offsets = [0, 0], sizes = [8, 8], strides = [1, 1]} : vector<8x14xf32> to vector<8x8xf32>
    %578 = vector.broadcast %576 : f32 to vector<8x8xf32>
    %579 = arith.mulf %578, %577 : vector<8x8xf32>
    %580 = arith.addf %573, %579 : vector<8x8xf32>
    %c91 = arith.constant 91 : index
    %581 = memref.load %arg10[%c91] : memref<98xf32, #tpu.memory_space<smem>>
    %582 = vector.extract_strided_slice %575 {offsets = [0, 0], sizes = [8, 8], strides = [1, 1]} : vector<8x14xf32> to vector<8x8xf32>
    %583 = vector.broadcast %581 : f32 to vector<8x8xf32>
    %584 = arith.mulf %583, %582 : vector<8x8xf32>
    %585 = arith.addf %580, %584 : vector<8x8xf32>
    %c43 = arith.constant 43 : index
    %586 = memref.load %arg10[%c43] : memref<98xf32, #tpu.memory_space<smem>>
    %587 = vector.extract_strided_slice %574 {offsets = [0, 1], sizes = [8, 8], strides = [1, 1]} : vector<8x14xf32> to vector<8x8xf32>
    %588 = vector.broadcast %586 : f32 to vector<8x8xf32>
    %589 = arith.mulf %588, %587 : vector<8x8xf32>
    %590 = arith.addf %585, %589 : vector<8x8xf32>
    %c92 = arith.constant 92 : index
    %591 = memref.load %arg10[%c92] : memref<98xf32, #tpu.memory_space<smem>>
    %592 = vector.extract_strided_slice %575 {offsets = [0, 1], sizes = [8, 8], strides = [1, 1]} : vector<8x14xf32> to vector<8x8xf32>
    %593 = vector.broadcast %591 : f32 to vector<8x8xf32>
    %594 = arith.mulf %593, %592 : vector<8x8xf32>
    %595 = arith.addf %590, %594 : vector<8x8xf32>
    %c44 = arith.constant 44 : index
    %596 = memref.load %arg10[%c44] : memref<98xf32, #tpu.memory_space<smem>>
    %597 = vector.extract_strided_slice %574 {offsets = [0, 2], sizes = [8, 8], strides = [1, 1]} : vector<8x14xf32> to vector<8x8xf32>
    %598 = vector.broadcast %596 : f32 to vector<8x8xf32>
    %599 = arith.mulf %598, %597 : vector<8x8xf32>
    %600 = arith.addf %595, %599 : vector<8x8xf32>
    %c93 = arith.constant 93 : index
    %601 = memref.load %arg10[%c93] : memref<98xf32, #tpu.memory_space<smem>>
    %602 = vector.extract_strided_slice %575 {offsets = [0, 2], sizes = [8, 8], strides = [1, 1]} : vector<8x14xf32> to vector<8x8xf32>
    %603 = vector.broadcast %601 : f32 to vector<8x8xf32>
    %604 = arith.mulf %603, %602 : vector<8x8xf32>
    %605 = arith.addf %600, %604 : vector<8x8xf32>
    %c45 = arith.constant 45 : index
    %606 = memref.load %arg10[%c45] : memref<98xf32, #tpu.memory_space<smem>>
    %607 = vector.extract_strided_slice %574 {offsets = [0, 3], sizes = [8, 8], strides = [1, 1]} : vector<8x14xf32> to vector<8x8xf32>
    %608 = vector.broadcast %606 : f32 to vector<8x8xf32>
    %609 = arith.mulf %608, %607 : vector<8x8xf32>
    %610 = arith.addf %605, %609 : vector<8x8xf32>
    %c94 = arith.constant 94 : index
    %611 = memref.load %arg10[%c94] : memref<98xf32, #tpu.memory_space<smem>>
    %612 = vector.extract_strided_slice %575 {offsets = [0, 3], sizes = [8, 8], strides = [1, 1]} : vector<8x14xf32> to vector<8x8xf32>
    %613 = vector.broadcast %611 : f32 to vector<8x8xf32>
    %614 = arith.mulf %613, %612 : vector<8x8xf32>
    %615 = arith.addf %610, %614 : vector<8x8xf32>
    %c46 = arith.constant 46 : index
    %616 = memref.load %arg10[%c46] : memref<98xf32, #tpu.memory_space<smem>>
    %617 = vector.extract_strided_slice %574 {offsets = [0, 4], sizes = [8, 8], strides = [1, 1]} : vector<8x14xf32> to vector<8x8xf32>
    %618 = vector.broadcast %616 : f32 to vector<8x8xf32>
    %619 = arith.mulf %618, %617 : vector<8x8xf32>
    %620 = arith.addf %615, %619 : vector<8x8xf32>
    %c95 = arith.constant 95 : index
    %621 = memref.load %arg10[%c95] : memref<98xf32, #tpu.memory_space<smem>>
    %622 = vector.extract_strided_slice %575 {offsets = [0, 4], sizes = [8, 8], strides = [1, 1]} : vector<8x14xf32> to vector<8x8xf32>
    %623 = vector.broadcast %621 : f32 to vector<8x8xf32>
    %624 = arith.mulf %623, %622 : vector<8x8xf32>
    %625 = arith.addf %620, %624 : vector<8x8xf32>
    %c47 = arith.constant 47 : index
    %626 = memref.load %arg10[%c47] : memref<98xf32, #tpu.memory_space<smem>>
    %627 = vector.extract_strided_slice %574 {offsets = [0, 5], sizes = [8, 8], strides = [1, 1]} : vector<8x14xf32> to vector<8x8xf32>
    %628 = vector.broadcast %626 : f32 to vector<8x8xf32>
    %629 = arith.mulf %628, %627 : vector<8x8xf32>
    %630 = arith.addf %625, %629 : vector<8x8xf32>
    %c96 = arith.constant 96 : index
    %631 = memref.load %arg10[%c96] : memref<98xf32, #tpu.memory_space<smem>>
    %632 = vector.extract_strided_slice %575 {offsets = [0, 5], sizes = [8, 8], strides = [1, 1]} : vector<8x14xf32> to vector<8x8xf32>
    %633 = vector.broadcast %631 : f32 to vector<8x8xf32>
    %634 = arith.mulf %633, %632 : vector<8x8xf32>
    %635 = arith.addf %630, %634 : vector<8x8xf32>
    %c48 = arith.constant 48 : index
    %636 = memref.load %arg10[%c48] : memref<98xf32, #tpu.memory_space<smem>>
    %637 = vector.extract_strided_slice %574 {offsets = [0, 6], sizes = [8, 8], strides = [1, 1]} : vector<8x14xf32> to vector<8x8xf32>
    %638 = vector.broadcast %636 : f32 to vector<8x8xf32>
    %639 = arith.mulf %638, %637 : vector<8x8xf32>
    %640 = arith.addf %635, %639 : vector<8x8xf32>
    %c97 = arith.constant 97 : index
    %641 = memref.load %arg10[%c97] : memref<98xf32, #tpu.memory_space<smem>>
    %642 = vector.extract_strided_slice %575 {offsets = [0, 6], sizes = [8, 8], strides = [1, 1]} : vector<8x14xf32> to vector<8x8xf32>
    %643 = vector.broadcast %641 : f32 to vector<8x8xf32>
    %644 = arith.mulf %643, %642 : vector<8x8xf32>
    %645 = arith.addf %640, %644 : vector<8x8xf32>
    %646 = arith.negf %645 : vector<8x8xf32>
    %647 = math.exp %646 : vector<8x8xf32>
    %cst_117 = arith.constant 1.000000e+00 : f32
    %648 = vector.broadcast %cst_117 : f32 to vector<8x8xf32>
    %649 = arith.addf %648, %647 : vector<8x8xf32>
    %650 = arith.divf %648, %649 : vector<8x8xf32>
    %651 = vector.shape_cast %650 : vector<8x8xf32> to vector<8x8x1xf32>
    %652 = vector.broadcast %651 : vector<8x8x1xf32> to vector<8x8x32xf32>
    %653 = arith.mulf %122, %652 : vector<8x8x32xf32>
    %654 = arith.addf %653, %1 : vector<8x8x32xf32>
    %cst_118 = arith.constant 0.000000e+00 : f32
    %655 = vector.broadcast %cst_118 : f32 to vector<8x8x32xf32>
    %656 = arith.maximumf %654, %655 : vector<8x8x32xf32>
    %c0_119 = arith.constant 0 : index
    %c0_120 = arith.constant 0 : index
    %c0_121 = arith.constant 0 : index
    %c0_122 = arith.constant 0 : index
    %657 = vector.load %arg11[%c0_119, %c0_120, %c0_121, %c0_122] : memref<1x8x8x32xf32, #tpu.memory_space<vmem>>, vector<1x8x8x32xf32>
    %658 = vector.shape_cast %657 : vector<1x8x8x32xf32> to vector<8x8x32xf32>
    %659 = vector.shape_cast %656 : vector<8x8x32xf32> to vector<1x8x8x32xf32>
    tpu.vector_store %arg11[%c0_119, %c0_120, %c0_121, %c0_122], %659 {strides = array<i32>} : memref<1x8x8x32xf32, #tpu.memory_space<vmem>>, vector<1x8x8x32xf32>,
    return
  }
  func.func @transform_0(%arg0: i32) -> (i32, i32, i32, i32) {
    %c0_i32 = arith.constant 0 : i32
    %c0_i32_0 = arith.constant 0 : i32
    %c0_i32_1 = arith.constant 0 : i32
    %c0_i32_2 = arith.constant 0 : i32
    return %arg0, %c0_i32, %c0_i32_0, %c0_i32_1 : i32, i32, i32, i32
  }
  func.func @transform_1(%arg0: i32) -> (i32, i32) {
    %c0_i32 = arith.constant 0 : i32
    %c0_i32_0 = arith.constant 0 : i32
    %c0_i32_1 = arith.constant 0 : i32
    return %c0_i32, %c0_i32_0 : i32, i32
  }
  func.func @transform_2(%arg0: i32) -> (i32, i32) {
    %c0_i32 = arith.constant 0 : i32
    %c0_i32_0 = arith.constant 0 : i32
    %c0_i32_1 = arith.constant 0 : i32
    return %c0_i32, %c0_i32_0 : i32, i32
  }
  func.func @transform_3(%arg0: i32) -> (i32, i32, i32) {
    %c0_i32 = arith.constant 0 : i32
    %c0_i32_0 = arith.constant 0 : i32
    %c0_i32_1 = arith.constant 0 : i32
    %c0_i32_2 = arith.constant 0 : i32
    return %c0_i32, %c0_i32_0, %c0_i32_1 : i32, i32, i32
  }
  func.func @transform_4(%arg0: i32) -> (i32, i32) {
    %c0_i32 = arith.constant 0 : i32
    %c0_i32_0 = arith.constant 0 : i32
    %c0_i32_1 = arith.constant 0 : i32
    return %c0_i32, %c0_i32_0 : i32, i32
  }
  func.func @transform_5(%arg0: i32) -> (i32, i32) {
    %c0_i32 = arith.constant 0 : i32
    %c0_i32_0 = arith.constant 0 : i32
    %c0_i32_1 = arith.constant 0 : i32
    return %c0_i32, %c0_i32_0 : i32, i32
  }
  func.func @transform_6(%arg0: i32) -> (i32, i32) {
    %c0_i32 = arith.constant 0 : i32
    %c0_i32_0 = arith.constant 0 : i32
    %c0_i32_1 = arith.constant 0 : i32
    return %c0_i32, %c0_i32_0 : i32, i32
  }
  func.func @transform_7(%arg0: i32) -> (i32, i32) {
    %c0_i32 = arith.constant 0 : i32
    %c0_i32_0 = arith.constant 0 : i32
    %c0_i32_1 = arith.constant 0 : i32
    return %c0_i32, %c0_i32_0 : i32, i32
  }
  func.func @transform_8(%arg0: i32) -> (i32, i32) {
    %c0_i32 = arith.constant 0 : i32
    %c0_i32_0 = arith.constant 0 : i32
    %c0_i32_1 = arith.constant 0 : i32
    return %c0_i32, %c0_i32_0 : i32, i32
  }
  func.func @transform_9(%arg0: i32) -> i32 {
    %c0_i32 = arith.constant 0 : i32
    %c0_i32_0 = arith.constant 0 : i32
    return %c0_i32 : i32
  }
  func.func @transform_10(%arg0: i32) -> (i32, i32, i32, i32) {
    %c0_i32 = arith.constant 0 : i32
    %c0_i32_0 = arith.constant 0 : i32
    %c0_i32_1 = arith.constant 0 : i32
    %c0_i32_2 = arith.constant 0 : i32
    return %arg0, %c0_i32, %c0_i32_0, %c0_i32_1 : i32, i32, i32, i32
  }
}

</mosaic_0001>

<llo_original>
// kernel: bottleneck_forward.1
$region0: #{bottleneck_forward.1}
  #allocation0 [shape = 'u32[]', space=smem, size = 0x4, offset = 0x4, fixed_abs, tag = 'smem constant byte address 0x4 - core index']
  #allocation1 [shape = 'u32[144,128]{1,0:T(1,128)}', space=vmem, size = 0x12000, scoped, tag = 'internal scratch']
  #allocation2 [shape = 'f32[10,10,8]{2,1,0:T(8,128)}', space=vmem, size = 0x14000, scoped, tag = 'scratch operand']
  #allocation3 [shape = 'f32[14,14]{1,0:T(8,128)}', space=vmem, size = 0x2000, scoped, tag = 'scratch operand']
  #allocation4 [shape = 'f32[14,14]{1,0:T(8,128)}', space=vmem, size = 0x2000, scoped, tag = 'scratch operand']
  %s0 = inlined_call_operand.hbm [shape: f32[2,8,8,32], index: 0, kind: input, shape index: {}]
  %s1 = inlined_call_operand.vmem [shape: bf16[32,8], index: 1, kind: input, shape index: {}]
  %s2 = inlined_call_operand.vmem [shape: f32[1,8], index: 2, kind: input, shape index: {}]
  %s3 = inlined_call_operand.vmem [shape: bf16[9,8,8], index: 3, kind: input, shape index: {}]
  %s4 = inlined_call_operand.vmem [shape: f32[1,8], index: 4, kind: input, shape index: {}]
  %s5 = inlined_call_operand.vmem [shape: bf16[8,32], index: 5, kind: input, shape index: {}]
  %s6 = inlined_call_operand.vmem [shape: f32[1,32], index: 6, kind: input, shape index: {}]
  %s7 = inlined_call_operand.vmem [shape: bf16[32,2], index: 7, kind: input, shape index: {}]
  %s8 = inlined_call_operand.vmem [shape: bf16[2,32], index: 8, kind: input, shape index: {}]
  %s9 = inlined_call_operand.vmem [shape: f32[98], index: 9, kind: input, shape index: {}]
  %s10 = inlined_call_operand.hbm [shape: f32[2,8,8,32], index: 10, kind: output, shape index: {}]
  %s11 = sld [smem:[#allocation0]]
  $region81: #{bottleneck_forward.1} parent=0
    _
  %s13 = ssub.s32 1, %s11
  %s14 = scalar_select 0, %s13, %s11
  $region1: #{bottleneck_forward.1} parent=0
    #allocation5 [shape = 'u8[65536]{0}', space=vmem, size = 0x10000, scoped, tag = 'input window, operand 0']
    #allocation6 [shape = 's32[2]{0}', space=sflag, size = 0x8, scoped, tag = 'scoped memory for bottleneck_forward.1']
    #allocation7 [shape = 's32[2]{0}', space=sflag, size = 0x8, scoped, tag = 'scoped memory for bottleneck_forward.1']
    #allocation8 [shape = 's32[2]{0}', space=sflag, size = 0x8, scoped, tag = 'scoped memory for bottleneck_forward.1']
    #allocation9 [shape = 'u8[512]{0}', space=smem, size = 0x200, scoped, tag = 'input window, operand 9, single buffered']
    #allocation10 [shape = 'u8[65536]{0}', space=vmem, size = 0x10000, scoped, tag = 'output window, operand 0']
    %15 = vsyncpa [#allocation6], 0
    %s16 = scalar_lea.sflag [#allocation6], 1
    %17 = vsyncpa %s16, 0
    %18 = vsyncpa [#allocation8], 0
    %19 = vsyncpa [#allocation7], 0
    %s20 = scalar_lea.sflag [#allocation7], 1
    %21 = vsyncpa %s20, 0
    loop: start=0, step=1, limit=4
    $region2: #{bottleneck_forward.1} parent=1 // loop_pre_header
      _
    $region3: #{bottleneck_forward.1} parent=1 // loop_header
      %s23 = sphi 0, %s27
      %p24 = scmp.ge.s32.totalorder %s23, 4
      %s33 = sphi 0, %s35
      %s36 = sphi 0, %s33
      %s37 = sphi 0, %s36
      %s53 = sphi 0, %s37
      %s57 = sphi 0, %s57
      %s59 = sphi 0, %s57
      %s60 = sphi 0, %s59
      %s74 = sphi 0, %s60
      %s78 = sphi 0, %s78
      %s80 = sphi 0, %s78
      %s81 = sphi 0, %s80
      %s95 = sphi 0, %s81
      %s99 = sphi 0, %s99
      %s101 = sphi 0, %s99
      %s102 = sphi 0, %s101
      %s116 = sphi 0, %s102
      %s120 = sphi 0, %s120
      %s122 = sphi 0, %s120
      %s123 = sphi 0, %s122
      %s137 = sphi 0, %s123
      %s141 = sphi 0, %s141
      %s143 = sphi 0, %s141
      %s144 = sphi 0, %s143
      %s158 = sphi 0, %s144
      %s162 = sphi 0, %s162
      %s164 = sphi 0, %s162
      %s165 = sphi 0, %s164
      %s179 = sphi 0, %s165
      %s183 = sphi 0, %s183
      %s185 = sphi 0, %s183
      %s186 = sphi 0, %s185
      %s200 = sphi 0, %s186
      %s204 = sphi 0, %s204
      %s206 = sphi 0, %s204
      %s207 = sphi 0, %s206
      %s221 = sphi 0, %s207
      %s225 = sphi 0, %s225
      %s227 = sphi 0, %s225
      %s228 = sphi 0, %s227
      %s242 = sphi 0, %s228
      %s248 = sphi 0, %s250
      %s251 = sphi 0, %s248
      %s252 = sphi 0, %s251
      %s268 = sphi 0, %s252
    $region4: #{bottleneck_forward.1} parent=1 // loop_header_branch
      %26 = sbr.rel (%p24) target = $region8
    $region5: #{bottleneck_forward.1} parent=1 // loop_body
      %s28 = ssub.s32 %s23, 1
      %s29 = ssub.s32 %s23, 2
      %s30 = sadd.s32 %s23, 1
      %s31 = ssub.s32 %s23, %s30
      %p32 = scmp.eq.s32.totalorder %s31, 0
      %s34 = sadd.s32 %s33, 1
      %s35 = scalar_select %p32, %s33, %s34
      %p38 = pneg %p32
      %p39 = scmp.eq.s32.totalorder %s23, 1
      %p40 = por %p38, %p39
      %p41 = scmp.ne.s32.totalorder %s33, %s36
      %p42 = scmp.eq.s32.totalorder %s23, 0
      %p43 = por %p41, %p42
      %p44 = scmp.ne.s32.totalorder %s33, %s36
      %p45 = scmp.eq.s32.totalorder %s28, 1
      %p46 = por %p44, %p45
      %p47 = scmp.ne.s32.totalorder %s36, %s37
      %p48 = scmp.eq.s32.totalorder %s28, 0
      %p49 = por %p47, %p48
      %p50 = scmp.ne.s32.totalorder %s36, %s37
      %p51 = scmp.eq.s32.totalorder %s29, 1
      %p52 = por %p50, %p51
      %p54 = scmp.ne.s32.totalorder %s37, %s53
      %p55 = scmp.eq.s32.totalorder %s29, 0
      %p56 = por %p54, %p55
      %s58 = sadd.s32 %s57, 1
      %p61 = scmp.eq.s32.totalorder %s23, 1
      %p62 = scmp.ne.s32.totalorder %s57, %s59
      %p63 = scmp.eq.s32.totalorder %s23, 0
      %p64 = por %p62, %p63
      %p65 = scmp.ne.s32.totalorder %s57, %s59
      %p66 = scmp.eq.s32.totalorder %s28, 1
      %p67 = por %p65, %p66
      %p68 = scmp.ne.s32.totalorder %s59, %s60
      %p69 = scmp.eq.s32.totalorder %s28, 0
      %p70 = por %p68, %p69
      %p71 = scmp.ne.s32.totalorder %s59, %s60
      %p72 = scmp.eq.s32.totalorder %s29, 1
      %p73 = por %p71, %p72
      %p75 = scmp.ne.s32.totalorder %s60, %s74
      %p76 = scmp.eq.s32.totalorder %s29, 0
      %p77 = por %p75, %p76
      %s79 = sadd.s32 %s78, 1
      %p82 = scmp.eq.s32.totalorder %s23, 1
      %p83 = scmp.ne.s32.totalorder %s78, %s80
      %p84 = scmp.eq.s32.totalorder %s23, 0
      %p85 = por %p83, %p84
      %p86 = scmp.ne.s32.totalorder %s78, %s80
      %p87 = scmp.eq.s32.totalorder %s28, 1
      %p88 = por %p86, %p87
      %p89 = scmp.ne.s32.totalorder %s80, %s81
      %p90 = scmp.eq.s32.totalorder %s28, 0
      %p91 = por %p89, %p90
      %p92 = scmp.ne.s32.totalorder %s80, %s81
      %p93 = scmp.eq.s32.totalorder %s29, 1
      %p94 = por %p92, %p93
      %p96 = scmp.ne.s32.totalorder %s81, %s95
      %p97 = scmp.eq.s32.totalorder %s29, 0
      %p98 = por %p96, %p97
      %s100 = sadd.s32 %s99, 1
      %p103 = scmp.eq.s32.totalorder %s23, 1
      %p104 = scmp.ne.s32.totalorder %s99, %s101
      %p105 = scmp.eq.s32.totalorder %s23, 0
      %p106 = por %p104, %p105
      %p107 = scmp.ne.s32.totalorder %s99, %s101
      %p108 = scmp.eq.s32.totalorder %s28, 1
      %p109 = por %p107, %p108
      %p110 = scmp.ne.s32.totalorder %s101, %s102
      %p111 = scmp.eq.s32.totalorder %s28, 0
      %p112 = por %p110, %p111
      %p113 = scmp.ne.s32.totalorder %s101, %s102
      %p114 = scmp.eq.s32.totalorder %s29, 1
      %p115 = por %p113, %p114
      %p117 = scmp.ne.s32.totalorder %s102, %s116
      %p118 = scmp.eq.s32.totalorder %s29, 0
      %p119 = por %p117, %p118
      %s121 = sadd.s32 %s120, 1
      %p124 = scmp.eq.s32.totalorder %s23, 1
      %p125 = scmp.ne.s32.totalorder %s120, %s122
      %p126 = scmp.eq.s32.totalorder %s23, 0
      %p127 = por %p125, %p126
      %p128 = scmp.ne.s32.totalorder %s120, %s122
      %p129 = scmp.eq.s32.totalorder %s28, 1
      %p130 = por %p128, %p129
      %p131 = scmp.ne.s32.totalorder %s122, %s123
      %p132 = scmp.eq.s32.totalorder %s28, 0
      %p133 = por %p131, %p132
      %p134 = scmp.ne.s32.totalorder %s122, %s123
      %p135 = scmp.eq.s32.totalorder %s29, 1
      %p136 = por %p134, %p135
      %p138 = scmp.ne.s32.totalorder %s123, %s137
      %p139 = scmp.eq.s32.totalorder %s29, 0
      %p140 = por %p138, %p139
      %s142 = sadd.s32 %s141, 1
      %p145 = scmp.eq.s32.totalorder %s23, 1
      %p146 = scmp.ne.s32.totalorder %s141, %s143
      %p147 = scmp.eq.s32.totalorder %s23, 0
      %p148 = por %p146, %p147
      %p149 = scmp.ne.s32.totalorder %s141, %s143
      %p150 = scmp.eq.s32.totalorder %s28, 1
      %p151 = por %p149, %p150
      %p152 = scmp.ne.s32.totalorder %s143, %s144
      %p153 = scmp.eq.s32.totalorder %s28, 0
      %p154 = por %p152, %p153
      %p155 = scmp.ne.s32.totalorder %s143, %s144
      %p156 = scmp.eq.s32.totalorder %s29, 1
      %p157 = por %p155, %p156
      %p159 = scmp.ne.s32.totalorder %s144, %s158
      %p160 = scmp.eq.s32.totalorder %s29, 0
      %p161 = por %p159, %p160
      %s163 = sadd.s32 %s162, 1
      %p166 = scmp.eq.s32.totalorder %s23, 1
      %p167 = scmp.ne.s32.totalorder %s162, %s164
      %p168 = scmp.eq.s32.totalorder %s23, 0
      %p169 = por %p167, %p168
      %p170 = scmp.ne.s32.totalorder %s162, %s164
      %p171 = scmp.eq.s32.totalorder %s28, 1
      %p172 = por %p170, %p171
      %p173 = scmp.ne.s32.totalorder %s164, %s165
      %p174 = scmp.eq.s32.totalorder %s28, 0
      %p175 = por %p173, %p174
      %p176 = scmp.ne.s32.totalorder %s164, %s165
      %p177 = scmp.eq.s32.totalorder %s29, 1
      %p178 = por %p176, %p177
      %p180 = scmp.ne.s32.totalorder %s165, %s179
      %p181 = scmp.eq.s32.totalorder %s29, 0
      %p182 = por %p180, %p181
      %s184 = sadd.s32 %s183, 1
      %p187 = scmp.eq.s32.totalorder %s23, 1
      %p188 = scmp.ne.s32.totalorder %s183, %s185
      %p189 = scmp.eq.s32.totalorder %s23, 0
      %p190 = por %p188, %p189
      %p191 = scmp.ne.s32.totalorder %s183, %s185
      %p192 = scmp.eq.s32.totalorder %s28, 1
      %p193 = por %p191, %p192
      %p194 = scmp.ne.s32.totalorder %s185, %s186
      %p195 = scmp.eq.s32.totalorder %s28, 0
      %p196 = por %p194, %p195
      %p197 = scmp.ne.s32.totalorder %s185, %s186
      %p198 = scmp.eq.s32.totalorder %s29, 1
      %p199 = por %p197, %p198
      %p201 = scmp.ne.s32.totalorder %s186, %s200
      %p202 = scmp.eq.s32.totalorder %s29, 0
      %p203 = por %p201, %p202
      %s205 = sadd.s32 %s204, 1
      %p208 = scmp.eq.s32.totalorder %s23, 1
      %p209 = scmp.ne.s32.totalorder %s204, %s206
      %p210 = scmp.eq.s32.totalorder %s23, 0
      %p211 = por %p209, %p210
      %p212 = scmp.ne.s32.totalorder %s204, %s206
      %p213 = scmp.eq.s32.totalorder %s28, 1
      %p214 = por %p212, %p213
      %p215 = scmp.ne.s32.totalorder %s206, %s207
      %p216 = scmp.eq.s32.totalorder %s28, 0
      %p217 = por %p215, %p216
      %p218 = scmp.ne.s32.totalorder %s206, %s207
      %p219 = scmp.eq.s32.totalorder %s29, 1
      %p220 = por %p218, %p219
      %p222 = scmp.ne.s32.totalorder %s207, %s221
      %p223 = scmp.eq.s32.totalorder %s29, 0
      %p224 = por %p222, %p223
      %s226 = sadd.s32 %s225, 1
      %p229 = scmp.eq.s32.totalorder %s23, 1
      %p230 = scmp.ne.s32.totalorder %s225, %s227
      %p231 = scmp.eq.s32.totalorder %s23, 0
      %p232 = por %p230, %p231
      %p233 = scmp.ne.s32.totalorder %s225, %s227
      %p234 = scmp.eq.s32.totalorder %s28, 1
      %p235 = por %p233, %p234
      %p236 = scmp.ne.s32.totalorder %s227, %s228
      %p237 = scmp.eq.s32.totalorder %s28, 0
      %p238 = por %p236, %p237
      %p239 = scmp.ne.s32.totalorder %s227, %s228
      %p240 = scmp.eq.s32.totalorder %s29, 1
      %p241 = por %p239, %p240
      %p243 = scmp.ne.s32.totalorder %s228, %s242
      %p244 = scmp.eq.s32.totalorder %s29, 0
      %p245 = por %p243, %p244
      %s246 = ssub.s32 %s23, %s30
      %p247 = scmp.eq.s32.totalorder %s246, 0
      %s249 = sadd.s32 %s248, 1
      %s250 = scalar_select %p247, %s248, %s249
      %p253 = pneg %p247
      %p254 = scmp.eq.s32.totalorder %s23, 1
      %p255 = por %p253, %p254
      %p256 = scmp.ne.s32.totalorder %s248, %s251
      %p257 = scmp.eq.s32.totalorder %s23, 0
      %p258 = por %p256, %p257
      %p259 = scmp.ne.s32.totalorder %s248, %s251
      %p260 = scmp.eq.s32.totalorder %s28, 1
      %p261 = por %p259, %p260
      %p262 = scmp.ne.s32.totalorder %s251, %s252
      %p263 = scmp.eq.s32.totalorder %s28, 0
      %p264 = por %p262, %p263
      %p265 = scmp.ne.s32.totalorder %s251, %s252
      %p266 = scmp.eq.s32.totalorder %s29, 1
      %p267 = por %p265, %p266
      %p269 = scmp.ne.s32.totalorder %s252, %s268
      %p270 = scmp.eq.s32.totalorder %s29, 0
      %p271 = por %p269, %p270
      %p272 = scmp.le.s32.totalorder 1, %s23
      %p273 = scmp.lt.s32.totalorder %s23, 3
      %p274 = pnand %p272, %p273
      %p275 = pneg %p274
      // Predicated region
      $region9: #{bottleneck_forward.1} parent=5 // pred_check
        _
      $region10: #{bottleneck_forward.1} parent=5 // pred_check_branch
        %277 = sbr.rel (%p274) target = $region12
      $region11: #{bottleneck_forward.1} parent=5 // pred_region
        %s278 = ssub.s32 %s23, 1
        // Predicated region
        $region13: #{bottleneck_forward.1} parent=11 // pred_check
          %p279 = pneg %p70
        $region14: #{bottleneck_forward.1} parent=11 // pred_check_branch
          %281 = sbr.rel (%p279) target = $region16
        $region15: #{bottleneck_forward.1} parent=11 // pred_region
          _
        $region16: #{bottleneck_forward.1} parent=11 // pred_fallthru
          _
        // Predicated region
        $region17: #{bottleneck_forward.1} parent=11 // pred_check
          %p282 = pneg %p91
        $region18: #{bottleneck_forward.1} parent=11 // pred_check_branch
          %284 = sbr.rel (%p282) target = $region20
        $region19: #{bottleneck_forward.1} parent=11 // pred_region
          _
        $region20: #{bottleneck_forward.1} parent=11 // pred_fallthru
          _
        // Predicated region
        $region21: #{bottleneck_forward.1} parent=11 // pred_check
          %p285 = pneg %p112
        $region22: #{bottleneck_forward.1} parent=11 // pred_check_branch
          %287 = sbr.rel (%p285) target = $region24
        $region23: #{bottleneck_forward.1} parent=11 // pred_region
          _
        $region24: #{bottleneck_forward.1} parent=11 // pred_fallthru
          _
        // Predicated region
        $region25: #{bottleneck_forward.1} parent=11 // pred_check
          %p288 = pneg %p133
        $region26: #{bottleneck_forward.1} parent=11 // pred_check_branch
          %290 = sbr.rel (%p288) target = $region28
        $region27: #{bottleneck_forward.1} parent=11 // pred_region
          _
        $region28: #{bottleneck_forward.1} parent=11 // pred_fallthru
          _
        // Predicated region
        $region29: #{bottleneck_forward.1} parent=11 // pred_check
          %p291 = pneg %p154
        $region30: #{bottleneck_forward.1} parent=11 // pred_check_branch
          %293 = sbr.rel (%p291) target = $region32
        $region31: #{bottleneck_forward.1} parent=11 // pred_region
          _
        $region32: #{bottleneck_forward.1} parent=11 // pred_fallthru
          _
        // Predicated region
        $region33: #{bottleneck_forward.1} parent=11 // pred_check
          %p294 = pneg %p175
        $region34: #{bottleneck_forward.1} parent=11 // pred_check_branch
          %296 = sbr.rel (%p294) target = $region36
        $region35: #{bottleneck_forward.1} parent=11 // pred_region
          _
        $region36: #{bottleneck_forward.1} parent=11 // pred_fallthru
          _
        // Predicated region
        $region37: #{bottleneck_forward.1} parent=11 // pred_check
          %p297 = pneg %p196
        $region38: #{bottleneck_forward.1} parent=11 // pred_check_branch
          %299 = sbr.rel (%p297) target = $region40
        $region39: #{bottleneck_forward.1} parent=11 // pred_region
          _
        $region40: #{bottleneck_forward.1} parent=11 // pred_fallthru
          _
        // Predicated region
        $region41: #{bottleneck_forward.1} parent=11 // pred_check
          %p300 = pneg %p217
        $region42: #{bottleneck_forward.1} parent=11 // pred_check_branch
          %302 = sbr.rel (%p300) target = $region44
        $region43: #{bottleneck_forward.1} parent=11 // pred_region
          _
        $region44: #{bottleneck_forward.1} parent=11 // pred_fallthru
          _
        // Predicated region
        $region45: #{bottleneck_forward.1} parent=11 // pred_check
          %p303 = pneg %p238
        $region46: #{bottleneck_forward.1} parent=11 // pred_check_branch
          %305 = sbr.rel (%p303) target = $region48
        $region47: #{bottleneck_forward.1} parent=11 // pred_region
          %s307 = ssub.s32 16, 16
          %308 = vsyncadd [#allocation8], %s307
          %s310 = sshll.u32 %s9, 4
          %s311 = int_to_ptr.vmem [resolvable:$true] %s310
          %313 = dma.vmem_to_smem %s311, 16, [#allocation9], [#allocation8]
        $region48: #{bottleneck_forward.1} parent=11 // pred_fallthru
          _
      $region12: #{bottleneck_forward.1} parent=5 // pred_fallthru
        _
      %p314 = scmp.lt.s32.totalorder %s23, 2
      // Predicated region
      $region49: #{bottleneck_forward.1} parent=5 // pred_check
        %p315 = pneg %p314
      $region50: #{bottleneck_forward.1} parent=5 // pred_check_branch
        %317 = sbr.rel (%p315) target = $region52
      $region51: #{bottleneck_forward.1} parent=5 // pred_region
        // Predicated region
        $region53: #{bottleneck_forward.1} parent=51 // pred_check
          %p318 = pneg %p43
        $region54: #{bottleneck_forward.1} parent=51 // pred_check_branch
          %320 = sbr.rel (%p318) target = $region56
        $region55: #{bottleneck_forward.1} parent=51 // pred_region
          %s321 = sand.u32 %s33, 1
          %s322 = scalar_lea.sflag [#allocation6], %s321
          %s323 = sand.u32 %s33, 1
          %s324 = smul.addr %s323, 64
          %s325 = scalar_lea.vmem [#allocation5], %s324
          %s327 = ssub.s32 1024, 1024
          %328 = vsyncadd %s322, %s327
          %s329 = smul.addr %s23, 8
          %s330 = smul.addr %s329, 128
          %s331 = scalar_lea.hbm %s0, %s330
          %s332 = sshll.u32 %s325, 4
          %s333 = int_to_ptr.vmem [resolvable:$true] %s332
          %338 = dma.hbm_to_vmem [thread:$0]  %s331, 1024, %s333, %s322, 128, 128, 8
        $region56: #{bottleneck_forward.1} parent=51 // pred_fallthru
          _
      $region52: #{bottleneck_forward.1} parent=5 // pred_fallthru
        _
      %p339 = scmp.le.s32.totalorder 1, %s23
      %p340 = scmp.lt.s32.totalorder %s23, 3
      %p341 = pnand %p339, %p340
      %p342 = pneg %p341
      // Predicated region
      $region57: #{bottleneck_forward.1} parent=5 // pred_check
        _
      $region58: #{bottleneck_forward.1} parent=5 // pred_check_branch
        %344 = sbr.rel (%p341) target = $region60
      $region59: #{bottleneck_forward.1} parent=5 // pred_region
        %s345 = ssub.s32 %s23, 1
        %s346 = sand.u32 %s36, 1
        %s347 = scalar_lea.sflag [#allocation6], %s346
        %s348 = sand.u32 %s36, 1
        %s349 = smul.addr %s348, 64
        %s350 = scalar_lea.vmem [#allocation5], %s349
        // Predicated region
        $region61: #{bottleneck_forward.1} parent=59 // pred_check
          %p351 = pneg %p49
        $region62: #{bottleneck_forward.1} parent=59 // pred_check_branch
          %353 = sbr.rel (%p351) target = $region64
        $region63: #{bottleneck_forward.1} parent=59 // pred_region
          %354 = dma.done %s347, 1024
        $region64: #{bottleneck_forward.1} parent=59 // pred_fallthru
          _
        // Predicated region
        $region65: #{bottleneck_forward.1} parent=59 // pred_check
          %p355 = pneg %p238
        $region66: #{bottleneck_forward.1} parent=59 // pred_check_branch
          %357 = sbr.rel (%p355) target = $region68
        $region67: #{bottleneck_forward.1} parent=59 // pred_region
          %358 = dma.done [#allocation8], 16
        $region68: #{bottleneck_forward.1} parent=59 // pred_fallthru
          _
        %359 = sfence
        %s360 = sand.u32 %s36, 1
        %s361 = scalar_lea.sflag [#allocation6], %s360
        %s362 = sand.u32 %s36, 1
        %s363 = smul.addr %s362, 64
        %s364 = scalar_lea.vmem [#allocation5], %s363
        %p365 = pneg %p49
        %p366 = pneg %p46
        %p367 = pneg %p70
        %p368 = pneg %p67
        %p369 = pneg %p91
        %p370 = pneg %p88
        %p371 = pneg %p112
        %p372 = pneg %p109
        %p373 = pneg %p133
        %p374 = pneg %p130
        %p375 = pneg %p154
        %p376 = pneg %p151
        %p377 = pneg %p175
        %p378 = pneg %p172
        %p379 = pneg %p196
        %p380 = pneg %p193
        %p381 = pneg %p217
        %p382 = pneg %p214
        %p383 = pneg %p238
        %p384 = pneg %p235
        %p385 = pneg %p264
        %p386 = pneg %p261
        %s387 = sand.u32 %s251, 1
        %s388 = scalar_lea.sflag [#allocation7], %s387
        %s389 = sand.u32 %s251, 1
        %s390 = smul.addr %s389, 64
        %s391 = scalar_lea.vmem [#allocation10], %s390
        %v393 = vld [vmem:[%s350] sm:$0xff]
        %v394 = vld [vmem:[%s350 + $0x8] sm:$0xff]
        %v395 = vld [vmem:[%s350 + $0x10] sm:$0xff]
        %v396 = vld [vmem:[%s350 + $0x18] sm:$0xff]
        %v397 = vld [vmem:[%s350 + $0x20] sm:$0xff]
        %v398 = vld [vmem:[%s350 + $0x28] sm:$0xff]
        %v399 = vld [vmem:[%s350 + $0x30] sm:$0xff]
        %v400 = vld [vmem:[%s350 + $0x38] sm:$0xff]
        %v401 = vpack.c.bf16 %v394, %v393
        %v402 = vpack.c.bf16 %v396, %v395
        %v403 = vpack.c.bf16 %v398, %v397
        %v404 = vpack.c.bf16 %v400, %v399
        %v405 = vld [vmem:[%s1] sm:$0xf]
        %v406 = vld [vmem:[%s1 + $0x4] sm:$0xf]
        %v407 = vld [vmem:[%s1 + $0x8] sm:$0xf]
        %v408 = vld [vmem:[%s1 + $0xc] sm:$0xf]
        %v409 = vld [vmem:[%s2] sm:$0x1]
        %v411 = vlaneseq
        %v412 = vshrl.u32 %v411, 7
        %v413 = vsub.s32 0, %v412
        %v414 = vrot.slane %v409, %v413
        %v420 = vunpack.c.l.b16 %v405
        %v421 = vunpack.c.l.b16 %v406
        %v422 = vunpack.c.l.b16 %v407
        %v423 = vunpack.c.l.b16 %v408
        %v424 = vpack.c.b16 %v421, %v420
        %v425 = vpack.c.b16 %v423, %v422
        %vm428 = vcmask 261120
        %v430 = vsel %vm428, %v401, 0
        %v433 = vsel %vm428, %v402, 0
        %v436 = vsel %vm428, %v403, 0
        %v439 = vsel %vm428, %v404, 0
        %441 = vmatprep.subr.bf16.mxu0 0
        %442 = vmatpush1.bf16.msra.mxu0 %v424
        %443 = vmatprep.subr.bf16.mxu0 0
        %444 = vmatpush1.bf16.msra.mxu0 %v425
        %445 = vmatprep.subr.bf16.mxu0 0
        %446 = vmatpush1.bf16.msra.mxu0 0
        %447 = vmatprep.subr.bf16.mxu0 0
        %448 = vmatpush1.bf16.msra.mxu0 0
        %449 = vmatprep.subr.bf16.mxu0 0
        %450 = vmatpush1.bf16.msra.mxu0 0
        %451 = vmatprep.subr.bf16.mxu0 0
        %452 = vmatpush1.bf16.msra.mxu0 0
        %453 = vmatprep.subr.bf16.mxu0 0
        %454 = vmatpush1.bf16.msra.mxu0 0
        %455 = vmatprep.subr.bf16.mxu0 0
        %456 = vmatpush1.bf16.msra.mxu0 0
        %457 = vmatprep.subr.bf16.mxu0 0
        %458 = vmatpush1.bf16.msra.mxu0 0
        %459 = vmatprep.subr.bf16.mxu0 0
        %460 = vmatpush1.bf16.msra.mxu0 0
        %461 = vmatprep.subr.bf16.mxu0 0
        %462 = vmatpush1.bf16.msra.mxu0 0
        %463 = vmatprep.subr.bf16.mxu0 0
        %464 = vmatpush1.bf16.msra.mxu0 0
        %465 = vmatprep.subr.bf16.mxu0 0
        %466 = vmatpush1.bf16.msra.mxu0 0
        %467 = vmatprep.subr.bf16.mxu0 0
        %468 = vmatpush1.bf16.msra.mxu0 0
        %469 = vmatprep.subr.bf16.mxu0 0
        %470 = vmatpush1.bf16.msra.mxu0 0
        %471 = vmatprep.subr.bf16.mxu0 0
        %472 = vmatpush1.bf16.msra.mxu0 0
        %473 = vmatprep.mubr.bf16.mxu0 0
        %474 = vmatmul.mubr.bf16.gmra.mrb[0].mxu0 %v430
        %v475 = vpop.f32.mrb[0].mxu0
        %v476 = vadd.f32 %v414, %v475
        %v477 = vpop.f32.mrb[0].mxu0
        %v478 = vpop.f32.mrb[0].mxu0
        %v479 = vadd.f32 %v414, %v478
        %v480 = vpop.f32.mrb[0].mxu0
        %481 = vmatprep.mubr.bf16.mxu0 0
        %482 = vmatmul.mubr.bf16.gmra.mrb[0].mxu0 %v433
        %v483 = vpop.f32.mrb[0].mxu0
        %v484 = vadd.f32 %v414, %v483
        %v485 = vpop.f32.mrb[0].mxu0
        %v486 = vpop.f32.mrb[0].mxu0
        %v487 = vadd.f32 %v414, %v486
        %v488 = vpop.f32.mrb[0].mxu0
        %489 = vmatprep.mubr.bf16.mxu0 0
        %490 = vmatmul.mubr.bf16.gmra.mrb[0].mxu0 %v436
        %v491 = vpop.f32.mrb[0].mxu0
        %v492 = vadd.f32 %v414, %v491
        %v493 = vpop.f32.mrb[0].mxu0
        %v494 = vpop.f32.mrb[0].mxu0
        %v495 = vadd.f32 %v414, %v494
        %v496 = vpop.f32.mrb[0].mxu0
        %497 = vmatprep.mubr.bf16.mxu0 0
        %498 = vmatmul.mubr.bf16.gmra.mrb[0].mxu0 %v439
        %v499 = vpop.f32.mrb[0].mxu0
        %v500 = vadd.f32 %v414, %v499
        %v501 = vpop.f32.mrb[0].mxu0
        %v502 = vpop.f32.mrb[0].mxu0
        %v503 = vadd.f32 %v414, %v502
        %v504 = vpop.f32.mrb[0].mxu0
        %505 = vdwg.mxu0
        %v506 = vmax.f32 %v476, 0.0
        %v507 = vmax.f32 %v479, 0.0
        %v508 = vmax.f32 %v484, 0.0
        %v509 = vmax.f32 %v487, 0.0
        %v510 = vmax.f32 %v492, 0.0
        %v511 = vmax.f32 %v495, 0.0
        %v512 = vmax.f32 %v500, 0.0
        %v513 = vmax.f32 %v503, 0.0
        %vm514 = vcmask 64512
        %515 = vst.msk [vmem:[#allocation2] sm:$0xff] %vm514, 0.0
        %vm516 = vcmask 58368
        %517 = vst.msk [vmem:[#allocation2 + $0x8] sm:$0x3] %vm516, 0.0
        %s518 = scalar_lea.vmem [#allocation2], 144
        %519 = vst.msk [vmem:[%s518] sm:$0xff] %vm514, 0.0
        %520 = vst.msk [vmem:[%s518 + $0x8] sm:$0x3] %vm516, 0.0
        %vm521 = vcmask 57344
        %522 = vst.msk [vmem:[#allocation2] sm:$0x1] %vm521, 0.0
        %523 = vst.msk [vmem:[#allocation2 + $0x10] sm:$0x1] %vm521, 0.0
        %524 = vst.msk [vmem:[#allocation2 + $0x20] sm:$0x1] %vm521, 0.0
        %525 = vst.msk [vmem:[#allocation2 + $0x30] sm:$0x1] %vm521, 0.0
        %526 = vst.msk [vmem:[#allocation2 + $0x40] sm:$0x1] %vm521, 0.0
        %527 = vst.msk [vmem:[#allocation2 + $0x50] sm:$0x1] %vm521, 0.0
        %528 = vst.msk [vmem:[#allocation2 + $0x60] sm:$0x1] %vm521, 0.0
        %529 = vst.msk [vmem:[#allocation2 + $0x70] sm:$0x1] %vm521, 0.0
        %530 = vst.msk [vmem:[#allocation2 + $0x80] sm:$0x1] %vm521, 0.0
        %531 = vst.msk [vmem:[#allocation2 + $0x90] sm:$0x1] %vm521, 0.0
        %532 = vst.msk [vmem:[#allocation2 + $0x9] sm:$0x1] %vm521, 0.0
        %533 = vst.msk [vmem:[#allocation2 + $0x19] sm:$0x1] %vm521, 0.0
        %534 = vst.msk [vmem:[#allocation2 + $0x29] sm:$0x1] %vm521, 0.0
        %535 = vst.msk [vmem:[#allocation2 + $0x39] sm:$0x1] %vm521, 0.0
        %536 = vst.msk [vmem:[#allocation2 + $0x49] sm:$0x1] %vm521, 0.0
        %537 = vst.msk [vmem:[#allocation2 + $0x59] sm:$0x1] %vm521, 0.0
        %538 = vst.msk [vmem:[#allocation2 + $0x69] sm:$0x1] %vm521, 0.0
        %539 = vst.msk [vmem:[#allocation2 + $0x79] sm:$0x1] %vm521, 0.0
        %540 = vst.msk [vmem:[#allocation2 + $0x89] sm:$0x1] %vm521, 0.0
        %541 = vst.msk [vmem:[#allocation2 + $0x99] sm:$0x1] %vm521, 0.0
        %s542 = scalar_lea.vmem [#allocation2], 16
        %543 = vst.msk [vmem:[%s542 + $0x1] sm:$0xff] %vm514, %v506
        %544 = vst.msk [vmem:[%s542 + $0x11] sm:$0xff] %vm514, %v507
        %545 = vst.msk [vmem:[%s542 + $0x21] sm:$0xff] %vm514, %v508
        %546 = vst.msk [vmem:[%s542 + $0x31] sm:$0xff] %vm514, %v509
        %547 = vst.msk [vmem:[%s542 + $0x41] sm:$0xff] %vm514, %v510
        %548 = vst.msk [vmem:[%s542 + $0x51] sm:$0xff] %vm514, %v511
        %549 = vst.msk [vmem:[%s542 + $0x61] sm:$0xff] %vm514, %v512
        %550 = vst.msk [vmem:[%s542 + $0x71] sm:$0xff] %vm514, %v513
        %v551 = vld [vmem:[#allocation2] sm:$0xff]
        %v552 = vld [vmem:[#allocation2 + $0x8] sm:$0x3]
        %v553 = vld [vmem:[#allocation2 + $0x10] sm:$0xff]
        %v554 = vld [vmem:[#allocation2 + $0x18] sm:$0x3]
        %v555 = vld [vmem:[#allocation2 + $0x20] sm:$0xff]
        %v556 = vld [vmem:[#allocation2 + $0x28] sm:$0x3]
        %v557 = vld [vmem:[#allocation2 + $0x30] sm:$0xff]
        %v558 = vld [vmem:[#allocation2 + $0x38] sm:$0x3]
        %v559 = vld [vmem:[#allocation2 + $0x40] sm:$0xff]
        %v560 = vld [vmem:[#allocation2 + $0x48] sm:$0x3]
        %v561 = vld [vmem:[#allocation2 + $0x50] sm:$0xff]
        %v562 = vld [vmem:[#allocation2 + $0x58] sm:$0x3]
        %v563 = vld [vmem:[#allocation2 + $0x60] sm:$0xff]
        %v564 = vld [vmem:[#allocation2 + $0x68] sm:$0x3]
        %v565 = vld [vmem:[#allocation2 + $0x70] sm:$0xff]
        %v566 = vld [vmem:[#allocation2 + $0x78] sm:$0x3]
        %v567 = vld [vmem:[#allocation2 + $0x80] sm:$0xff]
        %v568 = vld [vmem:[#allocation2 + $0x88] sm:$0x3]
        %v569 = vld [vmem:[#allocation2 + $0x90] sm:$0xff]
        %v570 = vld [vmem:[#allocation2 + $0x98] sm:$0x3]
        %v571 = vpack.c.bf16 %v552, %v551
        %v572 = vpack.c.bf16 %v554, %v553
        %v573 = vpack.c.bf16 %v556, %v555
        %v574 = vpack.c.bf16 %v558, %v557
        %v575 = vpack.c.bf16 %v560, %v559
        %v576 = vpack.c.bf16 %v562, %v561
        %v577 = vpack.c.bf16 %v564, %v563
        %v578 = vpack.c.bf16 %v566, %v565
        %v579 = vpack.c.bf16 %v568, %v567
        %v580 = vpack.c.bf16 %v570, %v569
        %v581 = vld [vmem:[%s3] sm:$0xf]
        %v590 = vunpack.c.l.b16 %v571
        %v591 = vunpack.c.h.b16 %v571
        %v592 = vunpack.c.l.b16 %v572
        %v593 = vunpack.c.h.b16 %v572
        %v594 = vunpack.c.l.b16 %v573
        %v595 = vunpack.c.h.b16 %v573
        %v596 = vunpack.c.l.b16 %v574
        %v597 = vunpack.c.h.b16 %v574
        %v598 = vunpack.c.l.b16 %v575
        %v599 = vunpack.c.h.b16 %v575
        %v600 = vunpack.c.l.b16 %v576
        %v601 = vunpack.c.h.b16 %v576
        %v602 = vunpack.c.l.b16 %v577
        %v603 = vunpack.c.h.b16 %v577
        %v604 = vunpack.c.l.b16 %v578
        %v605 = vunpack.c.h.b16 %v578
        %v606 = vpack.c.b16 %v590, %v590
        %v607 = vpack.c.b16 %v591, %v591
        %v608 = vpack.c.b16 %v592, %v592
        %v609 = vpack.c.b16 %v593, %v593
        %v610 = vpack.c.b16 %v594, %v594
        %v611 = vpack.c.b16 %v595, %v595
        %v612 = vpack.c.b16 %v596, %v596
        %v613 = vpack.c.b16 %v597, %v597
        %v614 = vpack.c.b16 %v598, %v598
        %v615 = vpack.c.b16 %v599, %v599
        %v616 = vpack.c.b16 %v600, %v600
        %v617 = vpack.c.b16 %v601, %v601
        %v618 = vpack.c.b16 %v602, %v602
        %v619 = vpack.c.b16 %v603, %v603
        %v620 = vpack.c.b16 %v604, %v604
        %v621 = vpack.c.b16 %v605, %v605
        %vm622 = vsmask.f32 3328
        %vm623 = vsmask.f32 7440
        %vm624 = vmor %vm622, %vm623
        %v626 = vshrl.u32 %v606, 16
        %v628 = vrot.slane %v626, 4
        %v629 = vshll.u32 %v606, 16
        %v631 = vrot.slane %v629, 5
        %v632 = vor.u32 %v628, %v631
        %v633 = vrot.slane %v632, 4
        %v635 = vshll.u32 %v607, 16
        %v637 = vrot.slane %v635, 5
        %v638 = vsel %vm624, %v633, %v637
        %v640 = vshrl.u32 %v608, 16
        %v642 = vrot.slane %v640, 4
        %v643 = vshll.u32 %v608, 16
        %v645 = vrot.slane %v643, 5
        %v646 = vor.u32 %v642, %v645
        %v647 = vrot.slane %v646, 4
        %v649 = vshll.u32 %v609, 16
        %v651 = vrot.slane %v649, 5
        %v652 = vsel %vm624, %v647, %v651
        %v654 = vshrl.u32 %v610, 16
        %v656 = vrot.slane %v654, 4
        %v657 = vshll.u32 %v610, 16
        %v659 = vrot.slane %v657, 5
        %v660 = vor.u32 %v656, %v659
        %v661 = vrot.slane %v660, 4
        %v663 = vshll.u32 %v611, 16
        %v665 = vrot.slane %v663, 5
        %v666 = vsel %vm624, %v661, %v665
        %v668 = vshrl.u32 %v612, 16
        %v670 = vrot.slane %v668, 4
        %v671 = vshll.u32 %v612, 16
        %v673 = vrot.slane %v671, 5
        %v674 = vor.u32 %v670, %v673
        %v675 = vrot.slane %v674, 4
        %v677 = vshll.u32 %v613, 16
        %v679 = vrot.slane %v677, 5
        %v680 = vsel %vm624, %v675, %v679
        %v682 = vshrl.u32 %v614, 16
        %v684 = vrot.slane %v682, 4
        %v685 = vshll.u32 %v614, 16
        %v687 = vrot.slane %v685, 5
        %v688 = vor.u32 %v684, %v687
        %v689 = vrot.slane %v688, 4
        %v691 = vshll.u32 %v615, 16
        %v693 = vrot.slane %v691, 5
        %v694 = vsel %vm624, %v689, %v693
        %v696 = vshrl.u32 %v616, 16
        %v698 = vrot.slane %v696, 4
        %v699 = vshll.u32 %v616, 16
        %v701 = vrot.slane %v699, 5
        %v702 = vor.u32 %v698, %v701
        %v703 = vrot.slane %v702, 4
        %v705 = vshll.u32 %v617, 16
        %v707 = vrot.slane %v705, 5
        %v708 = vsel %vm624, %v703, %v707
        %v710 = vshrl.u32 %v618, 16
        %v712 = vrot.slane %v710, 4
        %v713 = vshll.u32 %v618, 16
        %v715 = vrot.slane %v713, 5
        %v716 = vor.u32 %v712, %v715
        %v717 = vrot.slane %v716, 4
        %v719 = vshll.u32 %v619, 16
        %v721 = vrot.slane %v719, 5
        %v722 = vsel %vm624, %v717, %v721
        %v724 = vshrl.u32 %v620, 16
        %v726 = vrot.slane %v724, 4
        %v727 = vshll.u32 %v620, 16
        %v729 = vrot.slane %v727, 5
        %v730 = vor.u32 %v726, %v729
        %v731 = vrot.slane %v730, 4
        %v733 = vshll.u32 %v621, 16
        %v735 = vrot.slane %v733, 5
        %v736 = vsel %vm624, %v731, %v735
        %s737 = scalar_lea.vmem %s3, 4
        %v738 = vld [vmem:[%s737] sm:$0xf]
        %v739 = vunpack.c.l.b16 %v638
        %v740 = vunpack.c.l.b16 %v652
        %v741 = vunpack.c.l.b16 %v666
        %v742 = vunpack.c.l.b16 %v680
        %v743 = vunpack.c.l.b16 %v694
        %v744 = vunpack.c.l.b16 %v708
        %v745 = vunpack.c.l.b16 %v722
        %v746 = vunpack.c.l.b16 %v736
        %v747 = vpack.c.b16 %v740, %v739
        %v748 = vpack.c.b16 %v742, %v741
        %v749 = vpack.c.b16 %v744, %v743
        %v750 = vpack.c.b16 %v746, %v745
        %v752 = vsel %vm514, %v747, 0
        %v755 = vsel %vm514, %v748, 0
        %v758 = vsel %vm514, %v749, 0
        %v761 = vsel %vm514, %v750, 0
        %vm763 = vcmask 1043456
        %v765 = vsel %vm763, %v738, 0
        %767 = vmatprep.subr.bf16.mxu0 0
        %768 = vmatpush1.bf16.msra.mxu0 %v765
        %769 = vmatprep.subr.bf16.mxu0 0
        %770 = vmatpush1.bf16.msra.mxu0 0
        %771 = vmatprep.subr.bf16.mxu0 0
        %772 = vmatpush1.bf16.msra.mxu0 0
        %773 = vmatprep.subr.bf16.mxu0 0
        %774 = vmatpush1.bf16.msra.mxu0 0
        %775 = vmatprep.subr.bf16.mxu0 0
        %776 = vmatpush1.bf16.msra.mxu0 0
        %777 = vmatprep.subr.bf16.mxu0 0
        %778 = vmatpush1.bf16.msra.mxu0 0
        %779 = vmatprep.subr.bf16.mxu0 0
        %780 = vmatpush1.bf16.msra.mxu0 0
        %781 = vmatprep.subr.bf16.mxu0 0
        %782 = vmatpush1.bf16.msra.mxu0 0
        %783 = vmatprep.subr.bf16.mxu0 0
        %784 = vmatpush1.bf16.msra.mxu0 0
        %785 = vmatprep.subr.bf16.mxu0 0
        %786 = vmatpush1.bf16.msra.mxu0 0
        %787 = vmatprep.subr.bf16.mxu0 0
        %788 = vmatpush1.bf16.msra.mxu0 0
        %789 = vmatprep.subr.bf16.mxu0 0
        %790 = vmatpush1.bf16.msra.mxu0 0
        %791 = vmatprep.subr.bf16.mxu0 0
        %792 = vmatpush1.bf16.msra.mxu0 0
        %793 = vmatprep.subr.bf16.mxu0 0
        %794 = vmatpush1.bf16.msra.mxu0 0
        %795 = vmatprep.subr.bf16.mxu0 0
        %796 = vmatpush1.bf16.msra.mxu0 0
        %797 = vmatprep.subr.bf16.mxu0 0
        %798 = vmatpush1.bf16.msra.mxu0 0
        %799 = vmatprep.mubr.bf16.mxu0 0
        %800 = vmatmul.mubr.bf16.gmra.mrb[0].mxu0 %v752
        %v801 = vpop.f32.mrb[0].mxu0
        %v802 = vadd.f32 0.0, %v801
        %v803 = vpop.f32.mrb[0].mxu0
        %v804 = vpop.f32.mrb[0].mxu0
        %v805 = vadd.f32 0.0, %v804
        %v806 = vpop.f32.mrb[0].mxu0
        %807 = vmatprep.mubr.bf16.mxu0 0
        %808 = vmatmul.mubr.bf16.gmra.mrb[0].mxu0 %v755
        %v809 = vpop.f32.mrb[0].mxu0
        %v810 = vadd.f32 0.0, %v809
        %v811 = vpop.f32.mrb[0].mxu0
        %v812 = vpop.f32.mrb[0].mxu0
        %v813 = vadd.f32 0.0, %v812
        %v814 = vpop.f32.mrb[0].mxu0
        %815 = vmatprep.mubr.bf16.mxu0 0
        %816 = vmatmul.mubr.bf16.gmra.mrb[0].mxu0 %v758
        %v817 = vpop.f32.mrb[0].mxu0
        %v818 = vadd.f32 0.0, %v817
        %v819 = vpop.f32.mrb[0].mxu0
        %v820 = vpop.f32.mrb[0].mxu0
        %v821 = vadd.f32 0.0, %v820
        %v822 = vpop.f32.mrb[0].mxu0
        %823 = vmatprep.mubr.bf16.mxu0 0
        %824 = vmatmul.mubr.bf16.gmra.mrb[0].mxu0 %v761
        %v825 = vpop.f32.mrb[0].mxu0
        %v826 = vadd.f32 0.0, %v825
        %v827 = vpop.f32.mrb[0].mxu0
        %v828 = vpop.f32.mrb[0].mxu0
        %v829 = vadd.f32 0.0, %v828
        %v830 = vpop.f32.mrb[0].mxu0
        %831 = vdwg.mxu0
        %v832 = vpack.c.b16 %v592, %v590
        %v833 = vpack.c.b16 %v596, %v594
        %v834 = vpack.c.b16 %v600, %v598
        %v835 = vpack.c.b16 %v604, %v602
        %v837 = vsel %vm514, %v832, 0
        %v840 = vsel %vm514, %v833, 0
        %v843 = vsel %vm514, %v834, 0
        %v846 = vsel %vm514, %v835, 0
        %v849 = vsel %vm763, %v581, 0
        %851 = vmatprep.subr.bf16.mxu0 0
        %852 = vmatpush1.bf16.msra.mxu0 %v849
        %853 = vmatprep.subr.bf16.mxu0 0
        %854 = vmatpush1.bf16.msra.mxu0 0
        %855 = vmatprep.subr.bf16.mxu0 0
        %856 = vmatpush1.bf16.msra.mxu0 0
        %857 = vmatprep.subr.bf16.mxu0 0
        %858 = vmatpush1.bf16.msra.mxu0 0
        %859 = vmatprep.subr.bf16.mxu0 0
        %860 = vmatpush1.bf16.msra.mxu0 0
        %861 = vmatprep.subr.bf16.mxu0 0
        %862 = vmatpush1.bf16.msra.mxu0 0
        %863 = vmatprep.subr.bf16.mxu0 0
        %864 = vmatpush1.bf16.msra.mxu0 0
        %865 = vmatprep.subr.bf16.mxu0 0
        %866 = vmatpush1.bf16.msra.mxu0 0
        %867 = vmatprep.subr.bf16.mxu0 0
        %868 = vmatpush1.bf16.msra.mxu0 0
        %869 = vmatprep.subr.bf16.mxu0 0
        %870 = vmatpush1.bf16.msra.mxu0 0
        %871 = vmatprep.subr.bf16.mxu0 0
        %872 = vmatpush1.bf16.msra.mxu0 0
        %873 = vmatprep.subr.bf16.mxu0 0
        %874 = vmatpush1.bf16.msra.mxu0 0
        %875 = vmatprep.subr.bf16.mxu0 0
        %876 = vmatpush1.bf16.msra.mxu0 0
        %877 = vmatprep.subr.bf16.mxu0 0
        %878 = vmatpush1.bf16.msra.mxu0 0
        %879 = vmatprep.subr.bf16.mxu0 0
        %880 = vmatpush1.bf16.msra.mxu0 0
        %881 = vmatprep.subr.bf16.mxu0 0
        %882 = vmatpush1.bf16.msra.mxu0 0
        %883 = vmatprep.mubr.bf16.mxu0 0
        %884 = vmatmul.mubr.bf16.gmra.mrb[0].mxu0 %v837
        %v885 = vpop.f32.mrb[0].mxu0
        %v886 = vadd.f32 %v802, %v885
        %v887 = vpop.f32.mrb[0].mxu0
        %v888 = vpop.f32.mrb[0].mxu0
        %v889 = vadd.f32 %v805, %v888
        %v890 = vpop.f32.mrb[0].mxu0
        %891 = vmatprep.mubr.bf16.mxu0 0
        %892 = vmatmul.mubr.bf16.gmra.mrb[0].mxu0 %v840
        %v893 = vpop.f32.mrb[0].mxu0
        %v894 = vadd.f32 %v810, %v893
        %v895 = vpop.f32.mrb[0].mxu0
        %v896 = vpop.f32.mrb[0].mxu0
        %v897 = vadd.f32 %v813, %v896
        %v898 = vpop.f32.mrb[0].mxu0
        %899 = vmatprep.mubr.bf16.mxu0 0
        %900 = vmatmul.mubr.bf16.gmra.mrb[0].mxu0 %v843
        %v901 = vpop.f32.mrb[0].mxu0
        %v902 = vadd.f32 %v818, %v901
        %v903 = vpop.f32.mrb[0].mxu0
        %v904 = vpop.f32.mrb[0].mxu0
        %v905 = vadd.f32 %v821, %v904
        %v906 = vpop.f32.mrb[0].mxu0
        %907 = vmatprep.mubr.bf16.mxu0 0
        %908 = vmatmul.mubr.bf16.gmra.mrb[0].mxu0 %v846
        %v909 = vpop.f32.mrb[0].mxu0
        %v910 = vadd.f32 %v826, %v909
        %v911 = vpop.f32.mrb[0].mxu0
        %v912 = vpop.f32.mrb[0].mxu0
        %v913 = vadd.f32 %v829, %v912
        %v914 = vpop.f32.mrb[0].mxu0
        %915 = vdwg.mxu0
        %vm916 = vcmask 1042432
        %vm917 = vcmask 1046532
        %vm918 = vmor %vm916, %vm917
        %v919 = vrot.slane %v606, 5
        %v920 = vrot.slane %v919, 4
        %v921 = vrot.slane %v607, 5
        %v922 = vsel %vm918, %v920, %v921
        %v923 = vrot.slane %v608, 5
        %v924 = vrot.slane %v923, 4
        %v925 = vrot.slane %v609, 5
        %v926 = vsel %vm918, %v924, %v925
        %v927 = vrot.slane %v610, 5
        %v928 = vrot.slane %v927, 4
        %v929 = vrot.slane %v611, 5
        %v930 = vsel %vm918, %v928, %v929
        %v931 = vrot.slane %v612, 5
        %v932 = vrot.slane %v931, 4
        %v933 = vrot.slane %v613, 5
        %v934 = vsel %vm918, %v932, %v933
        %v935 = vrot.slane %v614, 5
        %v936 = vrot.slane %v935, 4
        %v937 = vrot.slane %v615, 5
        %v938 = vsel %vm918, %v936, %v937
        %v939 = vrot.slane %v616, 5
        %v940 = vrot.slane %v939, 4
        %v941 = vrot.slane %v617, 5
        %v942 = vsel %vm918, %v940, %v941
        %v943 = vrot.slane %v618, 5
        %v944 = vrot.slane %v943, 4
        %v945 = vrot.slane %v619, 5
        %v946 = vsel %vm918, %v944, %v945
        %v947 = vrot.slane %v620, 5
        %v948 = vrot.slane %v947, 4
        %v949 = vrot.slane %v621, 5
        %v950 = vsel %vm918, %v948, %v949
        %s951 = scalar_lea.vmem %s3, 8
        %v952 = vld [vmem:[%s951] sm:$0xf]
        %v953 = vunpack.c.l.b16 %v922
        %v954 = vunpack.c.l.b16 %v926
        %v955 = vunpack.c.l.b16 %v930
        %v956 = vunpack.c.l.b16 %v934
        %v957 = vunpack.c.l.b16 %v938
        %v958 = vunpack.c.l.b16 %v942
        %v959 = vunpack.c.l.b16 %v946
        %v960 = vunpack.c.l.b16 %v950
        %v961 = vpack.c.b16 %v954, %v953
        %v962 = vpack.c.b16 %v956, %v955
        %v963 = vpack.c.b16 %v958, %v957
        %v964 = vpack.c.b16 %v960, %v959
        %v966 = vsel %vm514, %v961, 0
        %v969 = vsel %vm514, %v962, 0
        %v972 = vsel %vm514, %v963, 0
        %v975 = vsel %vm514, %v964, 0
        %v978 = vsel %vm763, %v952, 0
        %980 = vmatprep.subr.bf16.mxu0 0
        %981 = vmatpush1.bf16.msra.mxu0 %v978
        %982 = vmatprep.subr.bf16.mxu0 0
        %983 = vmatpush1.bf16.msra.mxu0 0
        %984 = vmatprep.subr.bf16.mxu0 0
        %985 = vmatpush1.bf16.msra.mxu0 0
        %986 = vmatprep.subr.bf16.mxu0 0
        %987 = vmatpush1.bf16.msra.mxu0 0
        %988 = vmatprep.subr.bf16.mxu0 0
        %989 = vmatpush1.bf16.msra.mxu0 0
        %990 = vmatprep.subr.bf16.mxu0 0
        %991 = vmatpush1.bf16.msra.mxu0 0
        %992 = vmatprep.subr.bf16.mxu0 0
        %993 = vmatpush1.bf16.msra.mxu0 0
        %994 = vmatprep.subr.bf16.mxu0 0
        %995 = vmatpush1.bf16.msra.mxu0 0
        %996 = vmatprep.subr.bf16.mxu0 0
        %997 = vmatpush1.bf16.msra.mxu0 0
        %998 = vmatprep.subr.bf16.mxu0 0
        %999 = vmatpush1.bf16.msra.mxu0 0
        %1000 = vmatprep.subr.bf16.mxu0 0
        %1001 = vmatpush1.bf16.msra.mxu0 0
        %1002 = vmatprep.subr.bf16.mxu0 0
        %1003 = vmatpush1.bf16.msra.mxu0 0
        %1004 = vmatprep.subr.bf16.mxu0 0
        %1005 = vmatpush1.bf16.msra.mxu0 0
        %1006 = vmatprep.subr.bf16.mxu0 0
        %1007 = vmatpush1.bf16.msra.mxu0 0
        %1008 = vmatprep.subr.bf16.mxu0 0
        %1009 = vmatpush1.bf16.msra.mxu0 0
        %1010 = vmatprep.subr.bf16.mxu0 0
        %1011 = vmatpush1.bf16.msra.mxu0 0
        %1012 = vmatprep.mubr.bf16.mxu0 0
        %1013 = vmatmul.mubr.bf16.gmra.mrb[0].mxu0 %v966
        %v1014 = vpop.f32.mrb[0].mxu0
        %v1015 = vadd.f32 0.0, %v1014
        %v1016 = vpop.f32.mrb[0].mxu0
        %v1017 = vpop.f32.mrb[0].mxu0
        %v1018 = vadd.f32 0.0, %v1017
        %v1019 = vpop.f32.mrb[0].mxu0
        %1020 = vmatprep.mubr.bf16.mxu0 0
        %1021 = vmatmul.mubr.bf16.gmra.mrb[0].mxu0 %v969
        %v1022 = vpop.f32.mrb[0].mxu0
        %v1023 = vadd.f32 0.0, %v1022
        %v1024 = vpop.f32.mrb[0].mxu0
        %v1025 = vpop.f32.mrb[0].mxu0
        %v1026 = vadd.f32 0.0, %v1025
        %v1027 = vpop.f32.mrb[0].mxu0
        %1028 = vmatprep.mubr.bf16.mxu0 0
        %1029 = vmatmul.mubr.bf16.gmra.mrb[0].mxu0 %v972
        %v1030 = vpop.f32.mrb[0].mxu0
        %v1031 = vadd.f32 0.0, %v1030
        %v1032 = vpop.f32.mrb[0].mxu0
        %v1033 = vpop.f32.mrb[0].mxu0
        %v1034 = vadd.f32 0.0, %v1033
        %v1035 = vpop.f32.mrb[0].mxu0
        %1036 = vmatprep.mubr.bf16.mxu0 0
        %1037 = vmatmul.mubr.bf16.gmra.mrb[0].mxu0 %v975
        %v1038 = vpop.f32.mrb[0].mxu0
        %v1039 = vadd.f32 0.0, %v1038
        %v1040 = vpop.f32.mrb[0].mxu0
        %v1041 = vpop.f32.mrb[0].mxu0
        %v1042 = vadd.f32 0.0, %v1041
        %v1043 = vpop.f32.mrb[0].mxu0
        %1044 = vdwg.mxu0
        %v1045 = vadd.f32 %v886, %v1015
        %v1046 = vadd.f32 %v889, %v1018
        %v1047 = vadd.f32 %v894, %v1023
        %v1048 = vadd.f32 %v897, %v1026
        %v1049 = vadd.f32 %v902, %v1031
        %v1050 = vadd.f32 %v905, %v1034
        %v1051 = vadd.f32 %v910, %v1039
        %v1052 = vadd.f32 %v913, %v1042
        %s1053 = scalar_lea.vmem %s3, 12
        %v1054 = vld [vmem:[%s1053] sm:$0xf]
        %v1056 = vunpack.c.l.b16 %v579
        %v1057 = vpack.c.b16 %v594, %v592
        %v1058 = vpack.c.b16 %v598, %v596
        %v1059 = vpack.c.b16 %v602, %v600
        %v1060 = vpack.c.b16 %v1056, %v604
        %v1062 = vsel %vm514, %v1057, 0
        %v1065 = vsel %vm514, %v1058, 0
        %v1068 = vsel %vm514, %v1059, 0
        %v1071 = vsel %vm514, %v1060, 0
        %v1074 = vsel %vm763, %v1054, 0
        %1076 = vmatprep.subr.bf16.mxu0 0
        %1077 = vmatpush1.bf16.msra.mxu0 %v1074
        %1078 = vmatprep.subr.bf16.mxu0 0
        %1079 = vmatpush1.bf16.msra.mxu0 0
        %1080 = vmatprep.subr.bf16.mxu0 0
        %1081 = vmatpush1.bf16.msra.mxu0 0
        %1082 = vmatprep.subr.bf16.mxu0 0
        %1083 = vmatpush1.bf16.msra.mxu0 0
        %1084 = vmatprep.subr.bf16.mxu0 0
        %1085 = vmatpush1.bf16.msra.mxu0 0
        %1086 = vmatprep.subr.bf16.mxu0 0
        %1087 = vmatpush1.bf16.msra.mxu0 0
        %1088 = vmatprep.subr.bf16.mxu0 0
        %1089 = vmatpush1.bf16.msra.mxu0 0
        %1090 = vmatprep.subr.bf16.mxu0 0
        %1091 = vmatpush1.bf16.msra.mxu0 0
        %1092 = vmatprep.subr.bf16.mxu0 0
        %1093 = vmatpush1.bf16.msra.mxu0 0
        %1094 = vmatprep.subr.bf16.mxu0 0
        %1095 = vmatpush1.bf16.msra.mxu0 0
        %1096 = vmatprep.subr.bf16.mxu0 0
        %1097 = vmatpush1.bf16.msra.mxu0 0
        %1098 = vmatprep.subr.bf16.mxu0 0
        %1099 = vmatpush1.bf16.msra.mxu0 0
        %1100 = vmatprep.subr.bf16.mxu0 0
        %1101 = vmatpush1.bf16.msra.mxu0 0
        %1102 = vmatprep.subr.bf16.mxu0 0
        %1103 = vmatpush1.bf16.msra.mxu0 0
        %1104 = vmatprep.subr.bf16.mxu0 0
        %1105 = vmatpush1.bf16.msra.mxu0 0
        %1106 = vmatprep.subr.bf16.mxu0 0
        %1107 = vmatpush1.bf16.msra.mxu0 0
        %1108 = vmatprep.mubr.bf16.mxu0 0
        %1109 = vmatmul.mubr.bf16.gmra.mrb[0].mxu0 %v1062
        %v1110 = vpop.f32.mrb[0].mxu0
        %v1111 = vadd.f32 0.0, %v1110
        %v1112 = vpop.f32.mrb[0].mxu0
        %v1113 = vpop.f32.mrb[0].mxu0
        %v1114 = vadd.f32 0.0, %v1113
        %v1115 = vpop.f32.mrb[0].mxu0
        %1116 = vmatprep.mubr.bf16.mxu0 0
        %1117 = vmatmul.mubr.bf16.gmra.mrb[0].mxu0 %v1065
        %v1118 = vpop.f32.mrb[0].mxu0
        %v1119 = vadd.f32 0.0, %v1118
        %v1120 = vpop.f32.mrb[0].mxu0
        %v1121 = vpop.f32.mrb[0].mxu0
        %v1122 = vadd.f32 0.0, %v1121
        %v1123 = vpop.f32.mrb[0].mxu0
        %1124 = vmatprep.mubr.bf16.mxu0 0
        %1125 = vmatmul.mubr.bf16.gmra.mrb[0].mxu0 %v1068
        %v1126 = vpop.f32.mrb[0].mxu0
        %v1127 = vadd.f32 0.0, %v1126
        %v1128 = vpop.f32.mrb[0].mxu0
        %v1129 = vpop.f32.mrb[0].mxu0
        %v1130 = vadd.f32 0.0, %v1129
        %v1131 = vpop.f32.mrb[0].mxu0
        %1132 = vmatprep.mubr.bf16.mxu0 0
        %1133 = vmatmul.mubr.bf16.gmra.mrb[0].mxu0 %v1071
        %v1134 = vpop.f32.mrb[0].mxu0
        %v1135 = vadd.f32 0.0, %v1134
        %v1136 = vpop.f32.mrb[0].mxu0
        %v1137 = vpop.f32.mrb[0].mxu0
        %v1138 = vadd.f32 0.0, %v1137
        %v1139 = vpop.f32.mrb[0].mxu0
        %1140 = vdwg.mxu0
        %v1141 = vadd.f32 %v1045, %v1111
        %v1142 = vadd.f32 %v1046, %v1114
        %v1143 = vadd.f32 %v1047, %v1119
        %v1144 = vadd.f32 %v1048, %v1122
        %v1145 = vadd.f32 %v1049, %v1127
        %v1146 = vadd.f32 %v1050, %v1130
        %v1147 = vadd.f32 %v1051, %v1135
        %v1148 = vadd.f32 %v1052, %v1138
        %v1149 = vunpack.c.h.b16 %v579
        %v1150 = vpack.c.b16 %v1056, %v1056
        %v1151 = vpack.c.b16 %v1149, %v1149
        %v1153 = vshrl.u32 %v1150, 16
        %v1155 = vrot.slane %v1153, 4
        %v1156 = vshll.u32 %v1150, 16
        %v1158 = vrot.slane %v1156, 5
        %v1159 = vor.u32 %v1155, %v1158
        %v1160 = vrot.slane %v1159, 4
        %v1162 = vshll.u32 %v1151, 16
        %v1164 = vrot.slane %v1162, 5
        %v1165 = vsel %vm624, %v1160, %v1164
        %s1166 = scalar_lea.vmem %s3, 16
        %v1167 = vld [vmem:[%s1166] sm:$0xf]
        %v1168 = vunpack.c.l.b16 %v1165
        %v1169 = vpack.c.b16 %v741, %v740
        %v1170 = vpack.c.b16 %v743, %v742
        %v1171 = vpack.c.b16 %v745, %v744
        %v1172 = vpack.c.b16 %v1168, %v746
        %v1174 = vsel %vm514, %v1169, 0
        %v1177 = vsel %vm514, %v1170, 0
        %v1180 = vsel %vm514, %v1171, 0
        %v1183 = vsel %vm514, %v1172, 0
        %v1186 = vsel %vm763, %v1167, 0
        %1188 = vmatprep.subr.bf16.mxu0 0
        %1189 = vmatpush1.bf16.msra.mxu0 %v1186
        %1190 = vmatprep.subr.bf16.mxu0 0
        %1191 = vmatpush1.bf16.msra.mxu0 0
        %1192 = vmatprep.subr.bf16.mxu0 0
        %1193 = vmatpush1.bf16.msra.mxu0 0
        %1194 = vmatprep.subr.bf16.mxu0 0
        %1195 = vmatpush1.bf16.msra.mxu0 0
        %1196 = vmatprep.subr.bf16.mxu0 0
        %1197 = vmatpush1.bf16.msra.mxu0 0
        %1198 = vmatprep.subr.bf16.mxu0 0
        %1199 = vmatpush1.bf16.msra.mxu0 0
        %1200 = vmatprep.subr.bf16.mxu0 0
        %1201 = vmatpush1.bf16.msra.mxu0 0
        %1202 = vmatprep.subr.bf16.mxu0 0
        %1203 = vmatpush1.bf16.msra.mxu0 0
        %1204 = vmatprep.subr.bf16.mxu0 0
        %1205 = vmatpush1.bf16.msra.mxu0 0
        %1206 = vmatprep.subr.bf16.mxu0 0
        %1207 = vmatpush1.bf16.msra.mxu0 0
        %1208 = vmatprep.subr.bf16.mxu0 0
        %1209 = vmatpush1.bf16.msra.mxu0 0
        %1210 = vmatprep.subr.bf16.mxu0 0
        %1211 = vmatpush1.bf16.msra.mxu0 0
        %1212 = vmatprep.subr.bf16.mxu0 0
        %1213 = vmatpush1.bf16.msra.mxu0 0
        %1214 = vmatprep.subr.bf16.mxu0 0
        %1215 = vmatpush1.bf16.msra.mxu0 0
        %1216 = vmatprep.subr.bf16.mxu0 0
        %1217 = vmatpush1.bf16.msra.mxu0 0
        %1218 = vmatprep.subr.bf16.mxu0 0
        %1219 = vmatpush1.bf16.msra.mxu0 0
        %1220 = vmatprep.mubr.bf16.mxu0 0
        %1221 = vmatmul.mubr.bf16.gmra.mrb[0].mxu0 %v1174
        %v1222 = vpop.f32.mrb[0].mxu0
        %v1223 = vadd.f32 0.0, %v1222
        %v1224 = vpop.f32.mrb[0].mxu0
        %v1225 = vpop.f32.mrb[0].mxu0
        %v1226 = vadd.f32 0.0, %v1225
        %v1227 = vpop.f32.mrb[0].mxu0
        %1228 = vmatprep.mubr.bf16.mxu0 0
        %1229 = vmatmul.mubr.bf16.gmra.mrb[0].mxu0 %v1177
        %v1230 = vpop.f32.mrb[0].mxu0
        %v1231 = vadd.f32 0.0, %v1230
        %v1232 = vpop.f32.mrb[0].mxu0
        %v1233 = vpop.f32.mrb[0].mxu0
        %v1234 = vadd.f32 0.0, %v1233
        %v1235 = vpop.f32.mrb[0].mxu0
        %1236 = vmatprep.mubr.bf16.mxu0 0
        %1237 = vmatmul.mubr.bf16.gmra.mrb[0].mxu0 %v1180
        %v1238 = vpop.f32.mrb[0].mxu0
        %v1239 = vadd.f32 0.0, %v1238
        %v1240 = vpop.f32.mrb[0].mxu0
        %v1241 = vpop.f32.mrb[0].mxu0
        %v1242 = vadd.f32 0.0, %v1241
        %v1243 = vpop.f32.mrb[0].mxu0
        %1244 = vmatprep.mubr.bf16.mxu0 0
        %1245 = vmatmul.mubr.bf16.gmra.mrb[0].mxu0 %v1183
        %v1246 = vpop.f32.mrb[0].mxu0
        %v1247 = vadd.f32 0.0, %v1246
        %v1248 = vpop.f32.mrb[0].mxu0
        %v1249 = vpop.f32.mrb[0].mxu0
        %v1250 = vadd.f32 0.0, %v1249
        %v1251 = vpop.f32.mrb[0].mxu0
        %1252 = vdwg.mxu0
        %v1253 = vadd.f32 %v1141, %v1223
        %v1254 = vadd.f32 %v1142, %v1226
        %v1255 = vadd.f32 %v1143, %v1231
        %v1256 = vadd.f32 %v1144, %v1234
        %v1257 = vadd.f32 %v1145, %v1239
        %v1258 = vadd.f32 %v1146, %v1242
        %v1259 = vadd.f32 %v1147, %v1247
        %v1260 = vadd.f32 %v1148, %v1250
        %v1261 = vrot.slane %v1150, 5
        %v1262 = vrot.slane %v1261, 4
        %v1263 = vrot.slane %v1151, 5
        %v1264 = vsel %vm918, %v1262, %v1263
        %s1265 = scalar_lea.vmem %s3, 20
        %v1266 = vld [vmem:[%s1265] sm:$0xf]
        %v1267 = vunpack.c.l.b16 %v1264
        %v1268 = vpack.c.b16 %v955, %v954
        %v1269 = vpack.c.b16 %v957, %v956
        %v1270 = vpack.c.b16 %v959, %v958
        %v1271 = vpack.c.b16 %v1267, %v960
        %v1273 = vsel %vm514, %v1268, 0
        %v1276 = vsel %vm514, %v1269, 0
        %v1279 = vsel %vm514, %v1270, 0
        %v1282 = vsel %vm514, %v1271, 0
        %v1285 = vsel %vm763, %v1266, 0
        %1287 = vmatprep.subr.bf16.mxu0 0
        %1288 = vmatpush1.bf16.msra.mxu0 %v1285
        %1289 = vmatprep.subr.bf16.mxu0 0
        %1290 = vmatpush1.bf16.msra.mxu0 0
        %1291 = vmatprep.subr.bf16.mxu0 0
        %1292 = vmatpush1.bf16.msra.mxu0 0
        %1293 = vmatprep.subr.bf16.mxu0 0
        %1294 = vmatpush1.bf16.msra.mxu0 0
        %1295 = vmatprep.subr.bf16.mxu0 0
        %1296 = vmatpush1.bf16.msra.mxu0 0
        %1297 = vmatprep.subr.bf16.mxu0 0
        %1298 = vmatpush1.bf16.msra.mxu0 0
        %1299 = vmatprep.subr.bf16.mxu0 0
        %1300 = vmatpush1.bf16.msra.mxu0 0
        %1301 = vmatprep.subr.bf16.mxu0 0
        %1302 = vmatpush1.bf16.msra.mxu0 0
        %1303 = vmatprep.subr.bf16.mxu0 0
        %1304 = vmatpush1.bf16.msra.mxu0 0
        %1305 = vmatprep.subr.bf16.mxu0 0
        %1306 = vmatpush1.bf16.msra.mxu0 0
        %1307 = vmatprep.subr.bf16.mxu0 0
        %1308 = vmatpush1.bf16.msra.mxu0 0
        %1309 = vmatprep.subr.bf16.mxu0 0
        %1310 = vmatpush1.bf16.msra.mxu0 0
        %1311 = vmatprep.subr.bf16.mxu0 0
        %1312 = vmatpush1.bf16.msra.mxu0 0
        %1313 = vmatprep.subr.bf16.mxu0 0
        %1314 = vmatpush1.bf16.msra.mxu0 0
        %1315 = vmatprep.subr.bf16.mxu0 0
        %1316 = vmatpush1.bf16.msra.mxu0 0
        %1317 = vmatprep.subr.bf16.mxu0 0
        %1318 = vmatpush1.bf16.msra.mxu0 0
        %1319 = vmatprep.mubr.bf16.mxu0 0
        %1320 = vmatmul.mubr.bf16.gmra.mrb[0].mxu0 %v1273
        %v1321 = vpop.f32.mrb[0].mxu0
        %v1322 = vadd.f32 0.0, %v1321
        %v1323 = vpop.f32.mrb[0].mxu0
        %v1324 = vpop.f32.mrb[0].mxu0
        %v1325 = vadd.f32 0.0, %v1324
        %v1326 = vpop.f32.mrb[0].mxu0
        %1327 = vmatprep.mubr.bf16.mxu0 0
        %1328 = vmatmul.mubr.bf16.gmra.mrb[0].mxu0 %v1276
        %v1329 = vpop.f32.mrb[0].mxu0
        %v1330 = vadd.f32 0.0, %v1329
        %v1331 = vpop.f32.mrb[0].mxu0
        %v1332 = vpop.f32.mrb[0].mxu0
        %v1333 = vadd.f32 0.0, %v1332
        %v1334 = vpop.f32.mrb[0].mxu0
        %1335 = vmatprep.mubr.bf16.mxu0 0
        %1336 = vmatmul.mubr.bf16.gmra.mrb[0].mxu0 %v1279
        %v1337 = vpop.f32.mrb[0].mxu0
        %v1338 = vadd.f32 0.0, %v1337
        %v1339 = vpop.f32.mrb[0].mxu0
        %v1340 = vpop.f32.mrb[0].mxu0
        %v1341 = vadd.f32 0.0, %v1340
        %v1342 = vpop.f32.mrb[0].mxu0
        %1343 = vmatprep.mubr.bf16.mxu0 0
        %1344 = vmatmul.mubr.bf16.gmra.mrb[0].mxu0 %v1282
        %v1345 = vpop.f32.mrb[0].mxu0
        %v1346 = vadd.f32 0.0, %v1345
        %v1347 = vpop.f32.mrb[0].mxu0
        %v1348 = vpop.f32.mrb[0].mxu0
        %v1349 = vadd.f32 0.0, %v1348
        %v1350 = vpop.f32.mrb[0].mxu0
        %1351 = vdwg.mxu0
        %v1352 = vadd.f32 %v1253, %v1322
        %v1353 = vadd.f32 %v1254, %v1325
        %v1354 = vadd.f32 %v1255, %v1330
        %v1355 = vadd.f32 %v1256, %v1333
        %v1356 = vadd.f32 %v1257, %v1338
        %v1357 = vadd.f32 %v1258, %v1341
        %v1358 = vadd.f32 %v1259, %v1346
        %v1359 = vadd.f32 %v1260, %v1349
        %s1360 = scalar_lea.vmem %s3, 24
        %v1361 = vld [vmem:[%s1360] sm:$0xf]
        %v1363 = vunpack.c.l.b16 %v580
        %v1364 = vpack.c.b16 %v1363, %v1056
        %v1366 = vsel %vm514, %v1364, 0
        %v1369 = vsel %vm763, %v1361, 0
        %1371 = vmatprep.subr.bf16.mxu0 0
        %1372 = vmatpush1.bf16.msra.mxu0 %v1369
        %1373 = vmatprep.subr.bf16.mxu0 0
        %1374 = vmatpush1.bf16.msra.mxu0 0
        %1375 = vmatprep.subr.bf16.mxu0 0
        %1376 = vmatpush1.bf16.msra.mxu0 0
        %1377 = vmatprep.subr.bf16.mxu0 0
        %1378 = vmatpush1.bf16.msra.mxu0 0
        %1379 = vmatprep.subr.bf16.mxu0 0
        %1380 = vmatpush1.bf16.msra.mxu0 0
        %1381 = vmatprep.subr.bf16.mxu0 0
        %1382 = vmatpush1.bf16.msra.mxu0 0
        %1383 = vmatprep.subr.bf16.mxu0 0
        %1384 = vmatpush1.bf16.msra.mxu0 0
        %1385 = vmatprep.subr.bf16.mxu0 0
        %1386 = vmatpush1.bf16.msra.mxu0 0
        %1387 = vmatprep.subr.bf16.mxu0 0
        %1388 = vmatpush1.bf16.msra.mxu0 0
        %1389 = vmatprep.subr.bf16.mxu0 0
        %1390 = vmatpush1.bf16.msra.mxu0 0
        %1391 = vmatprep.subr.bf16.mxu0 0
        %1392 = vmatpush1.bf16.msra.mxu0 0
        %1393 = vmatprep.subr.bf16.mxu0 0
        %1394 = vmatpush1.bf16.msra.mxu0 0
        %1395 = vmatprep.subr.bf16.mxu0 0
        %1396 = vmatpush1.bf16.msra.mxu0 0
        %1397 = vmatprep.subr.bf16.mxu0 0
        %1398 = vmatpush1.bf16.msra.mxu0 0
        %1399 = vmatprep.subr.bf16.mxu0 0
        %1400 = vmatpush1.bf16.msra.mxu0 0
        %1401 = vmatprep.subr.bf16.mxu0 0
        %1402 = vmatpush1.bf16.msra.mxu0 0
        %1403 = vmatprep.mubr.bf16.mxu0 0
        %1404 = vmatmul.mubr.bf16.gmra.mrb[0].mxu0 %v840
        %v1405 = vpop.f32.mrb[0].mxu0
        %v1406 = vadd.f32 0.0, %v1405
        %v1407 = vpop.f32.mrb[0].mxu0
        %v1408 = vpop.f32.mrb[0].mxu0
        %v1409 = vadd.f32 0.0, %v1408
        %v1410 = vpop.f32.mrb[0].mxu0
        %1411 = vmatprep.mubr.bf16.mxu0 0
        %1412 = vmatmul.mubr.bf16.gmra.mrb[0].mxu0 %v843
        %v1413 = vpop.f32.mrb[0].mxu0
        %v1414 = vadd.f32 0.0, %v1413
        %v1415 = vpop.f32.mrb[0].mxu0
        %v1416 = vpop.f32.mrb[0].mxu0
        %v1417 = vadd.f32 0.0, %v1416
        %v1418 = vpop.f32.mrb[0].mxu0
        %1419 = vmatprep.mubr.bf16.mxu0 0
        %1420 = vmatmul.mubr.bf16.gmra.mrb[0].mxu0 %v846
        %v1421 = vpop.f32.mrb[0].mxu0
        %v1422 = vadd.f32 0.0, %v1421
        %v1423 = vpop.f32.mrb[0].mxu0
        %v1424 = vpop.f32.mrb[0].mxu0
        %v1425 = vadd.f32 0.0, %v1424
        %v1426 = vpop.f32.mrb[0].mxu0
        %1427 = vmatprep.mubr.bf16.mxu0 0
        %1428 = vmatmul.mubr.bf16.gmra.mrb[0].mxu0 %v1366
        %v1429 = vpop.f32.mrb[0].mxu0
        %v1430 = vadd.f32 0.0, %v1429
        %v1431 = vpop.f32.mrb[0].mxu0
        %v1432 = vpop.f32.mrb[0].mxu0
        %v1433 = vadd.f32 0.0, %v1432
        %v1434 = vpop.f32.mrb[0].mxu0
        %1435 = vdwg.mxu0
        %v1436 = vadd.f32 %v1352, %v1406
        %v1437 = vadd.f32 %v1353, %v1409
        %v1438 = vadd.f32 %v1354, %v1414
        %v1439 = vadd.f32 %v1355, %v1417
        %v1440 = vadd.f32 %v1356, %v1422
        %v1441 = vadd.f32 %v1357, %v1425
        %v1442 = vadd.f32 %v1358, %v1430
        %v1443 = vadd.f32 %v1359, %v1433
        %v1444 = vunpack.c.h.b16 %v580
        %v1445 = vpack.c.b16 %v1363, %v1363
        %v1446 = vpack.c.b16 %v1444, %v1444
        %v1448 = vshrl.u32 %v1445, 16
        %v1450 = vrot.slane %v1448, 4
        %v1451 = vshll.u32 %v1445, 16
        %v1453 = vrot.slane %v1451, 5
        %v1454 = vor.u32 %v1450, %v1453
        %v1455 = vrot.slane %v1454, 4
        %v1457 = vshll.u32 %v1446, 16
        %v1459 = vrot.slane %v1457, 5
        %v1460 = vsel %vm624, %v1455, %v1459
        %s1461 = scalar_lea.vmem %s3, 28
        %v1462 = vld [vmem:[%s1461] sm:$0xf]
        %v1463 = vunpack.c.l.b16 %v1460
        %v1464 = vpack.c.b16 %v1463, %v1168
        %v1466 = vsel %vm514, %v1464, 0
        %v1469 = vsel %vm763, %v1462, 0
        %1471 = vmatprep.subr.bf16.mxu0 0
        %1472 = vmatpush1.bf16.msra.mxu0 %v1469
        %1473 = vmatprep.subr.bf16.mxu0 0
        %1474 = vmatpush1.bf16.msra.mxu0 0
        %1475 = vmatprep.subr.bf16.mxu0 0
        %1476 = vmatpush1.bf16.msra.mxu0 0
        %1477 = vmatprep.subr.bf16.mxu0 0
        %1478 = vmatpush1.bf16.msra.mxu0 0
        %1479 = vmatprep.subr.bf16.mxu0 0
        %1480 = vmatpush1.bf16.msra.mxu0 0
        %1481 = vmatprep.subr.bf16.mxu0 0
        %1482 = vmatpush1.bf16.msra.mxu0 0
        %1483 = vmatprep.subr.bf16.mxu0 0
        %1484 = vmatpush1.bf16.msra.mxu0 0
        %1485 = vmatprep.subr.bf16.mxu0 0
        %1486 = vmatpush1.bf16.msra.mxu0 0
        %1487 = vmatprep.subr.bf16.mxu0 0
        %1488 = vmatpush1.bf16.msra.mxu0 0
        %1489 = vmatprep.subr.bf16.mxu0 0
        %1490 = vmatpush1.bf16.msra.mxu0 0
        %1491 = vmatprep.subr.bf16.mxu0 0
        %1492 = vmatpush1.bf16.msra.mxu0 0
        %1493 = vmatprep.subr.bf16.mxu0 0
        %1494 = vmatpush1.bf16.msra.mxu0 0
        %1495 = vmatprep.subr.bf16.mxu0 0
        %1496 = vmatpush1.bf16.msra.mxu0 0
        %1497 = vmatprep.subr.bf16.mxu0 0
        %1498 = vmatpush1.bf16.msra.mxu0 0
        %1499 = vmatprep.subr.bf16.mxu0 0
        %1500 = vmatpush1.bf16.msra.mxu0 0
        %1501 = vmatprep.subr.bf16.mxu0 0
        %1502 = vmatpush1.bf16.msra.mxu0 0
        %1503 = vmatprep.mubr.bf16.mxu0 0
        %1504 = vmatmul.mubr.bf16.gmra.mrb[0].mxu0 %v755
        %v1505 = vpop.f32.mrb[0].mxu0
        %v1506 = vadd.f32 0.0, %v1505
        %v1507 = vpop.f32.mrb[0].mxu0
        %v1508 = vpop.f32.mrb[0].mxu0
        %v1509 = vadd.f32 0.0, %v1508
        %v1510 = vpop.f32.mrb[0].mxu0
        %1511 = vmatprep.mubr.bf16.mxu0 0
        %1512 = vmatmul.mubr.bf16.gmra.mrb[0].mxu0 %v758
        %v1513 = vpop.f32.mrb[0].mxu0
        %v1514 = vadd.f32 0.0, %v1513
        %v1515 = vpop.f32.mrb[0].mxu0
        %v1516 = vpop.f32.mrb[0].mxu0
        %v1517 = vadd.f32 0.0, %v1516
        %v1518 = vpop.f32.mrb[0].mxu0
        %1519 = vmatprep.mubr.bf16.mxu0 0
        %1520 = vmatmul.mubr.bf16.gmra.mrb[0].mxu0 %v761
        %v1521 = vpop.f32.mrb[0].mxu0
        %v1522 = vadd.f32 0.0, %v1521
        %v1523 = vpop.f32.mrb[0].mxu0
        %v1524 = vpop.f32.mrb[0].mxu0
        %v1525 = vadd.f32 0.0, %v1524
        %v1526 = vpop.f32.mrb[0].mxu0
        %1527 = vmatprep.mubr.bf16.mxu0 0
        %1528 = vmatmul.mubr.bf16.gmra.mrb[0].mxu0 %v1466
        %v1529 = vpop.f32.mrb[0].mxu0
        %v1530 = vadd.f32 0.0, %v1529
        %v1531 = vpop.f32.mrb[0].mxu0
        %v1532 = vpop.f32.mrb[0].mxu0
        %v1533 = vadd.f32 0.0, %v1532
        %v1534 = vpop.f32.mrb[0].mxu0
        %1535 = vdwg.mxu0
        %v1536 = vadd.f32 %v1436, %v1506
        %v1537 = vadd.f32 %v1437, %v1509
        %v1538 = vadd.f32 %v1438, %v1514
        %v1539 = vadd.f32 %v1439, %v1517
        %v1540 = vadd.f32 %v1440, %v1522
        %v1541 = vadd.f32 %v1441, %v1525
        %v1542 = vadd.f32 %v1442, %v1530
        %v1543 = vadd.f32 %v1443, %v1533
        %v1544 = vrot.slane %v1445, 5
        %v1545 = vrot.slane %v1544, 4
        %v1546 = vrot.slane %v1446, 5
        %v1547 = vsel %vm918, %v1545, %v1546
        %s1548 = scalar_lea.vmem %s3, 32
        %v1549 = vld [vmem:[%s1548] sm:$0xf]
        %v1550 = vunpack.c.l.b16 %v1547
        %v1551 = vpack.c.b16 %v1550, %v1267
        %v1553 = vsel %vm514, %v1551, 0
        %v1556 = vsel %vm763, %v1549, 0
        %1558 = vmatprep.subr.bf16.mxu0 0
        %1559 = vmatpush1.bf16.msra.mxu0 %v1556
        %1560 = vmatprep.subr.bf16.mxu0 0
        %1561 = vmatpush1.bf16.msra.mxu0 0
        %1562 = vmatprep.subr.bf16.mxu0 0
        %1563 = vmatpush1.bf16.msra.mxu0 0
        %1564 = vmatprep.subr.bf16.mxu0 0
        %1565 = vmatpush1.bf16.msra.mxu0 0
        %1566 = vmatprep.subr.bf16.mxu0 0
        %1567 = vmatpush1.bf16.msra.mxu0 0
        %1568 = vmatprep.subr.bf16.mxu0 0
        %1569 = vmatpush1.bf16.msra.mxu0 0
        %1570 = vmatprep.subr.bf16.mxu0 0
        %1571 = vmatpush1.bf16.msra.mxu0 0
        %1572 = vmatprep.subr.bf16.mxu0 0
        %1573 = vmatpush1.bf16.msra.mxu0 0
        %1574 = vmatprep.subr.bf16.mxu0 0
        %1575 = vmatpush1.bf16.msra.mxu0 0
        %1576 = vmatprep.subr.bf16.mxu0 0
        %1577 = vmatpush1.bf16.msra.mxu0 0
        %1578 = vmatprep.subr.bf16.mxu0 0
        %1579 = vmatpush1.bf16.msra.mxu0 0
        %1580 = vmatprep.subr.bf16.mxu0 0
        %1581 = vmatpush1.bf16.msra.mxu0 0
        %1582 = vmatprep.subr.bf16.mxu0 0
        %1583 = vmatpush1.bf16.msra.mxu0 0
        %1584 = vmatprep.subr.bf16.mxu0 0
        %1585 = vmatpush1.bf16.msra.mxu0 0
        %1586 = vmatprep.subr.bf16.mxu0 0
        %1587 = vmatpush1.bf16.msra.mxu0 0
        %1588 = vmatprep.subr.bf16.mxu0 0
        %1589 = vmatpush1.bf16.msra.mxu0 0
        %1590 = vmatprep.mubr.bf16.mxu0 0
        %1591 = vmatmul.mubr.bf16.gmra.mrb[0].mxu0 %v969
        %v1592 = vpop.f32.mrb[0].mxu0
        %v1593 = vadd.f32 0.0, %v1592
        %v1594 = vpop.f32.mrb[0].mxu0
        %v1595 = vpop.f32.mrb[0].mxu0
        %v1596 = vadd.f32 0.0, %v1595
        %v1597 = vpop.f32.mrb[0].mxu0
        %1598 = vmatprep.mubr.bf16.mxu0 0
        %1599 = vmatmul.mubr.bf16.gmra.mrb[0].mxu0 %v972
        %v1600 = vpop.f32.mrb[0].mxu0
        %v1601 = vadd.f32 0.0, %v1600
        %v1602 = vpop.f32.mrb[0].mxu0
        %v1603 = vpop.f32.mrb[0].mxu0
        %v1604 = vadd.f32 0.0, %v1603
        %v1605 = vpop.f32.mrb[0].mxu0
        %1606 = vmatprep.mubr.bf16.mxu0 0
        %1607 = vmatmul.mubr.bf16.gmra.mrb[0].mxu0 %v975
        %v1608 = vpop.f32.mrb[0].mxu0
        %v1609 = vadd.f32 0.0, %v1608
        %v1610 = vpop.f32.mrb[0].mxu0
        %v1611 = vpop.f32.mrb[0].mxu0
        %v1612 = vadd.f32 0.0, %v1611
        %v1613 = vpop.f32.mrb[0].mxu0
        %1614 = vmatprep.mubr.bf16.mxu0 0
        %1615 = vmatmul.mubr.bf16.gmra.mrb[0].mxu0 %v1553
        %v1616 = vpop.f32.mrb[0].mxu0
        %v1617 = vadd.f32 0.0, %v1616
        %v1618 = vpop.f32.mrb[0].mxu0
        %v1619 = vpop.f32.mrb[0].mxu0
        %v1620 = vadd.f32 0.0, %v1619
        %v1621 = vpop.f32.mrb[0].mxu0
        %1622 = vdwg.mxu0
        %v1623 = vadd.f32 %v1536, %v1593
        %v1624 = vadd.f32 %v1537, %v1596
        %v1625 = vadd.f32 %v1538, %v1601
        %v1626 = vadd.f32 %v1539, %v1604
        %v1627 = vadd.f32 %v1540, %v1609
        %v1628 = vadd.f32 %v1541, %v1612
        %v1629 = vadd.f32 %v1542, %v1617
        %v1630 = vadd.f32 %v1543, %v1620
        %v1631 = vld [vmem:[%s4] sm:$0x1]
        %v1633 = vlaneseq
        %v1634 = vshrl.u32 %v1633, 7
        %v1635 = vsub.s32 0, %v1634
        %v1636 = vrot.slane %v1631, %v1635
        %v1638 = vadd.f32 %v1623, %v1636
        %v1639 = vadd.f32 %v1624, %v1636
        %v1640 = vadd.f32 %v1625, %v1636
        %v1641 = vadd.f32 %v1626, %v1636
        %v1642 = vadd.f32 %v1627, %v1636
        %v1643 = vadd.f32 %v1628, %v1636
        %v1644 = vadd.f32 %v1629, %v1636
        %v1645 = vadd.f32 %v1630, %v1636
        %v1646 = vmax.f32 %v1638, 0.0
        %v1647 = vmax.f32 %v1639, 0.0
        %v1648 = vmax.f32 %v1640, 0.0
        %v1649 = vmax.f32 %v1641, 0.0
        %v1650 = vmax.f32 %v1642, 0.0
        %v1651 = vmax.f32 %v1643, 0.0
        %v1652 = vmax.f32 %v1644, 0.0
        %v1653 = vmax.f32 %v1645, 0.0
        %v1654 = vpack.c.bf16 %v1647, %v1646
        %v1655 = vpack.c.bf16 %v1649, %v1648
        %v1656 = vpack.c.bf16 %v1651, %v1650
        %v1657 = vpack.c.bf16 %v1653, %v1652
        %v1658 = vld [vmem:[%s5] sm:$0xf]
        %v1659 = vld [vmem:[%s6] sm:$0x1]
        %v1661 = vlaneseq
        %v1662 = vshrl.u32 %v1661, 7
        %v1663 = vsub.s32 0, %v1662
        %v1664 = vrot.slane %v1659, %v1663
        %v1667 = vsel %vm514, %v1654, 0
        %v1670 = vsel %vm514, %v1655, 0
        %v1673 = vsel %vm514, %v1656, 0
        %v1676 = vsel %vm514, %v1657, 0
        %v1679 = vsel %vm763, %v1658, 0
        %1681 = vmatprep.subr.bf16.mxu0 0
        %1682 = vmatpush1.bf16.msra.mxu0 %v1679
        %1683 = vmatprep.subr.bf16.mxu0 0
        %1684 = vmatpush1.bf16.msra.mxu0 0
        %1685 = vmatprep.subr.bf16.mxu0 0
        %1686 = vmatpush1.bf16.msra.mxu0 0
        %1687 = vmatprep.subr.bf16.mxu0 0
        %1688 = vmatpush1.bf16.msra.mxu0 0
        %1689 = vmatprep.subr.bf16.mxu0 0
        %1690 = vmatpush1.bf16.msra.mxu0 0
        %1691 = vmatprep.subr.bf16.mxu0 0
        %1692 = vmatpush1.bf16.msra.mxu0 0
        %1693 = vmatprep.subr.bf16.mxu0 0
        %1694 = vmatpush1.bf16.msra.mxu0 0
        %1695 = vmatprep.subr.bf16.mxu0 0
        %1696 = vmatpush1.bf16.msra.mxu0 0
        %1697 = vmatprep.subr.bf16.mxu0 0
        %1698 = vmatpush1.bf16.msra.mxu0 0
        %1699 = vmatprep.subr.bf16.mxu0 0
        %1700 = vmatpush1.bf16.msra.mxu0 0
        %1701 = vmatprep.subr.bf16.mxu0 0
        %1702 = vmatpush1.bf16.msra.mxu0 0
        %1703 = vmatprep.subr.bf16.mxu0 0
        %1704 = vmatpush1.bf16.msra.mxu0 0
        %1705 = vmatprep.subr.bf16.mxu0 0
        %1706 = vmatpush1.bf16.msra.mxu0 0
        %1707 = vmatprep.subr.bf16.mxu0 0
        %1708 = vmatpush1.bf16.msra.mxu0 0
        %1709 = vmatprep.subr.bf16.mxu0 0
        %1710 = vmatpush1.bf16.msra.mxu0 0
        %1711 = vmatprep.subr.bf16.mxu0 0
        %1712 = vmatpush1.bf16.msra.mxu0 0
        %1713 = vmatprep.mubr.bf16.mxu0 0
        %1714 = vmatmul.mubr.bf16.gmra.mrb[0].mxu0 %v1667
        %v1715 = vpop.f32.mrb[0].mxu0
        %v1716 = vadd.f32 %v1664, %v1715
        %v1717 = vpop.f32.mrb[0].mxu0
        %v1718 = vpop.f32.mrb[0].mxu0
        %v1719 = vadd.f32 %v1664, %v1718
        %v1720 = vpop.f32.mrb[0].mxu0
        %1721 = vmatprep.mubr.bf16.mxu0 0
        %1722 = vmatmul.mubr.bf16.gmra.mrb[0].mxu0 %v1670
        %v1723 = vpop.f32.mrb[0].mxu0
        %v1724 = vadd.f32 %v1664, %v1723
        %v1725 = vpop.f32.mrb[0].mxu0
        %v1726 = vpop.f32.mrb[0].mxu0
        %v1727 = vadd.f32 %v1664, %v1726
        %v1728 = vpop.f32.mrb[0].mxu0
        %1729 = vmatprep.mubr.bf16.mxu0 0
        %1730 = vmatmul.mubr.bf16.gmra.mrb[0].mxu0 %v1673
        %v1731 = vpop.f32.mrb[0].mxu0
        %v1732 = vadd.f32 %v1664, %v1731
        %v1733 = vpop.f32.mrb[0].mxu0
        %v1734 = vpop.f32.mrb[0].mxu0
        %v1735 = vadd.f32 %v1664, %v1734
        %v1736 = vpop.f32.mrb[0].mxu0
        %1737 = vmatprep.mubr.bf16.mxu0 0
        %1738 = vmatmul.mubr.bf16.gmra.mrb[0].mxu0 %v1676
        %v1739 = vpop.f32.mrb[0].mxu0
        %v1740 = vadd.f32 %v1664, %v1739
        %v1741 = vpop.f32.mrb[0].mxu0
        %v1742 = vpop.f32.mrb[0].mxu0
        %v1743 = vadd.f32 %v1664, %v1742
        %v1744 = vpop.f32.mrb[0].mxu0
        %1745 = vdwg.mxu0
        %v1746 = vsel %vm428, %v1716, 0.0
        %v1747 = vsel %vm428, %v1719, 0.0
        %v1748 = vadd.f32 %v1746, %v1747
        %v1749 = vsel %vm428, %v1724, 0.0
        %v1750 = vadd.f32 %v1748, %v1749
        %v1751 = vsel %vm428, %v1727, 0.0
        %v1752 = vadd.f32 %v1750, %v1751
        %v1753 = vsel %vm428, %v1732, 0.0
        %v1754 = vadd.f32 %v1752, %v1753
        %v1755 = vsel %vm428, %v1735, 0.0
        %v1756 = vadd.f32 %v1754, %v1755
        %v1757 = vsel %vm428, %v1740, 0.0
        %v1758 = vadd.f32 %v1756, %v1757
        %v1759 = vsel %vm428, %v1743, 0.0
        %v1760 = vadd.f32 %v1758, %v1759
        %v1761 = vrot.slane %v1760, 4
        %v1762 = vadd.f32 %v1760, %v1761
        %v1763 = vrot.slane %v1762, 2
        %v1764 = vadd.f32 %v1762, %v1763
        %v1765 = vrot.slane %v1764, 1
        %v1766 = vadd.f32 %v1764, %v1765
        %v1767 = vrcp.pop 64.0
        %v1768 = vmul.f32 %v1766, %v1767
        %v1769 = vsel %vm428, %v1716, -inf
        %v1770 = vsel %vm428, %v1719, -inf
        %v1771 = vsel %vm428, %v1724, -inf
        %v1772 = vsel %vm428, %v1727, -inf
        %v1773 = vsel %vm428, %v1732, -inf
        %v1774 = vmax.f32 %v1769, %v1773
        %v1775 = vsel %vm428, %v1735, -inf
        %v1776 = vmax.f32 %v1770, %v1775
        %v1777 = vsel %vm428, %v1740, -inf
        %v1778 = vmax.f32 %v1771, %v1777
        %v1779 = vsel %vm428, %v1743, -inf
        %v1780 = vmax.f32 %v1772, %v1779
        %v1781 = vmax.f32 %v1774, %v1776
        %v1782 = vmax.f32 %v1778, %v1780
        %v1783 = vmax.f32 %v1781, %v1782
        %v1784 = vrot.slane %v1783, 4
        %v1785 = vmax.f32 %v1783, %v1784
        %v1786 = vrot.slane %v1785, 2
        %v1787 = vmax.f32 %v1785, %v1786
        %v1788 = vrot.slane %v1787, 1
        %v1789 = vmax.f32 %v1787, %v1788
        %vm1790 = vcmask 1040384
        %v1791 = vsel %vm1790, %v1768, %v1789
        %v1792 = vpack.c.bf16 %v1791, %v1791
        %v1793 = vld [vmem:[%s7] sm:$0xf]
        %v1794 = vld [vmem:[%s7 + $0x4] sm:$0xf]
        %v1795 = vld [vmem:[%s7 + $0x8] sm:$0xf]
        %v1796 = vld [vmem:[%s7 + $0xc] sm:$0xf]
        %v1801 = vunpack.c.l.b16 %v1793
        %v1802 = vunpack.c.l.b16 %v1794
        %v1803 = vunpack.c.l.b16 %v1795
        %v1804 = vunpack.c.l.b16 %v1796
        %v1805 = vpack.c.b16 %v1802, %v1801
        %v1806 = vpack.c.b16 %v1804, %v1803
        %v1810 = vsel %vm428, %v1792, 0
        %1812 = vmatprep.subr.bf16.mxu0 0
        %1813 = vmatpush1.bf16.msra.mxu0 %v1805
        %1814 = vmatprep.subr.bf16.mxu0 0
        %1815 = vmatpush1.bf16.msra.mxu0 %v1806
        %1816 = vmatprep.subr.bf16.mxu0 0
        %1817 = vmatpush1.bf16.msra.mxu0 0
        %1818 = vmatprep.subr.bf16.mxu0 0
        %1819 = vmatpush1.bf16.msra.mxu0 0
        %1820 = vmatprep.subr.bf16.mxu0 0
        %1821 = vmatpush1.bf16.msra.mxu0 0
        %1822 = vmatprep.subr.bf16.mxu0 0
        %1823 = vmatpush1.bf16.msra.mxu0 0
        %1824 = vmatprep.subr.bf16.mxu0 0
        %1825 = vmatpush1.bf16.msra.mxu0 0
        %1826 = vmatprep.subr.bf16.mxu0 0
        %1827 = vmatpush1.bf16.msra.mxu0 0
        %1828 = vmatprep.subr.bf16.mxu0 0
        %1829 = vmatpush1.bf16.msra.mxu0 0
        %1830 = vmatprep.subr.bf16.mxu0 0
        %1831 = vmatpush1.bf16.msra.mxu0 0
        %1832 = vmatprep.subr.bf16.mxu0 0
        %1833 = vmatpush1.bf16.msra.mxu0 0
        %1834 = vmatprep.subr.bf16.mxu0 0
        %1835 = vmatpush1.bf16.msra.mxu0 0
        %1836 = vmatprep.subr.bf16.mxu0 0
        %1837 = vmatpush1.bf16.msra.mxu0 0
        %1838 = vmatprep.subr.bf16.mxu0 0
        %1839 = vmatpush1.bf16.msra.mxu0 0
        %1840 = vmatprep.subr.bf16.mxu0 0
        %1841 = vmatpush1.bf16.msra.mxu0 0
        %1842 = vmatprep.subr.bf16.mxu0 0
        %1843 = vmatpush1.bf16.msra.mxu0 0
        %1844 = vmatprep.mubr.bf16.mxu0 0
        %1845 = vmatmul.mubr.bf16.gmra.mrb[0].mxu0 %v1810
        %v1846 = vpop.f32.mrb[0].mxu0
        %v1847 = vadd.f32 0.0, %v1846
        %v1848 = vpop.f32.mrb[0].mxu0
        %v1849 = vpop.f32.mrb[0].mxu0
        %v1850 = vpop.f32.mrb[0].mxu0
        %1851 = vdwg.mxu0
        %v1852 = vmax.f32 %v1847, 0.0
        %v1853 = vpack.c.bf16 %v1852, %v1852
        %v1854 = vld [vmem:[%s8] sm:$0x1]
        %vm1855 = vcmask 15360
        %v1857 = vsel %vm1855, %v1853, 0
        %v1860 = vsel %vm1790, %v1854, 0
        %1862 = vmatprep.subr.bf16.mxu0 0
        %1863 = vmatpush1.bf16.msra.mxu0 %v1860
        %1864 = vmatprep.subr.bf16.mxu0 0
        %1865 = vmatpush1.bf16.msra.mxu0 0
        %1866 = vmatprep.subr.bf16.mxu0 0
        %1867 = vmatpush1.bf16.msra.mxu0 0
        %1868 = vmatprep.subr.bf16.mxu0 0
        %1869 = vmatpush1.bf16.msra.mxu0 0
        %1870 = vmatprep.subr.bf16.mxu0 0
        %1871 = vmatpush1.bf16.msra.mxu0 0
        %1872 = vmatprep.subr.bf16.mxu0 0
        %1873 = vmatpush1.bf16.msra.mxu0 0
        %1874 = vmatprep.subr.bf16.mxu0 0
        %1875 = vmatpush1.bf16.msra.mxu0 0
        %1876 = vmatprep.subr.bf16.mxu0 0
        %1877 = vmatpush1.bf16.msra.mxu0 0
        %1878 = vmatprep.subr.bf16.mxu0 0
        %1879 = vmatpush1.bf16.msra.mxu0 0
        %1880 = vmatprep.subr.bf16.mxu0 0
        %1881 = vmatpush1.bf16.msra.mxu0 0
        %1882 = vmatprep.subr.bf16.mxu0 0
        %1883 = vmatpush1.bf16.msra.mxu0 0
        %1884 = vmatprep.subr.bf16.mxu0 0
        %1885 = vmatpush1.bf16.msra.mxu0 0
        %1886 = vmatprep.subr.bf16.mxu0 0
        %1887 = vmatpush1.bf16.msra.mxu0 0
        %1888 = vmatprep.subr.bf16.mxu0 0
        %1889 = vmatpush1.bf16.msra.mxu0 0
        %1890 = vmatprep.subr.bf16.mxu0 0
        %1891 = vmatpush1.bf16.msra.mxu0 0
        %1892 = vmatprep.subr.bf16.mxu0 0
        %1893 = vmatpush1.bf16.msra.mxu0 0
        %1894 = vmatprep.mubr.bf16.mxu0 0
        %1895 = vmatmul.mubr.bf16.gmra.mrb[0].mxu0 %v1857
        %v1896 = vpop.f32.mrb[0].mxu0
        %v1897 = vadd.f32 0.0, %v1896
        %v1898 = vpop.f32.mrb[0].mxu0
        %v1899 = vpop.f32.mrb[0].mxu0
        %v1900 = vpop.f32.mrb[0].mxu0
        %1901 = vdwg.mxu0
        %v1903 = vrot.slane %v1897, 1
        %v1905 = vadd.f32 %v1897, %v1903
        %v1906 = vxor.u32 %v1905, 2147483648
        %v1907 = vmul.f32 %v1906, 1.442695
        %v1908 = vpow.pop %v1907
        %v1909 = vadd.f32 %v1908, 1.0
        %v1910 = vrcp.pop %v1909
        %v1911 = vmul.f32 1.0, %v1910
        %v1912 = vlaneseq
        %v1913 = vshrl.u32 %v1912, 7
        %v1914 = vsub.s32 0, %v1913
        %v1915 = vrot.slane %v1911, %v1914
        %v1916 = vmul.f32 %v1716, %v1915
        %v1917 = vmul.f32 %v1719, %v1915
        %v1918 = vmul.f32 %v1724, %v1915
        %v1919 = vmul.f32 %v1727, %v1915
        %v1920 = vmul.f32 %v1732, %v1915
        %v1921 = vmul.f32 %v1735, %v1915
        %v1922 = vmul.f32 %v1740, %v1915
        %v1923 = vmul.f32 %v1743, %v1915
        %v1924 = vsel %vm428, %v1916, 0.0
        %1925 = vadd.xlane.f32.xlu0 %v1924
        %v1926 = vpop.xlane.xlu0 %1925
        %v1927 = vsel %vm428, %v1917, 0.0
        %1928 = vadd.xlane.f32.xlu0 %v1927
        %v1929 = vpop.xlane.xlu0 %1928
        %v1930 = vsel %vm428, %v1918, 0.0
        %1931 = vadd.xlane.f32.xlu0 %v1930
        %v1932 = vpop.xlane.xlu0 %1931
        %v1933 = vsel %vm428, %v1919, 0.0
        %1934 = vadd.xlane.f32.xlu0 %v1933
        %v1935 = vpop.xlane.xlu0 %1934
        %v1936 = vsel %vm428, %v1920, 0.0
        %1937 = vadd.xlane.f32.xlu0 %v1936
        %v1938 = vpop.xlane.xlu0 %1937
        %v1939 = vsel %vm428, %v1921, 0.0
        %1940 = vadd.xlane.f32.xlu0 %v1939
        %v1941 = vpop.xlane.xlu0 %1940
        %v1942 = vsel %vm428, %v1922, 0.0
        %1943 = vadd.xlane.f32.xlu0 %v1942
        %v1944 = vpop.xlane.xlu0 %1943
        %v1945 = vsel %vm428, %v1923, 0.0
        %1946 = vadd.xlane.f32.xlu0 %v1945
        %v1947 = vpop.xlane.xlu0 %1946
        %v1948 = vrcp.pop 32.0
        %v1949 = vmul.f32 %v1926, %v1948
        %v1950 = vmul.f32 %v1929, %v1948
        %v1951 = vmul.f32 %v1932, %v1948
        %v1952 = vmul.f32 %v1935, %v1948
        %v1953 = vmul.f32 %v1938, %v1948
        %v1954 = vmul.f32 %v1941, %v1948
        %v1955 = vmul.f32 %v1944, %v1948
        %v1956 = vmul.f32 %v1947, %v1948
        %v1957 = vsel %vm428, %v1916, -inf
        %1958 = vmax.xlane.f32.xlu0 %v1957
        %v1959 = vpop.xlane.xlu0 %1958
        %v1960 = vsel %vm428, %v1917, -inf
        %1961 = vmax.xlane.f32.xlu0 %v1960
        %v1962 = vpop.xlane.xlu0 %1961
        %v1963 = vsel %vm428, %v1918, -inf
        %1964 = vmax.xlane.f32.xlu0 %v1963
        %v1965 = vpop.xlane.xlu0 %1964
        %v1966 = vsel %vm428, %v1919, -inf
        %1967 = vmax.xlane.f32.xlu0 %v1966
        %v1968 = vpop.xlane.xlu0 %1967
        %v1969 = vsel %vm428, %v1920, -inf
        %1970 = vmax.xlane.f32.xlu0 %v1969
        %v1971 = vpop.xlane.xlu0 %1970
        %v1972 = vsel %vm428, %v1921, -inf
        %1973 = vmax.xlane.f32.xlu0 %v1972
        %v1974 = vpop.xlane.xlu0 %1973
        %v1975 = vsel %vm428, %v1922, -inf
        %1976 = vmax.xlane.f32.xlu0 %v1975
        %v1977 = vpop.xlane.xlu0 %1976
        %v1978 = vsel %vm428, %v1923, -inf
        %1979 = vmax.xlane.f32.xlu0 %v1978
        %v1980 = vpop.xlane.xlu0 %1979
        %vm1981 = vcmask 108544
        %1982 = vst.msk [vmem:[#allocation3] sm:$0x7] %vm1981, 0.0
        %1983 = vst.msk [vmem:[#allocation3 + $0xb] sm:$0x7] %vm1981, 0.0
        %vm1984 = vcmask 23552
        %1985 = vst.msk [vmem:[#allocation3] sm:$0xff] %vm1984, 0.0
        %vm1986 = vcmask 21504
        %1987 = vst.msk [vmem:[#allocation3 + $0x8] sm:$0x3f] %vm1986, 0.0
        %vm1988 = vcmask 113752
        %1989 = vst.msk [vmem:[#allocation3] sm:$0xff] %vm1988, 0.0
        %vm1990 = vcmask 111704
        %1991 = vst.msk [vmem:[#allocation3 + $0x8] sm:$0x3f] %vm1990, 0.0
        %1992 = vst.msk [vmem:[#allocation4] sm:$0x7] %vm1981, 0.0
        %1993 = vst.msk [vmem:[#allocation4 + $0xb] sm:$0x7] %vm1981, 0.0
        %1994 = vst.msk [vmem:[#allocation4] sm:$0xff] %vm1984, 0.0
        %1995 = vst.msk [vmem:[#allocation4 + $0x8] sm:$0x3f] %vm1986, 0.0
        %1996 = vst.msk [vmem:[#allocation4] sm:$0xff] %vm1988, 0.0
        %1997 = vst.msk [vmem:[#allocation4 + $0x8] sm:$0x3f] %vm1990, 0.0
        %v2006 = vlaneseq
        %v2007 = vand.u32 %v2006, 127
        %v2008 = vadd.s32 %v2007, 4294967293
        %v2009 = vlaneseq
        %v2010 = vshrl.u32 %v2009, 7
        %v2011 = vsub.s32 %v2008, %v2010
        %v2012 = vrot.slane %v1949, %v2011
        %v2013 = vlaneseq
        %v2014 = vshrl.u32 %v2013, 7
        %v2015 = vsub.s32 %v2008, %v2014
        %v2016 = vrot.slane %v1950, %v2015
        %v2017 = vlaneseq
        %v2018 = vshrl.u32 %v2017, 7
        %v2019 = vsub.s32 %v2008, %v2018
        %v2020 = vrot.slane %v1951, %v2019
        %v2021 = vlaneseq
        %v2022 = vshrl.u32 %v2021, 7
        %v2023 = vsub.s32 %v2008, %v2022
        %v2024 = vrot.slane %v1952, %v2023
        %v2025 = vlaneseq
        %v2026 = vshrl.u32 %v2025, 7
        %v2027 = vsub.s32 %v2008, %v2026
        %v2028 = vrot.slane %v1953, %v2027
        %v2029 = vlaneseq
        %v2030 = vshrl.u32 %v2029, 7
        %v2031 = vsub.s32 %v2008, %v2030
        %v2032 = vrot.slane %v1954, %v2031
        %v2033 = vlaneseq
        %v2034 = vshrl.u32 %v2033, 7
        %v2035 = vsub.s32 %v2008, %v2034
        %v2036 = vrot.slane %v1955, %v2035
        %v2037 = vlaneseq
        %v2038 = vshrl.u32 %v2037, 7
        %v2039 = vsub.s32 %v2008, %v2038
        %v2040 = vrot.slane %v1956, %v2039
        %vm2041 = vcmask 1041409
        %v2042 = vsel %vm2041, %v2016, %v2012
        %vm2043 = vcmask 1042434
        %v2044 = vsel %vm2043, %v2020, %v2042
        %vm2045 = vcmask 1043459
        %v2046 = vsel %vm2045, %v2024, %v2044
        %vm2047 = vcmask 1044484
        %v2048 = vsel %vm2047, %v2028, %v2046
        %vm2049 = vcmask 1045509
        %v2050 = vsel %vm2049, %v2032, %v2048
        %vm2051 = vcmask 1046534
        %v2052 = vsel %vm2051, %v2036, %v2050
        %vm2053 = vcmask 1047559
        %v2054 = vsel %vm2053, %v2040, %v2052
        %vm2056 = vcmask 89112
        %2057 = vst.msk [vmem:[#allocation3 + $0x3] sm:$0xff] %vm2056, %v2054
        %v2066 = vlaneseq
        %v2067 = vshrl.u32 %v2066, 7
        %v2068 = vsub.s32 %v2008, %v2067
        %v2069 = vrot.slane %v1959, %v2068
        %v2070 = vlaneseq
        %v2071 = vshrl.u32 %v2070, 7
        %v2072 = vsub.s32 %v2008, %v2071
        %v2073 = vrot.slane %v1962, %v2072
        %v2074 = vlaneseq
        %v2075 = vshrl.u32 %v2074, 7
        %v2076 = vsub.s32 %v2008, %v2075
        %v2077 = vrot.slane %v1965, %v2076
        %v2078 = vlaneseq
        %v2079 = vshrl.u32 %v2078, 7
        %v2080 = vsub.s32 %v2008, %v2079
        %v2081 = vrot.slane %v1968, %v2080
        %v2082 = vlaneseq
        %v2083 = vshrl.u32 %v2082, 7
        %v2084 = vsub.s32 %v2008, %v2083
        %v2085 = vrot.slane %v1971, %v2084
        %v2086 = vlaneseq
        %v2087 = vshrl.u32 %v2086, 7
        %v2088 = vsub.s32 %v2008, %v2087
        %v2089 = vrot.slane %v1974, %v2088
        %v2090 = vlaneseq
        %v2091 = vshrl.u32 %v2090, 7
        %v2092 = vsub.s32 %v2008, %v2091
        %v2093 = vrot.slane %v1977, %v2092
        %v2094 = vlaneseq
        %v2095 = vshrl.u32 %v2094, 7
        %v2096 = vsub.s32 %v2008, %v2095
        %v2097 = vrot.slane %v1980, %v2096
        %v2098 = vsel %vm2041, %v2073, %v2069
        %v2099 = vsel %vm2043, %v2077, %v2098
        %v2100 = vsel %vm2045, %v2081, %v2099
        %v2101 = vsel %vm2047, %v2085, %v2100
        %v2102 = vsel %vm2049, %v2089, %v2101
        %v2103 = vsel %vm2051, %v2093, %v2102
        %v2104 = vsel %vm2053, %v2097, %v2103
        %2106 = vst.msk [vmem:[#allocation4 + $0x3] sm:$0xff] %vm2056, %v2104
        %v2107 = vld [vmem:[#allocation3] sm:$0xff]
        %v2108 = vld [vmem:[#allocation3 + $0x8] sm:$0x3f]
        %v2109 = vld [vmem:[#allocation4] sm:$0xff]
        %v2110 = vld [vmem:[#allocation4 + $0x8] sm:$0x3f]
        %s2111 = sld [smem:[#allocation9]]
        %v2112 = vstv %s2111
        %v2113 = vmul.f32 %v2112, %v2107
        %v2114 = vadd.f32 %v2113, 0.0
        %s2115 = sld [smem:[#allocation9 + $0x31]]
        %v2116 = vstv %s2115
        %v2117 = vmul.f32 %v2116, %v2109
        %v2118 = vadd.f32 %v2114, %v2117
        %s2119 = sld [smem:[#allocation9 + $0x1]]
        %v2120 = vstv %s2119
        %v2121 = vmul.f32 %v2120, %v2107
        %2123 = vrot.lane.b32.xlu0 %v2121, 127
        %v2124 = vpop.permute.xlu0 %2123
        %v2126 = vadd.f32 %v2118, %v2124
        %s2127 = sld [smem:[#allocation9 + $0x32]]
        %v2128 = vstv %s2127
        %v2129 = vmul.f32 %v2128, %v2109
        %2131 = vrot.lane.b32.xlu0 %v2129, 127
        %v2132 = vpop.permute.xlu0 %2131
        %v2134 = vadd.f32 %v2126, %v2132
        %s2135 = sld [smem:[#allocation9 + $0x2]]
        %v2136 = vstv %s2135
        %v2137 = vmul.f32 %v2136, %v2107
        %2139 = vrot.lane.b32.xlu0 %v2137, 126
        %v2140 = vpop.permute.xlu0 %2139
        %v2142 = vadd.f32 %v2134, %v2140
        %s2143 = sld [smem:[#allocation9 + $0x33]]
        %v2144 = vstv %s2143
        %v2145 = vmul.f32 %v2144, %v2109
        %2147 = vrot.lane.b32.xlu0 %v2145, 126
        %v2148 = vpop.permute.xlu0 %2147
        %v2150 = vadd.f32 %v2142, %v2148
        %s2151 = sld [smem:[#allocation9 + $0x3]]
        %v2152 = vstv %s2151
        %v2153 = vmul.f32 %v2152, %v2107
        %2155 = vrot.lane.b32.xlu0 %v2153, 125
        %v2156 = vpop.permute.xlu0 %2155
        %v2158 = vadd.f32 %v2150, %v2156
        %s2159 = sld [smem:[#allocation9 + $0x34]]
        %v2160 = vstv %s2159
        %v2161 = vmul.f32 %v2160, %v2109
        %2163 = vrot.lane.b32.xlu0 %v2161, 125
        %v2164 = vpop.permute.xlu0 %2163
        %v2166 = vadd.f32 %v2158, %v2164
        %s2167 = sld [smem:[#allocation9 + $0x4]]
        %v2168 = vstv %s2167
        %v2169 = vmul.f32 %v2168, %v2107
        %2171 = vrot.lane.b32.xlu0 %v2169, 124
        %v2172 = vpop.permute.xlu0 %2171
        %v2174 = vadd.f32 %v2166, %v2172
        %s2175 = sld [smem:[#allocation9 + $0x35]]
        %v2176 = vstv %s2175
        %v2177 = vmul.f32 %v2176, %v2109
        %2179 = vrot.lane.b32.xlu0 %v2177, 124
        %v2180 = vpop.permute.xlu0 %2179
        %v2182 = vadd.f32 %v2174, %v2180
        %s2183 = sld [smem:[#allocation9 + $0x5]]
        %v2184 = vstv %s2183
        %v2185 = vmul.f32 %v2184, %v2107
        %2187 = vrot.lane.b32.xlu0 %v2185, 123
        %v2188 = vpop.permute.xlu0 %2187
        %v2190 = vadd.f32 %v2182, %v2188
        %s2191 = sld [smem:[#allocation9 + $0x36]]
        %v2192 = vstv %s2191
        %v2193 = vmul.f32 %v2192, %v2109
        %2195 = vrot.lane.b32.xlu0 %v2193, 123
        %v2196 = vpop.permute.xlu0 %2195
        %v2198 = vadd.f32 %v2190, %v2196
        %s2199 = sld [smem:[#allocation9 + $0x6]]
        %v2200 = vstv %s2199
        %v2201 = vmul.f32 %v2200, %v2107
        %2203 = vrot.lane.b32.xlu0 %v2201, 122
        %v2204 = vpop.permute.xlu0 %2203
        %v2206 = vadd.f32 %v2198, %v2204
        %s2207 = sld [smem:[#allocation9 + $0x37]]
        %v2208 = vstv %s2207
        %v2209 = vmul.f32 %v2208, %v2109
        %2211 = vrot.lane.b32.xlu0 %v2209, 122
        %v2212 = vpop.permute.xlu0 %2211
        %v2214 = vadd.f32 %v2206, %v2212
        %s2215 = sld [smem:[#allocation9 + $0x7]]
        %v2216 = vstv %s2215
        %v2217 = vmul.f32 %v2216, %v2107
        %v2218 = vmul.f32 %v2216, %v2108
        %vm2221 = vcmask 1046528
        %v2222 = vrot.slane %v2217, 1
        %v2223 = vrot.slane %v2218, 1
        %v2224 = vsel %vm2221, %v2222, %v2223
        %v2226 = vadd.f32 %v2214, %v2224
        %s2227 = sld [smem:[#allocation9 + $0x38]]
        %v2228 = vstv %s2227
        %v2229 = vmul.f32 %v2228, %v2109
        %v2230 = vmul.f32 %v2228, %v2110
        %v2233 = vrot.slane %v2229, 1
        %v2234 = vrot.slane %v2230, 1
        %v2235 = vsel %vm2221, %v2233, %v2234
        %v2237 = vadd.f32 %v2226, %v2235
        %s2238 = sld [smem:[#allocation9 + $0x8]]
        %v2239 = vstv %s2238
        %v2240 = vmul.f32 %v2239, %v2107
        %v2241 = vmul.f32 %v2239, %v2108
        %v2244 = vrot.slane %v2240, 1
        %v2245 = vrot.slane %v2241, 1
        %v2246 = vsel %vm2221, %v2244, %v2245
        %2247 = vrot.lane.b32.xlu0 %v2246, 127
        %v2248 = vpop.permute.xlu0 %2247
        %v2250 = vadd.f32 %v2237, %v2248
        %s2251 = sld [smem:[#allocation9 + $0x39]]
        %v2252 = vstv %s2251
        %v2253 = vmul.f32 %v2252, %v2109
        %v2254 = vmul.f32 %v2252, %v2110
        %v2257 = vrot.slane %v2253, 1
        %v2258 = vrot.slane %v2254, 1
        %v2259 = vsel %vm2221, %v2257, %v2258
        %2260 = vrot.lane.b32.xlu0 %v2259, 127
        %v2261 = vpop.permute.xlu0 %2260
        %v2263 = vadd.f32 %v2250, %v2261
        %s2264 = sld [smem:[#allocation9 + $0x9]]
        %v2265 = vstv %s2264
        %v2266 = vmul.f32 %v2265, %v2107
        %v2267 = vmul.f32 %v2265, %v2108
        %v2270 = vrot.slane %v2266, 1
        %v2271 = vrot.slane %v2267, 1
        %v2272 = vsel %vm2221, %v2270, %v2271
        %2273 = vrot.lane.b32.xlu0 %v2272, 126
        %v2274 = vpop.permute.xlu0 %2273
        %v2276 = vadd.f32 %v2263, %v2274
        %s2277 = sld [smem:[#allocation9 + $0x3a]]
        %v2278 = vstv %s2277
        %v2279 = vmul.f32 %v2278, %v2109
        %v2280 = vmul.f32 %v2278, %v2110
        %v2283 = vrot.slane %v2279, 1
        %v2284 = vrot.slane %v2280, 1
        %v2285 = vsel %vm2221, %v2283, %v2284
        %2286 = vrot.lane.b32.xlu0 %v2285, 126
        %v2287 = vpop.permute.xlu0 %2286
        %v2289 = vadd.f32 %v2276, %v2287
        %s2290 = sld [smem:[#allocation9 + $0xa]]
        %v2291 = vstv %s2290
        %v2292 = vmul.f32 %v2291, %v2107
        %v2293 = vmul.f32 %v2291, %v2108
        %v2296 = vrot.slane %v2292, 1
        %v2297 = vrot.slane %v2293, 1
        %v2298 = vsel %vm2221, %v2296, %v2297
        %2299 = vrot.lane.b32.xlu0 %v2298, 125
        %v2300 = vpop.permute.xlu0 %2299
        %v2302 = vadd.f32 %v2289, %v2300
        %s2303 = sld [smem:[#allocation9 + $0x3b]]
        %v2304 = vstv %s2303
        %v2305 = vmul.f32 %v2304, %v2109
        %v2306 = vmul.f32 %v2304, %v2110
        %v2309 = vrot.slane %v2305, 1
        %v2310 = vrot.slane %v2306, 1
        %v2311 = vsel %vm2221, %v2309, %v2310
        %2312 = vrot.lane.b32.xlu0 %v2311, 125
        %v2313 = vpop.permute.xlu0 %2312
        %v2315 = vadd.f32 %v2302, %v2313
        %s2316 = sld [smem:[#allocation9 + $0xb]]
        %v2317 = vstv %s2316
        %v2318 = vmul.f32 %v2317, %v2107
        %v2319 = vmul.f32 %v2317, %v2108
        %v2322 = vrot.slane %v2318, 1
        %v2323 = vrot.slane %v2319, 1
        %v2324 = vsel %vm2221, %v2322, %v2323
        %2325 = vrot.lane.b32.xlu0 %v2324, 124
        %v2326 = vpop.permute.xlu0 %2325
        %v2328 = vadd.f32 %v2315, %v2326
        %s2329 = sld [smem:[#allocation9 + $0x3c]]
        %v2330 = vstv %s2329
        %v2331 = vmul.f32 %v2330, %v2109
        %v2332 = vmul.f32 %v2330, %v2110
        %v2335 = vrot.slane %v2331, 1
        %v2336 = vrot.slane %v2332, 1
        %v2337 = vsel %vm2221, %v2335, %v2336
        %2338 = vrot.lane.b32.xlu0 %v2337, 124
        %v2339 = vpop.permute.xlu0 %2338
        %v2341 = vadd.f32 %v2328, %v2339
        %s2342 = sld [smem:[#allocation9 + $0xc]]
        %v2343 = vstv %s2342
        %v2344 = vmul.f32 %v2343, %v2107
        %v2345 = vmul.f32 %v2343, %v2108
        %v2348 = vrot.slane %v2344, 1
        %v2349 = vrot.slane %v2345, 1
        %v2350 = vsel %vm2221, %v2348, %v2349
        %2351 = vrot.lane.b32.xlu0 %v2350, 123
        %v2352 = vpop.permute.xlu0 %2351
        %v2354 = vadd.f32 %v2341, %v2352
        %s2355 = sld [smem:[#allocation9 + $0x3d]]
        %v2356 = vstv %s2355
        %v2357 = vmul.f32 %v2356, %v2109
        %v2358 = vmul.f32 %v2356, %v2110
        %v2361 = vrot.slane %v2357, 1
        %v2362 = vrot.slane %v2358, 1
        %v2363 = vsel %vm2221, %v2361, %v2362
        %2364 = vrot.lane.b32.xlu0 %v2363, 123
        %v2365 = vpop.permute.xlu0 %2364
        %v2367 = vadd.f32 %v2354, %v2365
        %s2368 = sld [smem:[#allocation9 + $0xd]]
        %v2369 = vstv %s2368
        %v2370 = vmul.f32 %v2369, %v2107
        %v2371 = vmul.f32 %v2369, %v2108
        %v2374 = vrot.slane %v2370, 1
        %v2375 = vrot.slane %v2371, 1
        %v2376 = vsel %vm2221, %v2374, %v2375
        %2377 = vrot.lane.b32.xlu0 %v2376, 122
        %v2378 = vpop.permute.xlu0 %2377
        %v2380 = vadd.f32 %v2367, %v2378
        %s2381 = sld [smem:[#allocation9 + $0x3e]]
        %v2382 = vstv %s2381
        %v2383 = vmul.f32 %v2382, %v2109
        %v2384 = vmul.f32 %v2382, %v2110
        %v2387 = vrot.slane %v2383, 1
        %v2388 = vrot.slane %v2384, 1
        %v2389 = vsel %vm2221, %v2387, %v2388
        %2390 = vrot.lane.b32.xlu0 %v2389, 122
        %v2391 = vpop.permute.xlu0 %2390
        %v2393 = vadd.f32 %v2380, %v2391
        %s2394 = sld [smem:[#allocation9 + $0xe]]
        %v2395 = vstv %s2394
        %v2396 = vmul.f32 %v2395, %v2107
        %v2397 = vmul.f32 %v2395, %v2108
        %vm2400 = vcmask 1045504
        %v2401 = vrot.slane %v2396, 2
        %v2402 = vrot.slane %v2397, 2
        %v2403 = vsel %vm2400, %v2401, %v2402
        %v2405 = vadd.f32 %v2393, %v2403
        %s2406 = sld [smem:[#allocation9 + $0x3f]]
        %v2407 = vstv %s2406
        %v2408 = vmul.f32 %v2407, %v2109
        %v2409 = vmul.f32 %v2407, %v2110
        %v2412 = vrot.slane %v2408, 2
        %v2413 = vrot.slane %v2409, 2
        %v2414 = vsel %vm2400, %v2412, %v2413
        %v2416 = vadd.f32 %v2405, %v2414
        %s2417 = sld [smem:[#allocation9 + $0xf]]
        %v2418 = vstv %s2417
        %v2419 = vmul.f32 %v2418, %v2107
        %v2420 = vmul.f32 %v2418, %v2108
        %v2423 = vrot.slane %v2419, 2
        %v2424 = vrot.slane %v2420, 2
        %v2425 = vsel %vm2400, %v2423, %v2424
        %2426 = vrot.lane.b32.xlu0 %v2425, 127
        %v2427 = vpop.permute.xlu0 %2426
        %v2429 = vadd.f32 %v2416, %v2427
        %s2430 = sld [smem:[#allocation9 + $0x40]]
        %v2431 = vstv %s2430
        %v2432 = vmul.f32 %v2431, %v2109
        %v2433 = vmul.f32 %v2431, %v2110
        %v2436 = vrot.slane %v2432, 2
        %v2437 = vrot.slane %v2433, 2
        %v2438 = vsel %vm2400, %v2436, %v2437
        %2439 = vrot.lane.b32.xlu0 %v2438, 127
        %v2440 = vpop.permute.xlu0 %2439
        %v2442 = vadd.f32 %v2429, %v2440
        %s2443 = sld [smem:[#allocation9 + $0x10]]
        %v2444 = vstv %s2443
        %v2445 = vmul.f32 %v2444, %v2107
        %v2446 = vmul.f32 %v2444, %v2108
        %v2449 = vrot.slane %v2445, 2
        %v2450 = vrot.slane %v2446, 2
        %v2451 = vsel %vm2400, %v2449, %v2450
        %2452 = vrot.lane.b32.xlu0 %v2451, 126
        %v2453 = vpop.permute.xlu0 %2452
        %v2455 = vadd.f32 %v2442, %v2453
        %s2456 = sld [smem:[#allocation9 + $0x41]]
        %v2457 = vstv %s2456
        %v2458 = vmul.f32 %v2457, %v2109
        %v2459 = vmul.f32 %v2457, %v2110
        %v2462 = vrot.slane %v2458, 2
        %v2463 = vrot.slane %v2459, 2
        %v2464 = vsel %vm2400, %v2462, %v2463
        %2465 = vrot.lane.b32.xlu0 %v2464, 126
        %v2466 = vpop.permute.xlu0 %2465
        %v2468 = vadd.f32 %v2455, %v2466
        %s2469 = sld [smem:[#allocation9 + $0x11]]
        %v2470 = vstv %s2469
        %v2471 = vmul.f32 %v2470, %v2107
        %v2472 = vmul.f32 %v2470, %v2108
        %v2475 = vrot.slane %v2471, 2
        %v2476 = vrot.slane %v2472, 2
        %v2477 = vsel %vm2400, %v2475, %v2476
        %2478 = vrot.lane.b32.xlu0 %v2477, 125
        %v2479 = vpop.permute.xlu0 %2478
        %v2481 = vadd.f32 %v2468, %v2479
        %s2482 = sld [smem:[#allocation9 + $0x42]]
        %v2483 = vstv %s2482
        %v2484 = vmul.f32 %v2483, %v2109
        %v2485 = vmul.f32 %v2483, %v2110
        %v2488 = vrot.slane %v2484, 2
        %v2489 = vrot.slane %v2485, 2
        %v2490 = vsel %vm2400, %v2488, %v2489
        %2491 = vrot.lane.b32.xlu0 %v2490, 125
        %v2492 = vpop.permute.xlu0 %2491
        %v2494 = vadd.f32 %v2481, %v2492
        %s2495 = sld [smem:[#allocation9 + $0x12]]
        %v2496 = vstv %s2495
        %v2497 = vmul.f32 %v2496, %v2107
        %v2498 = vmul.f32 %v2496, %v2108
        %v2501 = vrot.slane %v2497, 2
        %v2502 = vrot.slane %v2498, 2
        %v2503 = vsel %vm2400, %v2501, %v2502
        %2504 = vrot.lane.b32.xlu0 %v2503, 124
        %v2505 = vpop.permute.xlu0 %2504
        %v2507 = vadd.f32 %v2494, %v2505
        %s2508 = sld [smem:[#allocation9 + $0x43]]
        %v2509 = vstv %s2508
        %v2510 = vmul.f32 %v2509, %v2109
        %v2511 = vmul.f32 %v2509, %v2110
        %v2514 = vrot.slane %v2510, 2
        %v2515 = vrot.slane %v2511, 2
        %v2516 = vsel %vm2400, %v2514, %v2515
        %2517 = vrot.lane.b32.xlu0 %v2516, 124
        %v2518 = vpop.permute.xlu0 %2517
        %v2520 = vadd.f32 %v2507, %v2518
        %s2521 = sld [smem:[#allocation9 + $0x13]]
        %v2522 = vstv %s2521
        %v2523 = vmul.f32 %v2522, %v2107
        %v2524 = vmul.f32 %v2522, %v2108
        %v2527 = vrot.slane %v2523, 2
        %v2528 = vrot.slane %v2524, 2
        %v2529 = vsel %vm2400, %v2527, %v2528
        %2530 = vrot.lane.b32.xlu0 %v2529, 123
        %v2531 = vpop.permute.xlu0 %2530
        %v2533 = vadd.f32 %v2520, %v2531
        %s2534 = sld [smem:[#allocation9 + $0x44]]
        %v2535 = vstv %s2534
        %v2536 = vmul.f32 %v2535, %v2109
        %v2537 = vmul.f32 %v2535, %v2110
        %v2540 = vrot.slane %v2536, 2
        %v2541 = vrot.slane %v2537, 2
        %v2542 = vsel %vm2400, %v2540, %v2541
        %2543 = vrot.lane.b32.xlu0 %v2542, 123
        %v2544 = vpop.permute.xlu0 %2543
        %v2546 = vadd.f32 %v2533, %v2544
        %s2547 = sld [smem:[#allocation9 + $0x14]]
        %v2548 = vstv %s2547
        %v2549 = vmul.f32 %v2548, %v2107
        %v2550 = vmul.f32 %v2548, %v2108
        %v2553 = vrot.slane %v2549, 2
        %v2554 = vrot.slane %v2550, 2
        %v2555 = vsel %vm2400, %v2553, %v2554
        %2556 = vrot.lane.b32.xlu0 %v2555, 122
        %v2557 = vpop.permute.xlu0 %2556
        %v2559 = vadd.f32 %v2546, %v2557
        %s2560 = sld [smem:[#allocation9 + $0x45]]
        %v2561 = vstv %s2560
        %v2562 = vmul.f32 %v2561, %v2109
        %v2563 = vmul.f32 %v2561, %v2110
        %v2566 = vrot.slane %v2562, 2
        %v2567 = vrot.slane %v2563, 2
        %v2568 = vsel %vm2400, %v2566, %v2567
        %2569 = vrot.lane.b32.xlu0 %v2568, 122
        %v2570 = vpop.permute.xlu0 %2569
        %v2572 = vadd.f32 %v2559, %v2570
        %s2573 = sld [smem:[#allocation9 + $0x15]]
        %v2574 = vstv %s2573
        %v2575 = vmul.f32 %v2574, %v2107
        %v2576 = vmul.f32 %v2574, %v2108
        %vm2579 = vcmask 1044480
        %v2580 = vrot.slane %v2575, 3
        %v2581 = vrot.slane %v2576, 3
        %v2582 = vsel %vm2579, %v2580, %v2581
        %v2584 = vadd.f32 %v2572, %v2582
        %s2585 = sld [smem:[#allocation9 + $0x46]]
        %v2586 = vstv %s2585
        %v2587 = vmul.f32 %v2586, %v2109
        %v2588 = vmul.f32 %v2586, %v2110
        %v2591 = vrot.slane %v2587, 3
        %v2592 = vrot.slane %v2588, 3
        %v2593 = vsel %vm2579, %v2591, %v2592
        %v2595 = vadd.f32 %v2584, %v2593
        %s2596 = sld [smem:[#allocation9 + $0x16]]
        %v2597 = vstv %s2596
        %v2598 = vmul.f32 %v2597, %v2107
        %v2599 = vmul.f32 %v2597, %v2108
        %v2602 = vrot.slane %v2598, 3
        %v2603 = vrot.slane %v2599, 3
        %v2604 = vsel %vm2579, %v2602, %v2603
        %2605 = vrot.lane.b32.xlu0 %v2604, 127
        %v2606 = vpop.permute.xlu0 %2605
        %v2608 = vadd.f32 %v2595, %v2606
        %s2609 = sld [smem:[#allocation9 + $0x47]]
        %v2610 = vstv %s2609
        %v2611 = vmul.f32 %v2610, %v2109
        %v2612 = vmul.f32 %v2610, %v2110
        %v2615 = vrot.slane %v2611, 3
        %v2616 = vrot.slane %v2612, 3
        %v2617 = vsel %vm2579, %v2615, %v2616
        %2618 = vrot.lane.b32.xlu0 %v2617, 127
        %v2619 = vpop.permute.xlu0 %2618
        %v2621 = vadd.f32 %v2608, %v2619
        %s2622 = sld [smem:[#allocation9 + $0x17]]
        %v2623 = vstv %s2622
        %v2624 = vmul.f32 %v2623, %v2107
        %v2625 = vmul.f32 %v2623, %v2108
        %v2628 = vrot.slane %v2624, 3
        %v2629 = vrot.slane %v2625, 3
        %v2630 = vsel %vm2579, %v2628, %v2629
        %2631 = vrot.lane.b32.xlu0 %v2630, 126
        %v2632 = vpop.permute.xlu0 %2631
        %v2634 = vadd.f32 %v2621, %v2632
        %s2635 = sld [smem:[#allocation9 + $0x48]]
        %v2636 = vstv %s2635
        %v2637 = vmul.f32 %v2636, %v2109
        %v2638 = vmul.f32 %v2636, %v2110
        %v2641 = vrot.slane %v2637, 3
        %v2642 = vrot.slane %v2638, 3
        %v2643 = vsel %vm2579, %v2641, %v2642
        %2644 = vrot.lane.b32.xlu0 %v2643, 126
        %v2645 = vpop.permute.xlu0 %2644
        %v2647 = vadd.f32 %v2634, %v2645
        %s2648 = sld [smem:[#allocation9 + $0x18]]
        %v2649 = vstv %s2648
        %v2650 = vmul.f32 %v2649, %v2107
        %v2651 = vmul.f32 %v2649, %v2108
        %v2654 = vrot.slane %v2650, 3
        %v2655 = vrot.slane %v2651, 3
        %v2656 = vsel %vm2579, %v2654, %v2655
        %2657 = vrot.lane.b32.xlu0 %v2656, 125
        %v2658 = vpop.permute.xlu0 %2657
        %v2660 = vadd.f32 %v2647, %v2658
        %s2661 = sld [smem:[#allocation9 + $0x49]]
        %v2662 = vstv %s2661
        %v2663 = vmul.f32 %v2662, %v2109
        %v2664 = vmul.f32 %v2662, %v2110
        %v2667 = vrot.slane %v2663, 3
        %v2668 = vrot.slane %v2664, 3
        %v2669 = vsel %vm2579, %v2667, %v2668
        %2670 = vrot.lane.b32.xlu0 %v2669, 125
        %v2671 = vpop.permute.xlu0 %2670
        %v2673 = vadd.f32 %v2660, %v2671
        %s2674 = sld [smem:[#allocation9 + $0x19]]
        %v2675 = vstv %s2674
        %v2676 = vmul.f32 %v2675, %v2107
        %v2677 = vmul.f32 %v2675, %v2108
        %v2680 = vrot.slane %v2676, 3
        %v2681 = vrot.slane %v2677, 3
        %v2682 = vsel %vm2579, %v2680, %v2681
        %2683 = vrot.lane.b32.xlu0 %v2682, 124
        %v2684 = vpop.permute.xlu0 %2683
        %v2686 = vadd.f32 %v2673, %v2684
        %s2687 = sld [smem:[#allocation9 + $0x4a]]
        %v2688 = vstv %s2687
        %v2689 = vmul.f32 %v2688, %v2109
        %v2690 = vmul.f32 %v2688, %v2110
        %v2693 = vrot.slane %v2689, 3
        %v2694 = vrot.slane %v2690, 3
        %v2695 = vsel %vm2579, %v2693, %v2694
        %2696 = vrot.lane.b32.xlu0 %v2695, 124
        %v2697 = vpop.permute.xlu0 %2696
        %v2699 = vadd.f32 %v2686, %v2697
        %s2700 = sld [smem:[#allocation9 + $0x1a]]
        %v2701 = vstv %s2700
        %v2702 = vmul.f32 %v2701, %v2107
        %v2703 = vmul.f32 %v2701, %v2108
        %v2706 = vrot.slane %v2702, 3
        %v2707 = vrot.slane %v2703, 3
        %v2708 = vsel %vm2579, %v2706, %v2707
        %2709 = vrot.lane.b32.xlu0 %v2708, 123
        %v2710 = vpop.permute.xlu0 %2709
        %v2712 = vadd.f32 %v2699, %v2710
        %s2713 = sld [smem:[#allocation9 + $0x4b]]
        %v2714 = vstv %s2713
        %v2715 = vmul.f32 %v2714, %v2109
        %v2716 = vmul.f32 %v2714, %v2110
        %v2719 = vrot.slane %v2715, 3
        %v2720 = vrot.slane %v2716, 3
        %v2721 = vsel %vm2579, %v2719, %v2720
        %2722 = vrot.lane.b32.xlu0 %v2721, 123
        %v2723 = vpop.permute.xlu0 %2722
        %v2725 = vadd.f32 %v2712, %v2723
        %s2726 = sld [smem:[#allocation9 + $0x1b]]
        %v2727 = vstv %s2726
        %v2728 = vmul.f32 %v2727, %v2107
        %v2729 = vmul.f32 %v2727, %v2108
        %v2732 = vrot.slane %v2728, 3
        %v2733 = vrot.slane %v2729, 3
        %v2734 = vsel %vm2579, %v2732, %v2733
        %2735 = vrot.lane.b32.xlu0 %v2734, 122
        %v2736 = vpop.permute.xlu0 %2735
        %v2738 = vadd.f32 %v2725, %v2736
        %s2739 = sld [smem:[#allocation9 + $0x4c]]
        %v2740 = vstv %s2739
        %v2741 = vmul.f32 %v2740, %v2109
        %v2742 = vmul.f32 %v2740, %v2110
        %v2745 = vrot.slane %v2741, 3
        %v2746 = vrot.slane %v2742, 3
        %v2747 = vsel %vm2579, %v2745, %v2746
        %2748 = vrot.lane.b32.xlu0 %v2747, 122
        %v2749 = vpop.permute.xlu0 %2748
        %v2751 = vadd.f32 %v2738, %v2749
        %s2752 = sld [smem:[#allocation9 + $0x1c]]
        %v2753 = vstv %s2752
        %v2754 = vmul.f32 %v2753, %v2107
        %v2755 = vmul.f32 %v2753, %v2108
        %v2758 = vrot.slane %v2754, 4
        %v2759 = vrot.slane %v2755, 4
        %v2760 = vsel %vm763, %v2758, %v2759
        %v2762 = vadd.f32 %v2751, %v2760
        %s2763 = sld [smem:[#allocation9 + $0x4d]]
        %v2764 = vstv %s2763
        %v2765 = vmul.f32 %v2764, %v2109
        %v2766 = vmul.f32 %v2764, %v2110
        %v2769 = vrot.slane %v2765, 4
        %v2770 = vrot.slane %v2766, 4
        %v2771 = vsel %vm763, %v2769, %v2770
        %v2773 = vadd.f32 %v2762, %v2771
        %s2774 = sld [smem:[#allocation9 + $0x1d]]
        %v2775 = vstv %s2774
        %v2776 = vmul.f32 %v2775, %v2107
        %v2777 = vmul.f32 %v2775, %v2108
        %v2780 = vrot.slane %v2776, 4
        %v2781 = vrot.slane %v2777, 4
        %v2782 = vsel %vm763, %v2780, %v2781
        %2783 = vrot.lane.b32.xlu0 %v2782, 127
        %v2784 = vpop.permute.xlu0 %2783
        %v2786 = vadd.f32 %v2773, %v2784
        %s2787 = sld [smem:[#allocation9 + $0x4e]]
        %v2788 = vstv %s2787
        %v2789 = vmul.f32 %v2788, %v2109
        %v2790 = vmul.f32 %v2788, %v2110
        %v2793 = vrot.slane %v2789, 4
        %v2794 = vrot.slane %v2790, 4
        %v2795 = vsel %vm763, %v2793, %v2794
        %2796 = vrot.lane.b32.xlu0 %v2795, 127
        %v2797 = vpop.permute.xlu0 %2796
        %v2799 = vadd.f32 %v2786, %v2797
        %s2800 = sld [smem:[#allocation9 + $0x1e]]
        %v2801 = vstv %s2800
        %v2802 = vmul.f32 %v2801, %v2107
        %v2803 = vmul.f32 %v2801, %v2108
        %v2806 = vrot.slane %v2802, 4
        %v2807 = vrot.slane %v2803, 4
        %v2808 = vsel %vm763, %v2806, %v2807
        %2809 = vrot.lane.b32.xlu0 %v2808, 126
        %v2810 = vpop.permute.xlu0 %2809
        %v2812 = vadd.f32 %v2799, %v2810
        %s2813 = sld [smem:[#allocation9 + $0x4f]]
        %v2814 = vstv %s2813
        %v2815 = vmul.f32 %v2814, %v2109
        %v2816 = vmul.f32 %v2814, %v2110
        %v2819 = vrot.slane %v2815, 4
        %v2820 = vrot.slane %v2816, 4
        %v2821 = vsel %vm763, %v2819, %v2820
        %2822 = vrot.lane.b32.xlu0 %v2821, 126
        %v2823 = vpop.permute.xlu0 %2822
        %v2825 = vadd.f32 %v2812, %v2823
        %s2826 = sld [smem:[#allocation9 + $0x1f]]
        %v2827 = vstv %s2826
        %v2828 = vmul.f32 %v2827, %v2107
        %v2829 = vmul.f32 %v2827, %v2108
        %v2832 = vrot.slane %v2828, 4
        %v2833 = vrot.slane %v2829, 4
        %v2834 = vsel %vm763, %v2832, %v2833
        %2835 = vrot.lane.b32.xlu0 %v2834, 125
        %v2836 = vpop.permute.xlu0 %2835
        %v2838 = vadd.f32 %v2825, %v2836
        %s2839 = sld [smem:[#allocation9 + $0x50]]
        %v2840 = vstv %s2839
        %v2841 = vmul.f32 %v2840, %v2109
        %v2842 = vmul.f32 %v2840, %v2110
        %v2845 = vrot.slane %v2841, 4
        %v2846 = vrot.slane %v2842, 4
        %v2847 = vsel %vm763, %v2845, %v2846
        %2848 = vrot.lane.b32.xlu0 %v2847, 125
        %v2849 = vpop.permute.xlu0 %2848
        %v2851 = vadd.f32 %v2838, %v2849
        %s2852 = sld [smem:[#allocation9 + $0x20]]
        %v2853 = vstv %s2852
        %v2854 = vmul.f32 %v2853, %v2107
        %v2855 = vmul.f32 %v2853, %v2108
        %v2858 = vrot.slane %v2854, 4
        %v2859 = vrot.slane %v2855, 4
        %v2860 = vsel %vm763, %v2858, %v2859
        %2861 = vrot.lane.b32.xlu0 %v2860, 124
        %v2862 = vpop.permute.xlu0 %2861
        %v2864 = vadd.f32 %v2851, %v2862
        %s2865 = sld [smem:[#allocation9 + $0x51]]
        %v2866 = vstv %s2865
        %v2867 = vmul.f32 %v2866, %v2109
        %v2868 = vmul.f32 %v2866, %v2110
        %v2871 = vrot.slane %v2867, 4
        %v2872 = vrot.slane %v2868, 4
        %v2873 = vsel %vm763, %v2871, %v2872
        %2874 = vrot.lane.b32.xlu0 %v2873, 124
        %v2875 = vpop.permute.xlu0 %2874
        %v2877 = vadd.f32 %v2864, %v2875
        %s2878 = sld [smem:[#allocation9 + $0x21]]
        %v2879 = vstv %s2878
        %v2880 = vmul.f32 %v2879, %v2107
        %v2881 = vmul.f32 %v2879, %v2108
        %v2884 = vrot.slane %v2880, 4
        %v2885 = vrot.slane %v2881, 4
        %v2886 = vsel %vm763, %v2884, %v2885
        %2887 = vrot.lane.b32.xlu0 %v2886, 123
        %v2888 = vpop.permute.xlu0 %2887
        %v2890 = vadd.f32 %v2877, %v2888
        %s2891 = sld [smem:[#allocation9 + $0x52]]
        %v2892 = vstv %s2891
        %v2893 = vmul.f32 %v2892, %v2109
        %v2894 = vmul.f32 %v2892, %v2110
        %v2897 = vrot.slane %v2893, 4
        %v2898 = vrot.slane %v2894, 4
        %v2899 = vsel %vm763, %v2897, %v2898
        %2900 = vrot.lane.b32.xlu0 %v2899, 123
        %v2901 = vpop.permute.xlu0 %2900
        %v2903 = vadd.f32 %v2890, %v2901
        %s2904 = sld [smem:[#allocation9 + $0x22]]
        %v2905 = vstv %s2904
        %v2906 = vmul.f32 %v2905, %v2107
        %v2907 = vmul.f32 %v2905, %v2108
        %v2910 = vrot.slane %v2906, 4
        %v2911 = vrot.slane %v2907, 4
        %v2912 = vsel %vm763, %v2910, %v2911
        %2913 = vrot.lane.b32.xlu0 %v2912, 122
        %v2914 = vpop.permute.xlu0 %2913
        %v2916 = vadd.f32 %v2903, %v2914
        %s2917 = sld [smem:[#allocation9 + $0x53]]
        %v2918 = vstv %s2917
        %v2919 = vmul.f32 %v2918, %v2109
        %v2920 = vmul.f32 %v2918, %v2110
        %v2923 = vrot.slane %v2919, 4
        %v2924 = vrot.slane %v2920, 4
        %v2925 = vsel %vm763, %v2923, %v2924
        %2926 = vrot.lane.b32.xlu0 %v2925, 122
        %v2927 = vpop.permute.xlu0 %2926
        %v2929 = vadd.f32 %v2916, %v2927
        %s2930 = sld [smem:[#allocation9 + $0x23]]
        %v2931 = vstv %s2930
        %v2932 = vmul.f32 %v2931, %v2107
        %v2933 = vmul.f32 %v2931, %v2108
        %vm2936 = vcmask 1042432
        %v2937 = vrot.slane %v2932, 5
        %v2938 = vrot.slane %v2933, 5
        %v2939 = vsel %vm2936, %v2937, %v2938
        %v2941 = vadd.f32 %v2929, %v2939
        %s2942 = sld [smem:[#allocation9 + $0x54]]
        %v2943 = vstv %s2942
        %v2944 = vmul.f32 %v2943, %v2109
        %v2945 = vmul.f32 %v2943, %v2110
        %v2948 = vrot.slane %v2944, 5
        %v2949 = vrot.slane %v2945, 5
        %v2950 = vsel %vm2936, %v2948, %v2949
        %v2952 = vadd.f32 %v2941, %v2950
        %s2953 = sld [smem:[#allocation9 + $0x24]]
        %v2954 = vstv %s2953
        %v2955 = vmul.f32 %v2954, %v2107
        %v2956 = vmul.f32 %v2954, %v2108
        %v2959 = vrot.slane %v2955, 5
        %v2960 = vrot.slane %v2956, 5
        %v2961 = vsel %vm2936, %v2959, %v2960
        %2962 = vrot.lane.b32.xlu0 %v2961, 127
        %v2963 = vpop.permute.xlu0 %2962
        %v2965 = vadd.f32 %v2952, %v2963
        %s2966 = sld [smem:[#allocation9 + $0x55]]
        %v2967 = vstv %s2966
        %v2968 = vmul.f32 %v2967, %v2109
        %v2969 = vmul.f32 %v2967, %v2110
        %v2972 = vrot.slane %v2968, 5
        %v2973 = vrot.slane %v2969, 5
        %v2974 = vsel %vm2936, %v2972, %v2973
        %2975 = vrot.lane.b32.xlu0 %v2974, 127
        %v2976 = vpop.permute.xlu0 %2975
        %v2978 = vadd.f32 %v2965, %v2976
        %s2979 = sld [smem:[#allocation9 + $0x25]]
        %v2980 = vstv %s2979
        %v2981 = vmul.f32 %v2980, %v2107
        %v2982 = vmul.f32 %v2980, %v2108
        %v2985 = vrot.slane %v2981, 5
        %v2986 = vrot.slane %v2982, 5
        %v2987 = vsel %vm2936, %v2985, %v2986
        %2988 = vrot.lane.b32.xlu0 %v2987, 126
        %v2989 = vpop.permute.xlu0 %2988
        %v2991 = vadd.f32 %v2978, %v2989
        %s2992 = sld [smem:[#allocation9 + $0x56]]
        %v2993 = vstv %s2992
        %v2994 = vmul.f32 %v2993, %v2109
        %v2995 = vmul.f32 %v2993, %v2110
        %v2998 = vrot.slane %v2994, 5
        %v2999 = vrot.slane %v2995, 5
        %v3000 = vsel %vm2936, %v2998, %v2999
        %3001 = vrot.lane.b32.xlu0 %v3000, 126
        %v3002 = vpop.permute.xlu0 %3001
        %v3004 = vadd.f32 %v2991, %v3002
        %s3005 = sld [smem:[#allocation9 + $0x26]]
        %v3006 = vstv %s3005
        %v3007 = vmul.f32 %v3006, %v2107
        %v3008 = vmul.f32 %v3006, %v2108
        %v3011 = vrot.slane %v3007, 5
        %v3012 = vrot.slane %v3008, 5
        %v3013 = vsel %vm2936, %v3011, %v3012
        %3014 = vrot.lane.b32.xlu0 %v3013, 125
        %v3015 = vpop.permute.xlu0 %3014
        %v3017 = vadd.f32 %v3004, %v3015
        %s3018 = sld [smem:[#allocation9 + $0x57]]
        %v3019 = vstv %s3018
        %v3020 = vmul.f32 %v3019, %v2109
        %v3021 = vmul.f32 %v3019, %v2110
        %v3024 = vrot.slane %v3020, 5
        %v3025 = vrot.slane %v3021, 5
        %v3026 = vsel %vm2936, %v3024, %v3025
        %3027 = vrot.lane.b32.xlu0 %v3026, 125
        %v3028 = vpop.permute.xlu0 %3027
        %v3030 = vadd.f32 %v3017, %v3028
        %s3031 = sld [smem:[#allocation9 + $0x27]]
        %v3032 = vstv %s3031
        %v3033 = vmul.f32 %v3032, %v2107
        %v3034 = vmul.f32 %v3032, %v2108
        %v3037 = vrot.slane %v3033, 5
        %v3038 = vrot.slane %v3034, 5
        %v3039 = vsel %vm2936, %v3037, %v3038
        %3040 = vrot.lane.b32.xlu0 %v3039, 124
        %v3041 = vpop.permute.xlu0 %3040
        %v3043 = vadd.f32 %v3030, %v3041
        %s3044 = sld [smem:[#allocation9 + $0x58]]
        %v3045 = vstv %s3044
        %v3046 = vmul.f32 %v3045, %v2109
        %v3047 = vmul.f32 %v3045, %v2110
        %v3050 = vrot.slane %v3046, 5
        %v3051 = vrot.slane %v3047, 5
        %v3052 = vsel %vm2936, %v3050, %v3051
        %3053 = vrot.lane.b32.xlu0 %v3052, 124
        %v3054 = vpop.permute.xlu0 %3053
        %v3056 = vadd.f32 %v3043, %v3054
        %s3057 = sld [smem:[#allocation9 + $0x28]]
        %v3058 = vstv %s3057
        %v3059 = vmul.f32 %v3058, %v2107
        %v3060 = vmul.f32 %v3058, %v2108
        %v3063 = vrot.slane %v3059, 5
        %v3064 = vrot.slane %v3060, 5
        %v3065 = vsel %vm2936, %v3063, %v3064
        %3066 = vrot.lane.b32.xlu0 %v3065, 123
        %v3067 = vpop.permute.xlu0 %3066
        %v3069 = vadd.f32 %v3056, %v3067
        %s3070 = sld [smem:[#allocation9 + $0x59]]
        %v3071 = vstv %s3070
        %v3072 = vmul.f32 %v3071, %v2109
        %v3073 = vmul.f32 %v3071, %v2110
        %v3076 = vrot.slane %v3072, 5
        %v3077 = vrot.slane %v3073, 5
        %v3078 = vsel %vm2936, %v3076, %v3077
        %3079 = vrot.lane.b32.xlu0 %v3078, 123
        %v3080 = vpop.permute.xlu0 %3079
        %v3082 = vadd.f32 %v3069, %v3080
        %s3083 = sld [smem:[#allocation9 + $0x29]]
        %v3084 = vstv %s3083
        %v3085 = vmul.f32 %v3084, %v2107
        %v3086 = vmul.f32 %v3084, %v2108
        %v3089 = vrot.slane %v3085, 5
        %v3090 = vrot.slane %v3086, 5
        %v3091 = vsel %vm2936, %v3089, %v3090
        %3092 = vrot.lane.b32.xlu0 %v3091, 122
        %v3093 = vpop.permute.xlu0 %3092
        %v3095 = vadd.f32 %v3082, %v3093
        %s3096 = sld [smem:[#allocation9 + $0x5a]]
        %v3097 = vstv %s3096
        %v3098 = vmul.f32 %v3097, %v2109
        %v3099 = vmul.f32 %v3097, %v2110
        %v3102 = vrot.slane %v3098, 5
        %v3103 = vrot.slane %v3099, 5
        %v3104 = vsel %vm2936, %v3102, %v3103
        %3105 = vrot.lane.b32.xlu0 %v3104, 122
        %v3106 = vpop.permute.xlu0 %3105
        %v3108 = vadd.f32 %v3095, %v3106
        %s3109 = sld [smem:[#allocation9 + $0x2a]]
        %v3110 = vstv %s3109
        %v3111 = vmul.f32 %v3110, %v2107
        %v3112 = vmul.f32 %v3110, %v2108
        %vm3115 = vcmask 1041408
        %v3116 = vrot.slane %v3111, 6
        %v3117 = vrot.slane %v3112, 6
        %v3118 = vsel %vm3115, %v3116, %v3117
        %v3120 = vadd.f32 %v3108, %v3118
        %s3121 = sld [smem:[#allocation9 + $0x5b]]
        %v3122 = vstv %s3121
        %v3123 = vmul.f32 %v3122, %v2109
        %v3124 = vmul.f32 %v3122, %v2110
        %v3127 = vrot.slane %v3123, 6
        %v3128 = vrot.slane %v3124, 6
        %v3129 = vsel %vm3115, %v3127, %v3128
        %v3131 = vadd.f32 %v3120, %v3129
        %s3132 = sld [smem:[#allocation9 + $0x2b]]
        %v3133 = vstv %s3132
        %v3134 = vmul.f32 %v3133, %v2107
        %v3135 = vmul.f32 %v3133, %v2108
        %v3138 = vrot.slane %v3134, 6
        %v3139 = vrot.slane %v3135, 6
        %v3140 = vsel %vm3115, %v3138, %v3139
        %3141 = vrot.lane.b32.xlu0 %v3140, 127
        %v3142 = vpop.permute.xlu0 %3141
        %v3144 = vadd.f32 %v3131, %v3142
        %s3145 = sld [smem:[#allocation9 + $0x5c]]
        %v3146 = vstv %s3145
        %v3147 = vmul.f32 %v3146, %v2109
        %v3148 = vmul.f32 %v3146, %v2110
        %v3151 = vrot.slane %v3147, 6
        %v3152 = vrot.slane %v3148, 6
        %v3153 = vsel %vm3115, %v3151, %v3152
        %3154 = vrot.lane.b32.xlu0 %v3153, 127
        %v3155 = vpop.permute.xlu0 %3154
        %v3157 = vadd.f32 %v3144, %v3155
        %s3158 = sld [smem:[#allocation9 + $0x2c]]
        %v3159 = vstv %s3158
        %v3160 = vmul.f32 %v3159, %v2107
        %v3161 = vmul.f32 %v3159, %v2108
        %v3164 = vrot.slane %v3160, 6
        %v3165 = vrot.slane %v3161, 6
        %v3166 = vsel %vm3115, %v3164, %v3165
        %3167 = vrot.lane.b32.xlu0 %v3166, 126
        %v3168 = vpop.permute.xlu0 %3167
        %v3170 = vadd.f32 %v3157, %v3168
        %s3171 = sld [smem:[#allocation9 + $0x5d]]
        %v3172 = vstv %s3171
        %v3173 = vmul.f32 %v3172, %v2109
        %v3174 = vmul.f32 %v3172, %v2110
        %v3177 = vrot.slane %v3173, 6
        %v3178 = vrot.slane %v3174, 6
        %v3179 = vsel %vm3115, %v3177, %v3178
        %3180 = vrot.lane.b32.xlu0 %v3179, 126
        %v3181 = vpop.permute.xlu0 %3180
        %v3183 = vadd.f32 %v3170, %v3181
        %s3184 = sld [smem:[#allocation9 + $0x2d]]
        %v3185 = vstv %s3184
        %v3186 = vmul.f32 %v3185, %v2107
        %v3187 = vmul.f32 %v3185, %v2108
        %v3190 = vrot.slane %v3186, 6
        %v3191 = vrot.slane %v3187, 6
        %v3192 = vsel %vm3115, %v3190, %v3191
        %3193 = vrot.lane.b32.xlu0 %v3192, 125
        %v3194 = vpop.permute.xlu0 %3193
        %v3196 = vadd.f32 %v3183, %v3194
        %s3197 = sld [smem:[#allocation9 + $0x5e]]
        %v3198 = vstv %s3197
        %v3199 = vmul.f32 %v3198, %v2109
        %v3200 = vmul.f32 %v3198, %v2110
        %v3203 = vrot.slane %v3199, 6
        %v3204 = vrot.slane %v3200, 6
        %v3205 = vsel %vm3115, %v3203, %v3204
        %3206 = vrot.lane.b32.xlu0 %v3205, 125
        %v3207 = vpop.permute.xlu0 %3206
        %v3209 = vadd.f32 %v3196, %v3207
        %s3210 = sld [smem:[#allocation9 + $0x2e]]
        %v3211 = vstv %s3210
        %v3212 = vmul.f32 %v3211, %v2107
        %v3213 = vmul.f32 %v3211, %v2108
        %v3216 = vrot.slane %v3212, 6
        %v3217 = vrot.slane %v3213, 6
        %v3218 = vsel %vm3115, %v3216, %v3217
        %3219 = vrot.lane.b32.xlu0 %v3218, 124
        %v3220 = vpop.permute.xlu0 %3219
        %v3222 = vadd.f32 %v3209, %v3220
        %s3223 = sld [smem:[#allocation9 + $0x5f]]
        %v3224 = vstv %s3223
        %v3225 = vmul.f32 %v3224, %v2109
        %v3226 = vmul.f32 %v3224, %v2110
        %v3229 = vrot.slane %v3225, 6
        %v3230 = vrot.slane %v3226, 6
        %v3231 = vsel %vm3115, %v3229, %v3230
        %3232 = vrot.lane.b32.xlu0 %v3231, 124
        %v3233 = vpop.permute.xlu0 %3232
        %v3235 = vadd.f32 %v3222, %v3233
        %s3236 = sld [smem:[#allocation9 + $0x2f]]
        %v3237 = vstv %s3236
        %v3238 = vmul.f32 %v3237, %v2107
        %v3239 = vmul.f32 %v3237, %v2108
        %v3242 = vrot.slane %v3238, 6
        %v3243 = vrot.slane %v3239, 6
        %v3244 = vsel %vm3115, %v3242, %v3243
        %3245 = vrot.lane.b32.xlu0 %v3244, 123
        %v3246 = vpop.permute.xlu0 %3245
        %v3248 = vadd.f32 %v3235, %v3246
        %s3249 = sld [smem:[#allocation9 + $0x60]]
        %v3250 = vstv %s3249
        %v3251 = vmul.f32 %v3250, %v2109
        %v3252 = vmul.f32 %v3250, %v2110
        %v3255 = vrot.slane %v3251, 6
        %v3256 = vrot.slane %v3252, 6
        %v3257 = vsel %vm3115, %v3255, %v3256
        %3258 = vrot.lane.b32.xlu0 %v3257, 123
        %v3259 = vpop.permute.xlu0 %3258
        %v3261 = vadd.f32 %v3248, %v3259
        %s3262 = sld [smem:[#allocation9 + $0x30]]
        %v3263 = vstv %s3262
        %v3264 = vmul.f32 %v3263, %v2107
        %v3265 = vmul.f32 %v3263, %v2108
        %v3268 = vrot.slane %v3264, 6
        %v3269 = vrot.slane %v3265, 6
        %v3270 = vsel %vm3115, %v3268, %v3269
        %3271 = vrot.lane.b32.xlu0 %v3270, 122
        %v3272 = vpop.permute.xlu0 %3271
        %v3274 = vadd.f32 %v3261, %v3272
        %s3275 = sld [smem:[#allocation9 + $0x61]]
        %v3276 = vstv %s3275
        %v3277 = vmul.f32 %v3276, %v2109
        %v3278 = vmul.f32 %v3276, %v2110
        %v3281 = vrot.slane %v3277, 6
        %v3282 = vrot.slane %v3278, 6
        %v3283 = vsel %vm3115, %v3281, %v3282
        %3284 = vrot.lane.b32.xlu0 %v3283, 122
        %v3285 = vpop.permute.xlu0 %3284
        %v3287 = vadd.f32 %v3274, %v3285
        %v3288 = vxor.u32 %v3287, 2147483648
        %v3289 = vmul.f32 %v3288, 1.442695
        %v3290 = vpow.pop %v3289
        %v3291 = vadd.f32 %v3290, 1.0
        %v3292 = vrcp.pop %v3291
        %v3293 = vmul.f32 1.0, %v3292
        %v3294 = vlaneseq
        %v3295 = vshrl.u32 %v3294, 7
        %v3296 = vsub.s32 0, %v3295
        %v3297 = vrot.slane %v3293, %v3296
        %3299 = vbcast.lane.b32.xlu0 %v3297, 256
        %v3300 = vpop.permute.xlu0 %3299
        %v3301 = vlaneseq
        %v3302 = vshrl.u32 %v3301, 7
        %v3303 = vsub.s32 1, %v3302
        %v3304 = vrot.slane %v3293, %v3303
        %3306 = vbcast.lane.b32.xlu0 %v3304, 256
        %v3307 = vpop.permute.xlu0 %3306
        %v3308 = vlaneseq
        %v3309 = vshrl.u32 %v3308, 7
        %v3310 = vsub.s32 2, %v3309
        %v3311 = vrot.slane %v3293, %v3310
        %3313 = vbcast.lane.b32.xlu0 %v3311, 256
        %v3314 = vpop.permute.xlu0 %3313
        %v3315 = vlaneseq
        %v3316 = vshrl.u32 %v3315, 7
        %v3317 = vsub.s32 3, %v3316
        %v3318 = vrot.slane %v3293, %v3317
        %3320 = vbcast.lane.b32.xlu0 %v3318, 256
        %v3321 = vpop.permute.xlu0 %3320
        %v3322 = vlaneseq
        %v3323 = vshrl.u32 %v3322, 7
        %v3324 = vsub.s32 4, %v3323
        %v3325 = vrot.slane %v3293, %v3324
        %3327 = vbcast.lane.b32.xlu0 %v3325, 256
        %v3328 = vpop.permute.xlu0 %3327
        %v3329 = vlaneseq
        %v3330 = vshrl.u32 %v3329, 7
        %v3331 = vsub.s32 5, %v3330
        %v3332 = vrot.slane %v3293, %v3331
        %3334 = vbcast.lane.b32.xlu0 %v3332, 256
        %v3335 = vpop.permute.xlu0 %3334
        %v3336 = vlaneseq
        %v3337 = vshrl.u32 %v3336, 7
        %v3338 = vsub.s32 6, %v3337
        %v3339 = vrot.slane %v3293, %v3338
        %3341 = vbcast.lane.b32.xlu0 %v3339, 256
        %v3342 = vpop.permute.xlu0 %3341
        %v3343 = vlaneseq
        %v3344 = vshrl.u32 %v3343, 7
        %v3345 = vsub.s32 7, %v3344
        %v3346 = vrot.slane %v3293, %v3345
        %3348 = vbcast.lane.b32.xlu0 %v3346, 256
        %v3349 = vpop.permute.xlu0 %3348
        %v3350 = vmul.f32 %v1916, %v3300
        %v3351 = vmul.f32 %v1917, %v3307
        %v3352 = vmul.f32 %v1918, %v3314
        %v3353 = vmul.f32 %v1919, %v3321
        %v3354 = vmul.f32 %v1920, %v3328
        %v3355 = vmul.f32 %v1921, %v3335
        %v3356 = vmul.f32 %v1922, %v3342
        %v3357 = vmul.f32 %v1923, %v3349
        %v3358 = vadd.f32 %v3350, %v393
        %v3359 = vadd.f32 %v3351, %v394
        %v3360 = vadd.f32 %v3352, %v395
        %v3361 = vadd.f32 %v3353, %v396
        %v3362 = vadd.f32 %v3354, %v397
        %v3363 = vadd.f32 %v3355, %v398
        %v3364 = vadd.f32 %v3356, %v399
        %v3365 = vadd.f32 %v3357, %v400
        %v3366 = vmax.f32 %v3358, 0.0
        %v3367 = vmax.f32 %v3359, 0.0
        %v3368 = vmax.f32 %v3360, 0.0
        %v3369 = vmax.f32 %v3361, 0.0
        %v3370 = vmax.f32 %v3362, 0.0
        %v3371 = vmax.f32 %v3363, 0.0
        %v3372 = vmax.f32 %v3364, 0.0
        %v3373 = vmax.f32 %v3365, 0.0
        %3374 = vst.msk [vmem:[%s391] sm:$0xff] %vm428, %v3366
        %3375 = vst.msk [vmem:[%s391 + $0x8] sm:$0xff] %vm428, %v3367
        %3376 = vst.msk [vmem:[%s391 + $0x10] sm:$0xff] %vm428, %v3368
        %3377 = vst.msk [vmem:[%s391 + $0x18] sm:$0xff] %vm428, %v3369
        %3378 = vst.msk [vmem:[%s391 + $0x20] sm:$0xff] %vm428, %v3370
        %3379 = vst.msk [vmem:[%s391 + $0x28] sm:$0xff] %vm428, %v3371
        %3380 = vst.msk [vmem:[%s391 + $0x30] sm:$0xff] %vm428, %v3372
        %3381 = vst.msk [vmem:[%s391 + $0x38] sm:$0xff] %vm428, %v3373
        %s3382 = sand.u32 %s251, 1
        %s3383 = scalar_lea.sflag [#allocation7], %s3382
        %s3384 = sand.u32 %s251, 1
        %s3385 = smul.addr %s3384, 64
        %s3386 = scalar_lea.vmem [#allocation10], %s3385
        // Predicated region
        $region69: #{bottleneck_forward.1} parent=59 // pred_check
          %p3387 = pneg %p261
        $region70: #{bottleneck_forward.1} parent=59 // pred_check_branch
          %3389 = sbr.rel (%p3387) target = $region72
        $region71: #{bottleneck_forward.1} parent=59 // pred_region
          %s3391 = ssub.s32 1024, 1024
          %3392 = vsyncadd %s3383, %s3391
          %s3393 = smul.addr %s28, 8
          %s3394 = smul.addr %s3393, 128
          %s3395 = scalar_lea.hbm %s10, %s3394
          %s3396 = sshll.u32 %s3386, 4
          %s3397 = int_to_ptr.vmem [resolvable:$true] %s3396
          %3402 = dma.vmem_to_hbm [thread:$0]  %s3397, 1024, %s3395, %s3383, 128, 128, 8
        $region72: #{bottleneck_forward.1} parent=59 // pred_fallthru
          _
      $region60: #{bottleneck_forward.1} parent=5 // pred_fallthru
        _
      %p3403 = scmp.le.s32.totalorder 2, %s23
      // Predicated region
      $region73: #{bottleneck_forward.1} parent=5 // pred_check
        %p3404 = pneg %p3403
      $region74: #{bottleneck_forward.1} parent=5 // pred_check_branch
        %3406 = sbr.rel (%p3404) target = $region76
      $region75: #{bottleneck_forward.1} parent=5 // pred_region
        %s3407 = ssub.s32 %s23, 2
        // Predicated region
        $region77: #{bottleneck_forward.1} parent=75 // pred_check
          %p3408 = pneg %p267
        $region78: #{bottleneck_forward.1} parent=75 // pred_check_branch
          %3410 = sbr.rel (%p3408) target = $region80
        $region79: #{bottleneck_forward.1} parent=75 // pred_region
          %s3411 = sand.u32 %s252, 1
          %s3412 = scalar_lea.sflag [#allocation7], %s3411
          %s3413 = sand.u32 %s252, 1
          %s3414 = smul.addr %s3413, 64
          %s3415 = scalar_lea.vmem [#allocation10], %s3414
          %3416 = dma.done %s3412, 1024
        $region80: #{bottleneck_forward.1} parent=75 // pred_fallthru
          _
      $region76: #{bottleneck_forward.1} parent=5 // pred_fallthru
        _
    $region6: #{bottleneck_forward.1} parent=1 // loop_footer
      %s27 = sadd.s32 1, %s23
    $region7: #{bottleneck_forward.1} parent=1 // loop_footer_branch
      %22 = sbr.rel target = $region3
    $region8: #{bottleneck_forward.1} parent=1 // loop_exit
      _
    %3417 = vsyncpa [#allocation6], 1
    %s3418 = scalar_lea.sflag [#allocation6], 1
    %3419 = vsyncpa %s3418, 1
    %3420 = vsyncpa [#allocation7], 1
    %s3421 = scalar_lea.sflag [#allocation7], 1
    %3422 = vsyncpa %s3421, 1
    %3423 = vsyncpa [#allocation8], 1
    %s3424 = scalar_lea.sflag [#allocation8], 1
    %3425 = vsyncpa %s3424, 1

</llo_original>
